<compile_context>
chip_gen: v7x
topology: tpu7x:2x2x1
jax: 0.10.0
libtpu: 0.0.40
codegen_flags: <defaults>
</compile_context>

<pallas_src>
import functools

import jax
import jax.numpy as jnp
from jax.experimental import pallas as pl
from jax.experimental.pallas import tpu as pltpu

EXPANSION = 4


# ----------------------------- small helpers -------------------------------

def _rup(x, m):
    return ((x + m - 1) // m) * m


def _pad_last(x, c):
    pad = c - x.shape[-1]
    if pad == 0:
        return x
    return jnp.pad(x, [(0, 0)] * (x.ndim - 1) + [(0, pad)])


def _pick_tm(m):
    """Largest M tile (<=256, multiple of 8) dividing m, preferring >=2 tiles."""
    best = None
    for t in (256, 128, 64, 32, 16, 8):
        if m % t == 0:
            if best is None:
                best = t
            if t <= max(8, m // 2):
                return t
    return best


def _pick_tk(k):
    for t in (512, 256, 128):
        if k % t == 0:
            return t
    return k


# ------------------- fused 1x1-conv (pointwise) matmul ---------------------

def _pw_kernel(x_ref, w_ref, sc_ref, sh_ref, b_ref, *rest, has_res):
    if has_res:
        res_ref, o_ref, acc_ref = rest
    else:
        o_ref, acc_ref = rest
        res_ref = None

    @pl.when(pl.program_id(2) == 0)
    def _():
        acc_ref[...] = jnp.zeros_like(acc_ref)

    # prologue: Zero_Relu + BatchNorm (eval) affine, in f32, then bf16 -> MXU
    a = jnp.maximum(x_ref[...], 0.0) * sc_ref[...] + sh_ref[...]
    acc_ref[...] += jnp.dot(a.astype(jnp.bfloat16), w_ref[...],
                            preferred_element_type=jnp.float32)

    @pl.when(pl.program_id(2) == pl.num_programs(2) - 1)
    def _():
        out = acc_ref[...] + b_ref[...]
        if res_ref is not None:
            out = out + res_ref[...]
        o_ref[...] = out.astype(o_ref.dtype)


def _pointwise(x2d, w, b, bn_s, bn_t, residual=None):
    """y = (relu(x)*bn_s + bn_t) @ w + b [+ residual], one fused pallas_call."""
    M, K = x2d.shape
    Kw, Np = w.shape
    assert K == Kw and K % 128 == 0 and Np % 128 == 0
    M_out = M
    TM = _pick_tm(M)
    if TM is None:                                  # M not a multiple of 8
        Mp = _rup(M, 8)
        x2d = jnp.pad(x2d, ((0, Mp - M), (0, 0)))
        if residual is not None:
            residual = jnp.pad(residual, ((0, Mp - M), (0, 0)))
        M = Mp
        TM = _pick_tm(M)
    TK = _pick_tk(K)
    TN = 128
    grid = (M // TM, Np // TN, K // TK)

    in_specs = [
        pl.BlockSpec((TM, TK), lambda i, j, k: (i, k)),      # activations (f32)
        pl.BlockSpec((TK, TN), lambda i, j, k: (k, j)),      # weights (bf16)
        pl.BlockSpec((1, TK), lambda i, j, k: (0, k)),       # bn scale
        pl.BlockSpec((1, TK), lambda i, j, k: (0, k)),       # bn shift
        pl.BlockSpec((1, TN), lambda i, j, k: (0, j)),       # bias
    ]
    args = [x2d, w, bn_s, bn_t, b]
    if residual is not None:
        in_specs.append(pl.BlockSpec((TM, TN), lambda i, j, k: (i, j)))
        args.append(residual)

    out = pl.pallas_call(
        functools.partial(_pw_kernel, has_res=residual is not None),
        out_shape=jax.ShapeDtypeStruct((M, Np), jnp.float32),
        grid_spec=pltpu.PrefetchScalarGridSpec(
            num_scalar_prefetch=0,
            grid=grid,
            in_specs=in_specs,
            out_specs=pl.BlockSpec((TM, TN), lambda i, j, k: (i, j)),
            scratch_shapes=[pltpu.VMEM((TM, TN), jnp.float32)],
        ),
        compiler_params=pltpu.CompilerParams(
            dimension_semantics=("parallel", "parallel", "arbitrary"),
            vmem_limit_bytes=32 * 1024 * 1024),
    )(*args)
    return out[:M_out] if M_out != M else out


# --------------------- fused 3x3 conv (no HBM im2col) ----------------------

def _conv3x3_kernel(xf_ref, w_ref, b_ref, res_ref, o_ref, *, stride, Wph, Ho):
    # xf_ref : (s*s, Rph*Wph, C)  flattened, phase-split, zero-padded input
    # w_ref  : (9, C, C) bf16     taps in kh*3+kw order
    # b_ref  : (1, C) f32 ; res_ref/o_ref : (Ho*Wph, C) f32
    s = stride
    R = Ho * Wph
    C = o_ref.shape[-1]
    acc = jnp.zeros((R, C), jnp.float32)
    for kh in range(3):
        for kw in range(3):
            ph = (kh % s) * s + (kw % s)
            delta = (kh // s) * Wph + (kw // s)
            a = xf_ref[ph, delta:delta + R, :].astype(jnp.bfloat16)
            acc = acc + jnp.dot(a, w_ref[kh * 3 + kw],
                                preferred_element_type=jnp.float32)
    o_ref[...] = acc + b_ref[...] + res_ref[...]


def _conv3x3(h, identity2, w9, b, stride):
    """3x3 conv (pad=1, stride in {1,2}) with fused bias + shortcut add.

    h         : [N,H,W,C] f32, already relu+bn'd (done in XLA so the conv's
                zero padding stays exactly zero, matching PyTorch).
    identity2 : [N,Ho,Wo,C] f32 residual (AvgPool2d(1,stride) of conv1 out).
    """
    N, H, W, C = h.shape
    s = stride
    assert s in (1, 2)
    if s == 2:
        assert H % 2 == 0 and W % 2 == 0
    Ho, Wo = (H - 1) // s + 1, (W - 1) // s + 1
    K = 2 // s                     # extra tap reach in phase coordinates
    Wph = Wo + K
    Rph = Ho + K + 1

    # spatial zero-pad (one extra bottom row per phase so row-shifted slices
    # for the garbage columns stay in bounds) and phase split for stride 2.
    hp = jnp.pad(h, ((0, 0), (1, 1 + s), (1, 1), (0, 0)))
    if s == 1:
        xf = hp.reshape(N, 1, Rph * Wph, C)
    else:
        phases = [hp[:, p::s, q::s, :] for p in range(s) for q in range(s)]
        xf = jnp.stack(phases, axis=1).reshape(N, s * s, Rph * Wph, C)

    resw = jnp.pad(identity2, ((0, 0), (0, 0), (0, Wph - Wo), (0, 0)))
    resw = resw.reshape(N, Ho * Wph, C)

    out = pl.pallas_call(
        functools.partial(_conv3x3_kernel, stride=s, Wph=Wph, Ho=Ho),
        out_shape=jax.ShapeDtypeStruct((N, Ho * Wph, C), jnp.float32),
        grid_spec=pltpu.PrefetchScalarGridSpec(
            num_scalar_prefetch=0,
            grid=(N,),
            in_specs=[
                pl.BlockSpec((None, s * s, Rph * Wph, C),
                             lambda n: (n, 0, 0, 0)),
                pl.BlockSpec((9, C, C), lambda n: (0, 0, 0)),
                pl.BlockSpec((1, C), lambda n: (0, 0)),
                pl.BlockSpec((None, Ho * Wph, C), lambda n: (n, 0, 0)),
            ],
            out_specs=pl.BlockSpec((None, Ho * Wph, C), lambda n: (n, 0, 0)),
        ),
        compiler_params=pltpu.CompilerParams(
            dimension_semantics=("parallel",),
            vmem_limit_bytes=32 * 1024 * 1024),
    )(xf, w9, b, resw)
    # drop the K garbage columns
    return out.reshape(N, Ho, Wph, C)[:, :, :Wo, :]


# ------------------------------ parameters ---------------------------------

def make_block_params(key, inplanes, planes, stride=1, downsample=False):
    cin, cmid, cout = inplanes, planes, planes * EXPANSION
    cin_p, cmid_p, cout_p = _rup(cin, 128), _rup(cmid, 128), _rup(cout, 128)
    if not downsample:
        assert stride == 1 and cin == cout, "no-downsample block needs matching shapes"
    ks = jax.random.split(key, 16)

    def conv_w(k, kh, kw, ci, co, ci_p, co_p):
        w = jax.random.normal(k, (kh, kw, ci, co), jnp.float32) / float((kh * kw * ci) ** 0.5)
        return jnp.zeros((kh, kw, ci_p, co_p), jnp.float32).at[:, :, :ci, :co].set(w)

    def conv_b(k, co, co_p):
        b = 0.01 * jax.random.normal(k, (co,), jnp.float32)
        return jnp.zeros((co_p,), jnp.float32).at[:co].set(b)

    def bn(k, c, c_p):
        kg, kb, km, kv = jax.random.split(k, 4)
        gamma = 1.0 + 0.1 * jax.random.normal(kg, (c,), jnp.float32)
        beta = 0.1 * jax.random.normal(kb, (c,), jnp.float32)
        mean = 0.1 * jax.random.normal(km, (c,), jnp.float32)
        var = jax.random.uniform(kv, (c,), jnp.float32, 0.5, 1.5)
        s = gamma / jnp.sqrt(var + 1e-5)
        t = beta - mean * s
        sp = jnp.zeros((c_p,), jnp.float32).at[:c].set(s).reshape(1, c_p)
        tp = jnp.zeros((c_p,), jnp.float32).at[:c].set(t).reshape(1, c_p)
        return sp, tp

    p = dict(stride=stride, has_ds=downsample, cin=cin, cmid=cmid, cout=cout,
             cin_p=cin_p, cmid_p=cmid_p, cout_p=cout_p)
    p['w1'] = conv_w(ks[0], 1, 1, cin, cmid, cin_p, cmid_p)[0, 0].astype(jnp.bfloat16)
    p['b1'] = conv_b(ks[1], cmid, cmid_p).reshape(1, cmid_p)
    p['w2'] = conv_w(ks[2], 3, 3, cmid, cmid, cmid_p, cmid_p).reshape(
        9, cmid_p, cmid_p).astype(jnp.bfloat16)
    p['b2'] = conv_b(ks[3], cmid, cmid_p).reshape(1, cmid_p)
    p['w3'] = conv_w(ks[4], 1, 1, cmid, cout, cmid_p, cout_p)[0, 0].astype(jnp.bfloat16)
    p['b3'] = conv_b(ks[5], cout, cout_p).reshape(1, cout_p)
    p['bn1_s'], p['bn1_t'] = bn(ks[6], cin, cin_p)
    p['bn2_s'], p['bn2_t'] = bn(ks[7], cmid, cmid_p)
    p['bn3_s'], p['bn3_t'] = bn(ks[8], cmid, cmid_p)
    if downsample:
        p['ds_w'] = conv_w(ks[9], 1, 1, cin, cout, cin_p, cout_p)[0, 0].astype(jnp.bfloat16)
        p['ds_b'] = conv_b(ks[10], cout, cout_p).reshape(1, cout_p)
    return p


# ------------------------------- forward -----------------------------------

def augskip_bottleneck_forward(p, x_nchw):
    """AugSkipBottleneck.forward (NCHW in / NCHW out)."""
    s = p['stride']
    N, _, H, W = x_nchw.shape
    x = jnp.transpose(x_nchw, (0, 2, 3, 1)).astype(jnp.float32)   # NHWC
    x = _pad_last(x, p['cin_p'])
    M = N * H * W

    # conv1 (1x1): relu + bn1 fused prologue, bias fused epilogue
    out1 = _pointwise(x.reshape(M, p['cin_p']), p['w1'], p['b1'],
                      p['bn1_s'], p['bn1_t'])
    out1 = out1.reshape(N, H, W, p['cmid_p'])

    # conv2 (3x3, stride): relu+bn2 done in XLA (so conv zero padding stays 0),
    # bias + AvgPool2d(1,stride) shortcut fused in the kernel epilogue.
    h2 = (jnp.maximum(out1, 0.0) * p['bn2_s'].reshape(1, 1, 1, -1)
          + p['bn2_t'].reshape(1, 1, 1, -1))
    identity2 = out1 if s == 1 else out1[:, ::s, ::s, :]
    out2 = _conv3x3(h2, identity2, p['w2'], p['b2'], s)
    Ho, Wo = out2.shape[1], out2.shape[2]
    M2 = N * Ho * Wo

    # identity path
    if p['has_ds']:
        xs = x if s == 1 else x[:, ::s, ::s, :]
        identity = _pointwise(xs.reshape(M2, p['cin_p']), p['ds_w'], p['ds_b'],
                              p['bn1_s'], p['bn1_t'])
    else:
        identity = x.reshape(M, p['cin_p'])

    # conv3 (1x1): relu + bn3 fused prologue, bias + identity fused epilogue
    out3 = _pointwise(out2.reshape(M2, p['cmid_p']), p['w3'], p['b3'],
                      p['bn3_s'], p['bn3_t'], residual=identity)
    out = out3.reshape(N, Ho, Wo, p['cout_p'])[..., :p['cout']]
    return jnp.transpose(out, (0, 3, 1, 2))


# --------------------------- plain-JAX reference ---------------------------

def reference_forward(p, x_nchw):
    s = p['stride']
    x = jnp.transpose(x_nchw, (0, 2, 3, 1)).astype(jnp.float32)
    x = _pad_last(x, p['cin_p'])

    def relu_bn(u, sc, sh):
        return jnp.maximum(u, 0.0) * sc.reshape(1, 1, 1, -1) + sh.reshape(1, 1, 1, -1)

    def conv(u, w4, b, stride, pad):
        out = jax.lax.conv_general_dilated(
            u.astype(jnp.bfloat16), w4, (stride, stride),
            [(pad, pad), (pad, pad)],
            dimension_numbers=('NHWC', 'HWIO', 'NHWC'),
            preferred_element_type=jnp.float32)
        return out + b.reshape(1, 1, 1, -1)

    h1 = relu_bn(x, p['bn1_s'], p['bn1_t'])
    out1 = conv(h1, p['w1'][None, None], p['b1'], 1, 0)
    identity2 = out1 if s == 1 else out1[:, ::s, ::s, :]
    h2 = relu_bn(out1, p['bn2_s'], p['bn2_t'])
    out2 = conv(h2, p['w2'].reshape(3, 3, p['cmid_p'], p['cmid_p']),
                p['b2'], s, 1) + identity2
    h3 = relu_bn(out2, p['bn3_s'], p['bn3_t'])
    out3 = conv(h3, p['w3'][None, None], p['b3'], 1, 0)
    identity = conv(h1, p['ds_w'][None, None], p['ds_b'], s, 0) if p['has_ds'] else x
    out = (out3 + identity)[..., :p['cout']]
    return jnp.transpose(out, (0, 3, 1, 2))


# --------------------------------- main -------------------------------------

if __name__ == "__main__":
    key = jax.random.PRNGKey(0)
    k1, k2, kx = jax.random.split(key, 3)

    # Block A: identity skip (inplanes == planes*expansion), stride 1.
    pA = make_block_params(k1, inplanes=64, planes=16, stride=1, downsample=False)
    # Block B: stride-2 block with a (strided 1x1 conv) downsample.
    pB = make_block_params(k2, inplanes=64, planes=32, stride=2, downsample=True)

    x = jax.random.normal(kx, (2, 64, 16, 16), jnp.float32)       # NCHW input

    fwdA = jax.jit(functools.partial(augskip_bottleneck_forward, pA))
    fwdB = jax.jit(functools.partial(augskip_bottleneck_forward, pB))
    outA = jax.block_until_ready(fwdA(x))
    outB = jax.block_until_ready(fwdB(x))

    assert outA.shape == (2, 64, 16, 16)
    assert outB.shape == (2, 128, 8, 8)
    assert bool(jnp.all(jnp.isfinite(outA))) and bool(jnp.all(jnp.isfinite(outB)))

    refA = reference_forward(pA, x)
    refB = reference_forward(pB, x)
    assert bool(jnp.allclose(outA, refA, rtol=2e-2, atol=2e-2)), \
        float(jnp.max(jnp.abs(outA - refA)))
    assert bool(jnp.allclose(outB, refB, rtol=2e-2, atol=2e-2)), \
        float(jnp.max(jnp.abs(outB - refB)))

    print("KERNEL_OK")
</pallas_src>

<mosaic_0001>
module attributes {stable_mosaic.version = 11 : i64} {
  func.func @_pw_kernel(%arg0: i32, %arg1: i32, %arg2: i32, %arg3: memref<256x128xf32, #tpu.memory_space<vmem>>, %arg4: memref<128x128xbf16, #tpu.memory_space<vmem>>, %arg5: memref<1x128xf32, #tpu.memory_space<vmem>>, %arg6: memref<1x128xf32, #tpu.memory_space<vmem>>, %arg7: memref<1x128xf32, #tpu.memory_space<vmem>>, %arg8: memref<256x128xf32, #tpu.memory_space<vmem>>, %arg9: memref<256x128xf32, #tpu.memory_space<vmem>>) attributes {dimension_semantics = [#tpu.dimension_semantics<parallel>, #tpu.dimension_semantics<parallel>, #tpu.dimension_semantics<arbitrary>], iteration_bounds = array<i64: 2, 1, 1>, scalar_prefetch = 0 : i64, scratch_operands = 1 : i64, tpu.core_type = #tpu.core_type<tc>, window_params = [{transform_indices = @transform_0, window_bounds = array<i64: 256, 128>}, {transform_indices = @transform_1, window_bounds = array<i64: 128, 128>}, {transform_indices = @transform_2, window_bounds = array<i64: 1, 128>}, {transform_indices = @transform_3, window_bounds = array<i64: 1, 128>}, {transform_indices = @transform_4, window_bounds = array<i64: 1, 128>}, {transform_indices = @transform_5, window_bounds = array<i64: 256, 128>}]} {
    %c0_i32 = arith.constant 0 : i32
    %0 = arith.cmpi eq, %arg2, %c0_i32 : i32
    %1 = arith.extui %0 : i1 to i32
    %c0_i32_0 = arith.constant 0 : i32
    %2 = arith.cmpi ne, %1, %c0_i32_0 : i32
    scf.if %2 {
      %cst_15 = arith.constant 0.000000e+00 : f32
      %21 = vector.broadcast %cst_15 : f32 to vector<256x128xf32>
      %c0_16 = arith.constant 0 : index
      %c0_17 = arith.constant 0 : index
      %22 = vector.load %arg9[%c0_16, %c0_17] : memref<256x128xf32, #tpu.memory_space<vmem>>, vector<256x128xf32>
      tpu.vector_store %arg9[%c0_16, %c0_17], %21 {strides = array<i32>} : memref<256x128xf32, #tpu.memory_space<vmem>>, vector<256x128xf32>,
    } else {
    }
    %c0 = arith.constant 0 : index
    %c0_1 = arith.constant 0 : index
    %3 = vector.load %arg3[%c0, %c0_1] : memref<256x128xf32, #tpu.memory_space<vmem>>, vector<256x128xf32>
    %cst = arith.constant 0.000000e+00 : f32
    %4 = vector.broadcast %cst : f32 to vector<256x128xf32>
    %5 = arith.maximumf %3, %4 : vector<256x128xf32>
    %c0_2 = arith.constant 0 : index
    %c0_3 = arith.constant 0 : index
    %6 = vector.load %arg5[%c0_2, %c0_3] : memref<1x128xf32, #tpu.memory_space<vmem>>, vector<1x128xf32>
    %7 = vector.broadcast %6 : vector<1x128xf32> to vector<256x128xf32>
    %8 = arith.mulf %5, %7 : vector<256x128xf32>
    %c0_4 = arith.constant 0 : index
    %c0_5 = arith.constant 0 : index
    %9 = vector.load %arg6[%c0_4, %c0_5] : memref<1x128xf32, #tpu.memory_space<vmem>>, vector<1x128xf32>
    %10 = vector.broadcast %9 : vector<1x128xf32> to vector<256x128xf32>
    %11 = arith.addf %8, %10 : vector<256x128xf32>
    %c0_6 = arith.constant 0 : index
    %c0_7 = arith.constant 0 : index
    %12 = vector.load %arg9[%c0_6, %c0_7] : memref<256x128xf32, #tpu.memory_space<vmem>>, vector<256x128xf32>
    %13 = arith.truncf %11 : vector<256x128xf32> to vector<256x128xbf16>
    %c0_8 = arith.constant 0 : index
    %c0_9 = arith.constant 0 : index
    %14 = vector.load %arg4[%c0_8, %c0_9] : memref<128x128xbf16, #tpu.memory_space<vmem>>, vector<128x128xbf16>
    %cst_10 = arith.constant dense<0.000000e+00> : vector<256x128xf32>
    %15 = tpu.matmul %13, %14, %cst_10 {dimension_numbers = #tpu.dot_dimension_numbers<[1], [0], [0], [1], [0, 0, 1, 1], [], []>} : vector<256x128xbf16>, vector<128x128xbf16>, vector<256x128xf32> -> vector<256x128xf32>
    %16 = arith.addf %12, %15 : vector<256x128xf32>
    %c0_11 = arith.constant 0 : index
    %c0_12 = arith.constant 0 : index
    %17 = vector.load %arg9[%c0_11, %c0_12] : memref<256x128xf32, #tpu.memory_space<vmem>>, vector<256x128xf32>
    tpu.vector_store %arg9[%c0_11, %c0_12], %16 {strides = array<i32>} : memref<256x128xf32, #tpu.memory_space<vmem>>, vector<256x128xf32>,
    %c0_i32_13 = arith.constant 0 : i32
    %18 = arith.cmpi eq, %arg2, %c0_i32_13 : i32
    %19 = arith.extui %18 : i1 to i32
    %c0_i32_14 = arith.constant 0 : i32
    %20 = arith.cmpi ne, %19, %c0_i32_14 : i32
    scf.if %20 {
      %c0_15 = arith.constant 0 : index
      %c0_16 = arith.constant 0 : index
      %21 = vector.load %arg9[%c0_15, %c0_16] : memref<256x128xf32, #tpu.memory_space<vmem>>, vector<256x128xf32>
      %c0_17 = arith.constant 0 : index
      %c0_18 = arith.constant 0 : index
      %22 = vector.load %arg7[%c0_17, %c0_18] : memref<1x128xf32, #tpu.memory_space<vmem>>, vector<1x128xf32>
      %23 = vector.broadcast %22 : vector<1x128xf32> to vector<256x128xf32>
      %24 = arith.addf %21, %23 : vector<256x128xf32>
      %c0_19 = arith.constant 0 : index
      %c0_20 = arith.constant 0 : index
      %25 = vector.load %arg8[%c0_19, %c0_20] : memref<256x128xf32, #tpu.memory_space<vmem>>, vector<256x128xf32>
      tpu.vector_store %arg8[%c0_19, %c0_20], %24 {strides = array<i32>} : memref<256x128xf32, #tpu.memory_space<vmem>>, vector<256x128xf32>,
    } else {
    }
    return
  }
  func.func @transform_0(%arg0: i32, %arg1: i32, %arg2: i32) -> (i32, i32) {
    %c0_i32 = arith.constant 0 : i32
    return %arg0, %arg2 : i32, i32
  }
  func.func @transform_1(%arg0: i32, %arg1: i32, %arg2: i32) -> (i32, i32) {
    %c0_i32 = arith.constant 0 : i32
    return %arg2, %arg1 : i32, i32
  }
  func.func @transform_2(%arg0: i32, %arg1: i32, %arg2: i32) -> (i32, i32) {
    %c0_i32 = arith.constant 0 : i32
    %c0_i32_0 = arith.constant 0 : i32
    return %c0_i32, %arg2 : i32, i32
  }
  func.func @transform_3(%arg0: i32, %arg1: i32, %arg2: i32) -> (i32, i32) {
    %c0_i32 = arith.constant 0 : i32
    %c0_i32_0 = arith.constant 0 : i32
    return %c0_i32, %arg2 : i32, i32
  }
  func.func @transform_4(%arg0: i32, %arg1: i32, %arg2: i32) -> (i32, i32) {
    %c0_i32 = arith.constant 0 : i32
    %c0_i32_0 = arith.constant 0 : i32
    return %c0_i32, %arg1 : i32, i32
  }
  func.func @transform_5(%arg0: i32, %arg1: i32, %arg2: i32) -> (i32, i32) {
    %c0_i32 = arith.constant 0 : i32
    return %arg0, %arg1 : i32, i32
  }
}

module attributes {stable_mosaic.version = 11 : i64} {
  func.func @_conv3x3_kernel(%arg0: i32, %arg1: memref<1x1x342x128xf32, #tpu.memory_space<vmem>>, %arg2: memref<9x128x128xbf16, #tpu.memory_space<vmem>>, %arg3: memref<1x128xf32, #tpu.memory_space<vmem>>, %arg4: memref<1x288x128xf32, #tpu.memory_space<vmem>>, %arg5: memref<1x288x128xf32, #tpu.memory_space<vmem>>) attributes {dimension_semantics = [#tpu.dimension_semantics<parallel>], iteration_bounds = array<i64: 2>, scalar_prefetch = 0 : i64, scratch_operands = 0 : i64, tpu.core_type = #tpu.core_type<tc>, window_params = [{transform_indices = @transform_0, window_bounds = array<i64: 1, 1, 342, 128>}, {pipeline_mode = #tpu.pipeline_mode<synchronous>, transform_indices = @transform_1, window_bounds = array<i64: 9, 128, 128>}, {pipeline_mode = #tpu.pipeline_mode<synchronous>, transform_indices = @transform_2, window_bounds = array<i64: 1, 128>}, {transform_indices = @transform_3, window_bounds = array<i64: 1, 288, 128>}, {transform_indices = @transform_4, window_bounds = array<i64: 1, 288, 128>}]} {
    %cst = arith.constant 0.000000e+00 : f32
    %0 = vector.broadcast %cst : f32 to vector<288x128xf32>
    %c0 = arith.constant 0 : index
    %c0_0 = arith.constant 0 : index
    %c0_1 = arith.constant 0 : index
    %c0_2 = arith.constant 0 : index
    %1 = vector.load %arg1[%c0, %c0_0, %c0_1, %c0_2] : memref<1x1x342x128xf32, #tpu.memory_space<vmem>>, vector<1x1x288x128xf32>
    %2 = vector.shape_cast %1 : vector<1x1x288x128xf32> to vector<288x128xf32>
    %3 = arith.truncf %2 : vector<288x128xf32> to vector<288x128xbf16>
    %c0_3 = arith.constant 0 : index
    %c0_4 = arith.constant 0 : index
    %c0_5 = arith.constant 0 : index
    %4 = vector.load %arg2[%c0_3, %c0_4, %c0_5] : memref<9x128x128xbf16, #tpu.memory_space<vmem>>, vector<1x128x128xbf16>
    %5 = vector.shape_cast %4 : vector<1x128x128xbf16> to vector<128x128xbf16>
    %cst_6 = arith.constant dense<0.000000e+00> : vector<288x128xf32>
    %6 = tpu.matmul %3, %5, %cst_6 {dimension_numbers = #tpu.dot_dimension_numbers<[1], [0], [0], [1], [0, 0, 1, 1], [], []>} : vector<288x128xbf16>, vector<128x128xbf16>, vector<288x128xf32> -> vector<288x128xf32>
    %7 = arith.addf %0, %6 : vector<288x128xf32>
    %c0_7 = arith.constant 0 : index
    %c0_8 = arith.constant 0 : index
    %c1 = arith.constant 1 : index
    %c0_9 = arith.constant 0 : index
    %8 = vector.load %arg1[%c0_7, %c0_8, %c1, %c0_9] : memref<1x1x342x128xf32, #tpu.memory_space<vmem>>, vector<1x1x288x128xf32>
    %9 = vector.shape_cast %8 : vector<1x1x288x128xf32> to vector<288x128xf32>
    %10 = arith.truncf %9 : vector<288x128xf32> to vector<288x128xbf16>
    %c1_10 = arith.constant 1 : index
    %c0_11 = arith.constant 0 : index
    %c0_12 = arith.constant 0 : index
    %11 = vector.load %arg2[%c1_10, %c0_11, %c0_12] : memref<9x128x128xbf16, #tpu.memory_space<vmem>>, vector<1x128x128xbf16>
    %12 = vector.shape_cast %11 : vector<1x128x128xbf16> to vector<128x128xbf16>
    %cst_13 = arith.constant dense<0.000000e+00> : vector<288x128xf32>
    %13 = tpu.matmul %10, %12, %cst_13 {dimension_numbers = #tpu.dot_dimension_numbers<[1], [0], [0], [1], [0, 0, 1, 1], [], []>} : vector<288x128xbf16>, vector<128x128xbf16>, vector<288x128xf32> -> vector<288x128xf32>
    %14 = arith.addf %7, %13 : vector<288x128xf32>
    %c0_14 = arith.constant 0 : index
    %c0_15 = arith.constant 0 : index
    %c2 = arith.constant 2 : index
    %c0_16 = arith.constant 0 : index
    %15 = vector.load %arg1[%c0_14, %c0_15, %c2, %c0_16] : memref<1x1x342x128xf32, #tpu.memory_space<vmem>>, vector<1x1x288x128xf32>
    %16 = vector.shape_cast %15 : vector<1x1x288x128xf32> to vector<288x128xf32>
    %17 = arith.truncf %16 : vector<288x128xf32> to vector<288x128xbf16>
    %c2_17 = arith.constant 2 : index
    %c0_18 = arith.constant 0 : index
    %c0_19 = arith.constant 0 : index
    %18 = vector.load %arg2[%c2_17, %c0_18, %c0_19] : memref<9x128x128xbf16, #tpu.memory_space<vmem>>, vector<1x128x128xbf16>
    %19 = vector.shape_cast %18 : vector<1x128x128xbf16> to vector<128x128xbf16>
    %cst_20 = arith.constant dense<0.000000e+00> : vector<288x128xf32>
    %20 = tpu.matmul %17, %19, %cst_20 {dimension_numbers = #tpu.dot_dimension_numbers<[1], [0], [0], [1], [0, 0, 1, 1], [], []>} : vector<288x128xbf16>, vector<128x128xbf16>, vector<288x128xf32> -> vector<288x128xf32>
    %21 = arith.addf %14, %20 : vector<288x128xf32>
    %c0_21 = arith.constant 0 : index
    %c0_22 = arith.constant 0 : index
    %c18 = arith.constant 18 : index
    %c0_23 = arith.constant 0 : index
    %22 = vector.load %arg1[%c0_21, %c0_22, %c18, %c0_23] : memref<1x1x342x128xf32, #tpu.memory_space<vmem>>, vector<1x1x288x128xf32>
    %23 = vector.shape_cast %22 : vector<1x1x288x128xf32> to vector<288x128xf32>
    %24 = arith.truncf %23 : vector<288x128xf32> to vector<288x128xbf16>
    %c3 = arith.constant 3 : index
    %c0_24 = arith.constant 0 : index
    %c0_25 = arith.constant 0 : index
    %25 = vector.load %arg2[%c3, %c0_24, %c0_25] : memref<9x128x128xbf16, #tpu.memory_space<vmem>>, vector<1x128x128xbf16>
    %26 = vector.shape_cast %25 : vector<1x128x128xbf16> to vector<128x128xbf16>
    %cst_26 = arith.constant dense<0.000000e+00> : vector<288x128xf32>
    %27 = tpu.matmul %24, %26, %cst_26 {dimension_numbers = #tpu.dot_dimension_numbers<[1], [0], [0], [1], [0, 0, 1, 1], [], []>} : vector<288x128xbf16>, vector<128x128xbf16>, vector<288x128xf32> -> vector<288x128xf32>
    %28 = arith.addf %21, %27 : vector<288x128xf32>
    %c0_27 = arith.constant 0 : index
    %c0_28 = arith.constant 0 : index
    %c19 = arith.constant 19 : index
    %c0_29 = arith.constant 0 : index
    %29 = vector.load %arg1[%c0_27, %c0_28, %c19, %c0_29] : memref<1x1x342x128xf32, #tpu.memory_space<vmem>>, vector<1x1x288x128xf32>
    %30 = vector.shape_cast %29 : vector<1x1x288x128xf32> to vector<288x128xf32>
    %31 = arith.truncf %30 : vector<288x128xf32> to vector<288x128xbf16>
    %c4 = arith.constant 4 : index
    %c0_30 = arith.constant 0 : index
    %c0_31 = arith.constant 0 : index
    %32 = vector.load %arg2[%c4, %c0_30, %c0_31] : memref<9x128x128xbf16, #tpu.memory_space<vmem>>, vector<1x128x128xbf16>
    %33 = vector.shape_cast %32 : vector<1x128x128xbf16> to vector<128x128xbf16>
    %cst_32 = arith.constant dense<0.000000e+00> : vector<288x128xf32>
    %34 = tpu.matmul %31, %33, %cst_32 {dimension_numbers = #tpu.dot_dimension_numbers<[1], [0], [0], [1], [0, 0, 1, 1], [], []>} : vector<288x128xbf16>, vector<128x128xbf16>, vector<288x128xf32> -> vector<288x128xf32>
    %35 = arith.addf %28, %34 : vector<288x128xf32>
    %c0_33 = arith.constant 0 : index
    %c0_34 = arith.constant 0 : index
    %c20 = arith.constant 20 : index
    %c0_35 = arith.constant 0 : index
    %36 = vector.load %arg1[%c0_33, %c0_34, %c20, %c0_35] : memref<1x1x342x128xf32, #tpu.memory_space<vmem>>, vector<1x1x288x128xf32>
    %37 = vector.shape_cast %36 : vector<1x1x288x128xf32> to vector<288x128xf32>
    %38 = arith.truncf %37 : vector<288x128xf32> to vector<288x128xbf16>
    %c5 = arith.constant 5 : index
    %c0_36 = arith.constant 0 : index
    %c0_37 = arith.constant 0 : index
    %39 = vector.load %arg2[%c5, %c0_36, %c0_37] : memref<9x128x128xbf16, #tpu.memory_space<vmem>>, vector<1x128x128xbf16>
    %40 = vector.shape_cast %39 : vector<1x128x128xbf16> to vector<128x128xbf16>
    %cst_38 = arith.constant dense<0.000000e+00> : vector<288x128xf32>
    %41 = tpu.matmul %38, %40, %cst_38 {dimension_numbers = #tpu.dot_dimension_numbers<[1], [0], [0], [1], [0, 0, 1, 1], [], []>} : vector<288x128xbf16>, vector<128x128xbf16>, vector<288x128xf32> -> vector<288x128xf32>
    %42 = arith.addf %35, %41 : vector<288x128xf32>
    %c0_39 = arith.constant 0 : index
    %c0_40 = arith.constant 0 : index
    %c36 = arith.constant 36 : index
    %c0_41 = arith.constant 0 : index
    %43 = vector.load %arg1[%c0_39, %c0_40, %c36, %c0_41] : memref<1x1x342x128xf32, #tpu.memory_space<vmem>>, vector<1x1x288x128xf32>
    %44 = vector.shape_cast %43 : vector<1x1x288x128xf32> to vector<288x128xf32>
    %45 = arith.truncf %44 : vector<288x128xf32> to vector<288x128xbf16>
    %c6 = arith.constant 6 : index
    %c0_42 = arith.constant 0 : index
    %c0_43 = arith.constant 0 : index
    %46 = vector.load %arg2[%c6, %c0_42, %c0_43] : memref<9x128x128xbf16, #tpu.memory_space<vmem>>, vector<1x128x128xbf16>
    %47 = vector.shape_cast %46 : vector<1x128x128xbf16> to vector<128x128xbf16>
    %cst_44 = arith.constant dense<0.000000e+00> : vector<288x128xf32>
    %48 = tpu.matmul %45, %47, %cst_44 {dimension_numbers = #tpu.dot_dimension_numbers<[1], [0], [0], [1], [0, 0, 1, 1], [], []>} : vector<288x128xbf16>, vector<128x128xbf16>, vector<288x128xf32> -> vector<288x128xf32>
    %49 = arith.addf %42, %48 : vector<288x128xf32>
    %c0_45 = arith.constant 0 : index
    %c0_46 = arith.constant 0 : index
    %c37 = arith.constant 37 : index
    %c0_47 = arith.constant 0 : index
    %50 = vector.load %arg1[%c0_45, %c0_46, %c37, %c0_47] : memref<1x1x342x128xf32, #tpu.memory_space<vmem>>, vector<1x1x288x128xf32>
    %51 = vector.shape_cast %50 : vector<1x1x288x128xf32> to vector<288x128xf32>
    %52 = arith.truncf %51 : vector<288x128xf32> to vector<288x128xbf16>
    %c7 = arith.constant 7 : index
    %c0_48 = arith.constant 0 : index
    %c0_49 = arith.constant 0 : index
    %53 = vector.load %arg2[%c7, %c0_48, %c0_49] : memref<9x128x128xbf16, #tpu.memory_space<vmem>>, vector<1x128x128xbf16>
    %54 = vector.shape_cast %53 : vector<1x128x128xbf16> to vector<128x128xbf16>
    %cst_50 = arith.constant dense<0.000000e+00> : vector<288x128xf32>
    %55 = tpu.matmul %52, %54, %cst_50 {dimension_numbers = #tpu.dot_dimension_numbers<[1], [0], [0], [1], [0, 0, 1, 1], [], []>} : vector<288x128xbf16>, vector<128x128xbf16>, vector<288x128xf32> -> vector<288x128xf32>
    %56 = arith.addf %49, %55 : vector<288x128xf32>
    %c0_51 = arith.constant 0 : index
    %c0_52 = arith.constant 0 : index
    %c38 = arith.constant 38 : index
    %c0_53 = arith.constant 0 : index
    %57 = vector.load %arg1[%c0_51, %c0_52, %c38, %c0_53] : memref<1x1x342x128xf32, #tpu.memory_space<vmem>>, vector<1x1x288x128xf32>
    %58 = vector.shape_cast %57 : vector<1x1x288x128xf32> to vector<288x128xf32>
    %59 = arith.truncf %58 : vector<288x128xf32> to vector<288x128xbf16>
    %c8 = arith.constant 8 : index
    %c0_54 = arith.constant 0 : index
    %c0_55 = arith.constant 0 : index
    %60 = vector.load %arg2[%c8, %c0_54, %c0_55] : memref<9x128x128xbf16, #tpu.memory_space<vmem>>, vector<1x128x128xbf16>
    %61 = vector.shape_cast %60 : vector<1x128x128xbf16> to vector<128x128xbf16>
    %cst_56 = arith.constant dense<0.000000e+00> : vector<288x128xf32>
    %62 = tpu.matmul %59, %61, %cst_56 {dimension_numbers = #tpu.dot_dimension_numbers<[1], [0], [0], [1], [0, 0, 1, 1], [], []>} : vector<288x128xbf16>, vector<128x128xbf16>, vector<288x128xf32> -> vector<288x128xf32>
    %63 = arith.addf %56, %62 : vector<288x128xf32>
    %c0_57 = arith.constant 0 : index
    %c0_58 = arith.constant 0 : index
    %64 = vector.load %arg3[%c0_57, %c0_58] : memref<1x128xf32, #tpu.memory_space<vmem>>, vector<1x128xf32>
    %65 = vector.broadcast %64 : vector<1x128xf32> to vector<288x128xf32>
    %66 = arith.addf %63, %65 : vector<288x128xf32>
    %c0_59 = arith.constant 0 : index
    %c0_60 = arith.constant 0 : index
    %c0_61 = arith.constant 0 : index
    %67 = vector.load %arg4[%c0_59, %c0_60, %c0_61] : memref<1x288x128xf32, #tpu.memory_space<vmem>>, vector<1x288x128xf32>
    %68 = vector.shape_cast %67 : vector<1x288x128xf32> to vector<288x128xf32>
    %69 = arith.addf %66, %68 : vector<288x128xf32>
    %c0_62 = arith.constant 0 : index
    %c0_63 = arith.constant 0 : index
    %c0_64 = arith.constant 0 : index
    %70 = vector.load %arg5[%c0_62, %c0_63, %c0_64] : memref<1x288x128xf32, #tpu.memory_space<vmem>>, vector<1x288x128xf32>
    %71 = vector.shape_cast %70 : vector<1x288x128xf32> to vector<288x128xf32>
    %72 = vector.shape_cast %69 : vector<288x128xf32> to vector<1x288x128xf32>
    tpu.vector_store %arg5[%c0_62, %c0_63, %c0_64], %72 {strides = array<i32>} : memref<1x288x128xf32, #tpu.memory_space<vmem>>, vector<1x288x128xf32>,
    return
  }
  func.func @transform_0(%arg0: i32) -> (i32, i32, i32, i32) {
    %c0_i32 = arith.constant 0 : i32
    %c0_i32_0 = arith.constant 0 : i32
    %c0_i32_1 = arith.constant 0 : i32
    %c0_i32_2 = arith.constant 0 : i32
    return %arg0, %c0_i32, %c0_i32_0, %c0_i32_1 : i32, i32, i32, i32
  }
  func.func @transform_1(%arg0: i32) -> (i32, i32, i32) {
    %c0_i32 = arith.constant 0 : i32
    %c0_i32_0 = arith.constant 0 : i32
    %c0_i32_1 = arith.constant 0 : i32
    %c0_i32_2 = arith.constant 0 : i32
    return %c0_i32, %c0_i32_0, %c0_i32_1 : i32, i32, i32
  }
  func.func @transform_2(%arg0: i32) -> (i32, i32) {
    %c0_i32 = arith.constant 0 : i32
    %c0_i32_0 = arith.constant 0 : i32
    %c0_i32_1 = arith.constant 0 : i32
    return %c0_i32, %c0_i32_0 : i32, i32
  }
  func.func @transform_3(%arg0: i32) -> (i32, i32, i32) {
    %c0_i32 = arith.constant 0 : i32
    %c0_i32_0 = arith.constant 0 : i32
    %c0_i32_1 = arith.constant 0 : i32
    return %arg0, %c0_i32, %c0_i32_0 : i32, i32, i32
  }
  func.func @transform_4(%arg0: i32) -> (i32, i32, i32) {
    %c0_i32 = arith.constant 0 : i32
    %c0_i32_0 = arith.constant 0 : i32
    %c0_i32_1 = arith.constant 0 : i32
    return %arg0, %c0_i32, %c0_i32_0 : i32, i32, i32
  }
}

module attributes {stable_mosaic.version = 11 : i64} {
  func.func @_pw_kernel(%arg0: i32, %arg1: i32, %arg2: i32, %arg3: memref<256x128xf32, #tpu.memory_space<vmem>>, %arg4: memref<128x128xbf16, #tpu.memory_space<vmem>>, %arg5: memref<1x128xf32, #tpu.memory_space<vmem>>, %arg6: memref<1x128xf32, #tpu.memory_space<vmem>>, %arg7: memref<1x128xf32, #tpu.memory_space<vmem>>, %arg8: memref<256x128xf32, #tpu.memory_space<vmem>>, %arg9: memref<256x128xf32, #tpu.memory_space<vmem>>, %arg10: memref<256x128xf32, #tpu.memory_space<vmem>>) attributes {dimension_semantics = [#tpu.dimension_semantics<parallel>, #tpu.dimension_semantics<parallel>, #tpu.dimension_semantics<arbitrary>], iteration_bounds = array<i64: 2, 1, 1>, scalar_prefetch = 0 : i64, scratch_operands = 1 : i64, tpu.core_type = #tpu.core_type<tc>, window_params = [{transform_indices = @transform_0, window_bounds = array<i64: 256, 128>}, {transform_indices = @transform_1, window_bounds = array<i64: 128, 128>}, {transform_indices = @transform_2, window_bounds = array<i64: 1, 128>}, {transform_indices = @transform_3, window_bounds = array<i64: 1, 128>}, {transform_indices = @transform_4, window_bounds = array<i64: 1, 128>}, {transform_indices = @transform_5, window_bounds = array<i64: 256, 128>}, {transform_indices = @transform_6, window_bounds = array<i64: 256, 128>}]} {
    %c0_i32 = arith.constant 0 : i32
    %0 = arith.cmpi eq, %arg2, %c0_i32 : i32
    %1 = arith.extui %0 : i1 to i32
    %c0_i32_0 = arith.constant 0 : i32
    %2 = arith.cmpi ne, %1, %c0_i32_0 : i32
    scf.if %2 {
      %cst_15 = arith.constant 0.000000e+00 : f32
      %21 = vector.broadcast %cst_15 : f32 to vector<256x128xf32>
      %c0_16 = arith.constant 0 : index
      %c0_17 = arith.constant 0 : index
      %22 = vector.load %arg10[%c0_16, %c0_17] : memref<256x128xf32, #tpu.memory_space<vmem>>, vector<256x128xf32>
      tpu.vector_store %arg10[%c0_16, %c0_17], %21 {strides = array<i32>} : memref<256x128xf32, #tpu.memory_space<vmem>>, vector<256x128xf32>,
    } else {
    }
    %c0 = arith.constant 0 : index
    %c0_1 = arith.constant 0 : index
    %3 = vector.load %arg3[%c0, %c0_1] : memref<256x128xf32, #tpu.memory_space<vmem>>, vector<256x128xf32>
    %cst = arith.constant 0.000000e+00 : f32
    %4 = vector.broadcast %cst : f32 to vector<256x128xf32>
    %5 = arith.maximumf %3, %4 : vector<256x128xf32>
    %c0_2 = arith.constant 0 : index
    %c0_3 = arith.constant 0 : index
    %6 = vector.load %arg5[%c0_2, %c0_3] : memref<1x128xf32, #tpu.memory_space<vmem>>, vector<1x128xf32>
    %7 = vector.broadcast %6 : vector<1x128xf32> to vector<256x128xf32>
    %8 = arith.mulf %5, %7 : vector<256x128xf32>
    %c0_4 = arith.constant 0 : index
    %c0_5 = arith.constant 0 : index
    %9 = vector.load %arg6[%c0_4, %c0_5] : memref<1x128xf32, #tpu.memory_space<vmem>>, vector<1x128xf32>
    %10 = vector.broadcast %9 : vector<1x128xf32> to vector<256x128xf32>
    %11 = arith.addf %8, %10 : vector<256x128xf32>
    %c0_6 = arith.constant 0 : index
    %c0_7 = arith.constant 0 : index
    %12 = vector.load %arg10[%c0_6, %c0_7] : memref<256x128xf32, #tpu.memory_space<vmem>>, vector<256x128xf32>
    %13 = arith.truncf %11 : vector<256x128xf32> to vector<256x128xbf16>
    %c0_8 = arith.constant 0 : index
    %c0_9 = arith.constant 0 : index
    %14 = vector.load %arg4[%c0_8, %c0_9] : memref<128x128xbf16, #tpu.memory_space<vmem>>, vector<128x128xbf16>
    %cst_10 = arith.constant dense<0.000000e+00> : vector<256x128xf32>
    %15 = tpu.matmul %13, %14, %cst_10 {dimension_numbers = #tpu.dot_dimension_numbers<[1], [0], [0], [1], [0, 0, 1, 1], [], []>} : vector<256x128xbf16>, vector<128x128xbf16>, vector<256x128xf32> -> vector<256x128xf32>
    %16 = arith.addf %12, %15 : vector<256x128xf32>
    %c0_11 = arith.constant 0 : index
    %c0_12 = arith.constant 0 : index
    %17 = vector.load %arg10[%c0_11, %c0_12] : memref<256x128xf32, #tpu.memory_space<vmem>>, vector<256x128xf32>
    tpu.vector_store %arg10[%c0_11, %c0_12], %16 {strides = array<i32>} : memref<256x128xf32, #tpu.memory_space<vmem>>, vector<256x128xf32>,
    %c0_i32_13 = arith.constant 0 : i32
    %18 = arith.cmpi eq, %arg2, %c0_i32_13 : i32
    %19 = arith.extui %18 : i1 to i32
    %c0_i32_14 = arith.constant 0 : i32
    %20 = arith.cmpi ne, %19, %c0_i32_14 : i32
    scf.if %20 {
      %c0_15 = arith.constant 0 : index
      %c0_16 = arith.constant 0 : index
      %21 = vector.load %arg10[%c0_15, %c0_16] : memref<256x128xf32, #tpu.memory_space<vmem>>, vector<256x128xf32>
      %c0_17 = arith.constant 0 : index
      %c0_18 = arith.constant 0 : index
      %22 = vector.load %arg7[%c0_17, %c0_18] : memref<1x128xf32, #tpu.memory_space<vmem>>, vector<1x128xf32>
      %23 = vector.broadcast %22 : vector<1x128xf32> to vector<256x128xf32>
      %24 = arith.addf %21, %23 : vector<256x128xf32>
      %c0_19 = arith.constant 0 : index
      %c0_20 = arith.constant 0 : index
      %25 = vector.load %arg8[%c0_19, %c0_20] : memref<256x128xf32, #tpu.memory_space<vmem>>, vector<256x128xf32>
      %26 = arith.addf %24, %25 : vector<256x128xf32>
      %c0_21 = arith.constant 0 : index
      %c0_22 = arith.constant 0 : index
      %27 = vector.load %arg9[%c0_21, %c0_22] : memref<256x128xf32, #tpu.memory_space<vmem>>, vector<256x128xf32>
      tpu.vector_store %arg9[%c0_21, %c0_22], %26 {strides = array<i32>} : memref<256x128xf32, #tpu.memory_space<vmem>>, vector<256x128xf32>,
    } else {
    }
    return
  }
  func.func @transform_0(%arg0: i32, %arg1: i32, %arg2: i32) -> (i32, i32) {
    %c0_i32 = arith.constant 0 : i32
    return %arg0, %arg2 : i32, i32
  }
  func.func @transform_1(%arg0: i32, %arg1: i32, %arg2: i32) -> (i32, i32) {
    %c0_i32 = arith.constant 0 : i32
    return %arg2, %arg1 : i32, i32
  }
  func.func @transform_2(%arg0: i32, %arg1: i32, %arg2: i32) -> (i32, i32) {
    %c0_i32 = arith.constant 0 : i32
    %c0_i32_0 = arith.constant 0 : i32
    return %c0_i32, %arg2 : i32, i32
  }
  func.func @transform_3(%arg0: i32, %arg1: i32, %arg2: i32) -> (i32, i32) {
    %c0_i32 = arith.constant 0 : i32
    %c0_i32_0 = arith.constant 0 : i32
    return %c0_i32, %arg2 : i32, i32
  }
  func.func @transform_4(%arg0: i32, %arg1: i32, %arg2: i32) -> (i32, i32) {
    %c0_i32 = arith.constant 0 : i32
    %c0_i32_0 = arith.constant 0 : i32
    return %c0_i32, %arg1 : i32, i32
  }
  func.func @transform_5(%arg0: i32, %arg1: i32, %arg2: i32) -> (i32, i32) {
    %c0_i32 = arith.constant 0 : i32
    return %arg0, %arg1 : i32, i32
  }
  func.func @transform_6(%arg0: i32, %arg1: i32, %arg2: i32) -> (i32, i32) {
    %c0_i32 = arith.constant 0 : i32
    return %arg0, %arg1 : i32, i32
  }
}

</mosaic_0001>

<llo_original>
// kernel: augskip_bottleneck_forward.3
$region0: #{augskip_bottleneck_forward.3}
  #allocation0 [shape = 'u32[]', space=smem, size = 0x4, offset = 0x4, fixed_abs, tag = 'smem constant byte address 0x4 - core index']
  #allocation1 [shape = 'u32[144,128]{1,0:T(1,128)}', space=vmem, size = 0x12000, scoped, tag = 'internal scratch']
  #allocation2 [shape = 'f32[256,128]{1,0:T(8,128)}', space=vmem, size = 0x20000, scoped, tag = 'scratch operand']
  %s0 = inlined_call_operand.vmem [shape: f32[512,128], index: 0, kind: input, shape index: {}]
  %s1 = inlined_call_operand.vmem [shape: bf16[128,128], index: 1, kind: input, shape index: {}]
  %s2 = inlined_call_operand.vmem [shape: f32[1,128], index: 2, kind: input, shape index: {}]
  %s3 = inlined_call_operand.vmem [shape: f32[1,128], index: 3, kind: input, shape index: {}]
  %s4 = inlined_call_operand.vmem [shape: f32[1,128], index: 4, kind: input, shape index: {}]
  %s5 = inlined_call_operand.vmem [shape: f32[512,128], index: 5, kind: output, shape index: {}]
  %s6 = sld [smem:[#allocation0]]
  $region61: #{augskip_bottleneck_forward.3} parent=0
    _
  %s8 = ssub.s32 1, %s6
  %s9 = scalar_select 0, %s8, %s6
  loop: start=0, step=1, limit=4
  $region2: #{augskip_bottleneck_forward.3} parent=0 // loop_pre_header
    _
  $region3: #{augskip_bottleneck_forward.3} parent=0 // loop_header
    %s11 = sphi 0, %s15
    %p12 = scmp.ge.s32.totalorder %s11, 4
    %s18 = sphi 0, %s37
    %s19 = sphi 0, %s33
    %s20 = sphi 0, %s29
    %s21 = sphi 0, %s18
    %s22 = sphi 0, %s19
    %s23 = sphi 0, %s20
    %s24 = sphi 0, %s21
    %s25 = sphi 0, %s22
    %s26 = sphi 0, %s23
    %s42 = sphi 0, %s44
    %s45 = sphi 0, %s42
    %s46 = sphi 0, %s45
    %s62 = sphi 0, %s46
    %s70 = sphi 0, %s72
    %s73 = sphi 0, %s70
    %s74 = sphi 0, %s73
    %s90 = sphi 0, %s74
    %s96 = sphi 0, %s98
    %s99 = sphi 0, %s96
    %s100 = sphi 0, %s99
    %s116 = sphi 0, %s100
    %s122 = sphi 0, %s124
    %s125 = sphi 0, %s122
    %s126 = sphi 0, %s125
    %s142 = sphi 0, %s126
    %s148 = sphi 0, %s150
    %s151 = sphi 0, %s148
    %s152 = sphi 0, %s151
    %s168 = sphi 0, %s152
    %s176 = sphi 0, %s178
    %s179 = sphi 0, %s176
    %s180 = sphi 0, %s179
    %s196 = sphi 0, %s180
  $region4: #{augskip_bottleneck_forward.3} parent=0 // loop_header_branch
    %14 = sbr.rel (%p12) target = $region8
  $region5: #{augskip_bottleneck_forward.3} parent=0 // loop_body
    %s16 = ssub.s32 %s11, 1
    %s17 = ssub.s32 %s11, 2
    %s27 = sadd.s32 1, %s20
    %p28 = scmp.ge.s32.totalorder %s27, 1
    %s29 = scalar_select %p28, 0, %s27
    %s30 = sadd.s32 1, %s19
    %s31 = scalar_select %p28, %s30, %s19
    %p32 = scmp.ge.s32.totalorder %s31, 1
    %s33 = scalar_select %p32, 0, %s31
    %s34 = sadd.s32 1, %s18
    %s35 = scalar_select %p32, %s34, %s18
    %p36 = scmp.ge.s32.totalorder %s35, 2
    %s37 = scalar_select %p36, 0, %s35
    %s38 = ssub.s32 %s18, %s37
    %s39 = ssub.s32 %s20, %s29
    %s40 = sor.u32 %s38, %s39
    %p41 = scmp.eq.s32.totalorder %s40, 0
    %s43 = sadd.s32 %s42, 1
    %s44 = scalar_select %p41, %s42, %s43
    %p47 = pneg %p41
    %p48 = scmp.eq.s32.totalorder %s11, 1
    %p49 = por %p47, %p48
    %p50 = scmp.ne.s32.totalorder %s42, %s45
    %p51 = scmp.eq.s32.totalorder %s11, 0
    %p52 = por %p50, %p51
    %p53 = scmp.ne.s32.totalorder %s42, %s45
    %p54 = scmp.eq.s32.totalorder %s16, 1
    %p55 = por %p53, %p54
    %p56 = scmp.ne.s32.totalorder %s45, %s46
    %p57 = scmp.eq.s32.totalorder %s16, 0
    %p58 = por %p56, %p57
    %p59 = scmp.ne.s32.totalorder %s45, %s46
    %p60 = scmp.eq.s32.totalorder %s17, 1
    %p61 = por %p59, %p60
    %p63 = scmp.ne.s32.totalorder %s46, %s62
    %p64 = scmp.eq.s32.totalorder %s17, 0
    %p65 = por %p63, %p64
    %s66 = ssub.s32 %s20, %s29
    %s67 = ssub.s32 %s19, %s33
    %s68 = sor.u32 %s66, %s67
    %p69 = scmp.eq.s32.totalorder %s68, 0
    %s71 = sadd.s32 %s70, 1
    %s72 = scalar_select %p69, %s70, %s71
    %p75 = pneg %p69
    %p76 = scmp.eq.s32.totalorder %s11, 1
    %p77 = por %p75, %p76
    %p78 = scmp.ne.s32.totalorder %s70, %s73
    %p79 = scmp.eq.s32.totalorder %s11, 0
    %p80 = por %p78, %p79
    %p81 = scmp.ne.s32.totalorder %s70, %s73
    %p82 = scmp.eq.s32.totalorder %s16, 1
    %p83 = por %p81, %p82
    %p84 = scmp.ne.s32.totalorder %s73, %s74
    %p85 = scmp.eq.s32.totalorder %s16, 0
    %p86 = por %p84, %p85
    %p87 = scmp.ne.s32.totalorder %s73, %s74
    %p88 = scmp.eq.s32.totalorder %s17, 1
    %p89 = por %p87, %p88
    %p91 = scmp.ne.s32.totalorder %s74, %s90
    %p92 = scmp.eq.s32.totalorder %s17, 0
    %p93 = por %p91, %p92
    %s94 = ssub.s32 %s20, %s29
    %p95 = scmp.eq.s32.totalorder %s94, 0
    %s97 = sadd.s32 %s96, 1
    %s98 = scalar_select %p95, %s96, %s97
    %p101 = pneg %p95
    %p102 = scmp.eq.s32.totalorder %s11, 1
    %p103 = por %p101, %p102
    %p104 = scmp.ne.s32.totalorder %s96, %s99
    %p105 = scmp.eq.s32.totalorder %s11, 0
    %p106 = por %p104, %p105
    %p107 = scmp.ne.s32.totalorder %s96, %s99
    %p108 = scmp.eq.s32.totalorder %s16, 1
    %p109 = por %p107, %p108
    %p110 = scmp.ne.s32.totalorder %s99, %s100
    %p111 = scmp.eq.s32.totalorder %s16, 0
    %p112 = por %p110, %p111
    %p113 = scmp.ne.s32.totalorder %s99, %s100
    %p114 = scmp.eq.s32.totalorder %s17, 1
    %p115 = por %p113, %p114
    %p117 = scmp.ne.s32.totalorder %s100, %s116
    %p118 = scmp.eq.s32.totalorder %s17, 0
    %p119 = por %p117, %p118
    %s120 = ssub.s32 %s20, %s29
    %p121 = scmp.eq.s32.totalorder %s120, 0
    %s123 = sadd.s32 %s122, 1
    %s124 = scalar_select %p121, %s122, %s123
    %p127 = pneg %p121
    %p128 = scmp.eq.s32.totalorder %s11, 1
    %p129 = por %p127, %p128
    %p130 = scmp.ne.s32.totalorder %s122, %s125
    %p131 = scmp.eq.s32.totalorder %s11, 0
    %p132 = por %p130, %p131
    %p133 = scmp.ne.s32.totalorder %s122, %s125
    %p134 = scmp.eq.s32.totalorder %s16, 1
    %p135 = por %p133, %p134
    %p136 = scmp.ne.s32.totalorder %s125, %s126
    %p137 = scmp.eq.s32.totalorder %s16, 0
    %p138 = por %p136, %p137
    %p139 = scmp.ne.s32.totalorder %s125, %s126
    %p140 = scmp.eq.s32.totalorder %s17, 1
    %p141 = por %p139, %p140
    %p143 = scmp.ne.s32.totalorder %s126, %s142
    %p144 = scmp.eq.s32.totalorder %s17, 0
    %p145 = por %p143, %p144
    %s146 = ssub.s32 %s19, %s33
    %p147 = scmp.eq.s32.totalorder %s146, 0
    %s149 = sadd.s32 %s148, 1
    %s150 = scalar_select %p147, %s148, %s149
    %p153 = pneg %p147
    %p154 = scmp.eq.s32.totalorder %s11, 1
    %p155 = por %p153, %p154
    %p156 = scmp.ne.s32.totalorder %s148, %s151
    %p157 = scmp.eq.s32.totalorder %s11, 0
    %p158 = por %p156, %p157
    %p159 = scmp.ne.s32.totalorder %s148, %s151
    %p160 = scmp.eq.s32.totalorder %s16, 1
    %p161 = por %p159, %p160
    %p162 = scmp.ne.s32.totalorder %s151, %s152
    %p163 = scmp.eq.s32.totalorder %s16, 0
    %p164 = por %p162, %p163
    %p165 = scmp.ne.s32.totalorder %s151, %s152
    %p166 = scmp.eq.s32.totalorder %s17, 1
    %p167 = por %p165, %p166
    %p169 = scmp.ne.s32.totalorder %s152, %s168
    %p170 = scmp.eq.s32.totalorder %s17, 0
    %p171 = por %p169, %p170
    %s172 = ssub.s32 %s18, %s37
    %s173 = ssub.s32 %s19, %s33
    %s174 = sor.u32 %s172, %s173
    %p175 = scmp.eq.s32.totalorder %s174, 0
    %s177 = sadd.s32 %s176, 1
    %s178 = scalar_select %p175, %s176, %s177
    %p181 = pneg %p175
    %p182 = scmp.eq.s32.totalorder %s11, 1
    %p183 = por %p181, %p182
    %p184 = scmp.ne.s32.totalorder %s176, %s179
    %p185 = scmp.eq.s32.totalorder %s11, 0
    %p186 = por %p184, %p185
    %p187 = scmp.ne.s32.totalorder %s176, %s179
    %p188 = scmp.eq.s32.totalorder %s16, 1
    %p189 = por %p187, %p188
    %p190 = scmp.ne.s32.totalorder %s179, %s180
    %p191 = scmp.eq.s32.totalorder %s16, 0
    %p192 = por %p190, %p191
    %p193 = scmp.ne.s32.totalorder %s179, %s180
    %p194 = scmp.eq.s32.totalorder %s17, 1
    %p195 = por %p193, %p194
    %p197 = scmp.ne.s32.totalorder %s180, %s196
    %p198 = scmp.eq.s32.totalorder %s17, 0
    %p199 = por %p197, %p198
    %p200 = scmp.le.s32.totalorder 1, %s11
    %p201 = scmp.lt.s32.totalorder %s11, 3
    %p202 = pnand %p200, %p201
    %p203 = pneg %p202
    // Predicated region
    $region9: #{augskip_bottleneck_forward.3} parent=5 // pred_check
      _
    $region10: #{augskip_bottleneck_forward.3} parent=5 // pred_check_branch
      %205 = sbr.rel (%p202) target = $region12
    $region11: #{augskip_bottleneck_forward.3} parent=5 // pred_region
      %s206 = ssub.s32 %s11, 1
      // Predicated region
      $region13: #{augskip_bottleneck_forward.3} parent=11 // pred_check
        %p207 = pneg %p86
      $region14: #{augskip_bottleneck_forward.3} parent=11 // pred_check_branch
        %209 = sbr.rel (%p207) target = $region16
      $region15: #{augskip_bottleneck_forward.3} parent=11 // pred_region
        %s210 = smul.u32 16, %s23
        %p211 = scmp.lt.s32.totalorder %s210, 15
        %s212 = scalar_select %p211, %s210, 15
        %p213 = scmp.lt.s32.totalorder %s22, 0
        %s214 = scalar_select %p213, %s22, 0
        %s215 = sadd.s32 %s214, %s212
        %s216 = smul.addr %s215, 4
        %s217 = scalar_lea.vmem %s1, %s216
        %s218 = smul.u32 16, %s23
      $region16: #{augskip_bottleneck_forward.3} parent=11 // pred_fallthru
        _
      // Predicated region
      $region17: #{augskip_bottleneck_forward.3} parent=11 // pred_check
        %p219 = pneg %p112
      $region18: #{augskip_bottleneck_forward.3} parent=11 // pred_check_branch
        %221 = sbr.rel (%p219) target = $region20
      $region19: #{augskip_bottleneck_forward.3} parent=11 // pred_region
        %p222 = scmp.lt.s32.totalorder %s23, 0
        %s223 = scalar_select %p222, %s23, 0
        %s224 = scalar_lea.vmem %s2, %s223
      $region20: #{augskip_bottleneck_forward.3} parent=11 // pred_fallthru
        _
      // Predicated region
      $region21: #{augskip_bottleneck_forward.3} parent=11 // pred_check
        %p225 = pneg %p138
      $region22: #{augskip_bottleneck_forward.3} parent=11 // pred_check_branch
        %227 = sbr.rel (%p225) target = $region24
      $region23: #{augskip_bottleneck_forward.3} parent=11 // pred_region
        %p228 = scmp.lt.s32.totalorder %s23, 0
        %s229 = scalar_select %p228, %s23, 0
        %s230 = scalar_lea.vmem %s3, %s229
      $region24: #{augskip_bottleneck_forward.3} parent=11 // pred_fallthru
        _
      // Predicated region
      $region25: #{augskip_bottleneck_forward.3} parent=11 // pred_check
        %p231 = pneg %p164
      $region26: #{augskip_bottleneck_forward.3} parent=11 // pred_check_branch
        %233 = sbr.rel (%p231) target = $region28
      $region27: #{augskip_bottleneck_forward.3} parent=11 // pred_region
        %p234 = scmp.lt.s32.totalorder %s22, 0
        %s235 = scalar_select %p234, %s22, 0
        %s236 = scalar_lea.vmem %s4, %s235
      $region28: #{augskip_bottleneck_forward.3} parent=11 // pred_fallthru
        _
    $region12: #{augskip_bottleneck_forward.3} parent=5 // pred_fallthru
      _
    %p237 = scmp.lt.s32.totalorder %s11, 2
    // Predicated region
    $region29: #{augskip_bottleneck_forward.3} parent=5 // pred_check
      %p238 = pneg %p237
    $region30: #{augskip_bottleneck_forward.3} parent=5 // pred_check_branch
      %240 = sbr.rel (%p238) target = $region32
    $region31: #{augskip_bottleneck_forward.3} parent=5 // pred_region
      // Predicated region
      $region33: #{augskip_bottleneck_forward.3} parent=31 // pred_check
        %p241 = pneg %p52
      $region34: #{augskip_bottleneck_forward.3} parent=31 // pred_check_branch
        %243 = sbr.rel (%p241) target = $region36
      $region35: #{augskip_bottleneck_forward.3} parent=31 // pred_region
        %s244 = smul.u32 32, %s18
        %p245 = scmp.lt.s32.totalorder %s244, 63
        %s246 = scalar_select %p245, %s244, 63
        %p247 = scmp.lt.s32.totalorder %s20, 0
        %s248 = scalar_select %p247, %s20, 0
        %s249 = sadd.s32 %s248, %s246
        %s250 = smul.addr %s249, 8
        %s251 = scalar_lea.vmem %s0, %s250
        %s252 = smul.u32 32, %s18
      $region36: #{augskip_bottleneck_forward.3} parent=31 // pred_fallthru
        _
    $region32: #{augskip_bottleneck_forward.3} parent=5 // pred_fallthru
      _
    %p253 = scmp.le.s32.totalorder 1, %s11
    %p254 = scmp.lt.s32.totalorder %s11, 3
    %p255 = pnand %p253, %p254
    %p256 = pneg %p255
    // Predicated region
    $region37: #{augskip_bottleneck_forward.3} parent=5 // pred_check
      _
    $region38: #{augskip_bottleneck_forward.3} parent=5 // pred_check_branch
      %258 = sbr.rel (%p255) target = $region40
    $region39: #{augskip_bottleneck_forward.3} parent=5 // pred_region
      %s259 = ssub.s32 %s11, 1
      %s260 = smul.u32 32, %s21
      %p261 = scmp.lt.s32.totalorder %s260, 63
      %s262 = scalar_select %p261, %s260, 63
      %p263 = scmp.lt.s32.totalorder %s23, 0
      %s264 = scalar_select %p263, %s23, 0
      %s265 = sadd.s32 %s264, %s262
      %s266 = smul.addr %s265, 8
      %s267 = scalar_lea.vmem %s0, %s266
      %p268 = pneg %p58
      %p269 = pneg %p55
      %s270 = smul.u32 16, %s23
      %p271 = scmp.lt.s32.totalorder %s270, 15
      %s272 = scalar_select %p271, %s270, 15
      %p273 = scmp.lt.s32.totalorder %s22, 0
      %s274 = scalar_select %p273, %s22, 0
      %s275 = sadd.s32 %s274, %s272
      %s276 = smul.addr %s275, 4
      %s277 = scalar_lea.vmem %s1, %s276
      %p278 = pneg %p86
      %p279 = pneg %p83
      %p280 = scmp.lt.s32.totalorder %s23, 0
      %s281 = scalar_select %p280, %s23, 0
      %s282 = scalar_lea.vmem %s2, %s281
      %p283 = pneg %p112
      %p284 = pneg %p109
      %p285 = scmp.lt.s32.totalorder %s23, 0
      %s286 = scalar_select %p285, %s23, 0
      %s287 = scalar_lea.vmem %s3, %s286
      %p288 = pneg %p138
      %p289 = pneg %p135
      %p290 = scmp.lt.s32.totalorder %s22, 0
      %s291 = scalar_select %p290, %s22, 0
      %s292 = scalar_lea.vmem %s4, %s291
      %p293 = pneg %p164
      %p294 = pneg %p161
      %p295 = pneg %p192
      %p296 = pneg %p189
      %s297 = smul.u32 32, %s21
      %p298 = scmp.lt.s32.totalorder %s297, 63
      %s299 = scalar_select %p298, %s297, 63
      %p300 = scmp.lt.s32.totalorder %s22, 0
      %s301 = scalar_select %p300, %s22, 0
      %s302 = sadd.s32 %s301, %s299
      %s303 = smul.addr %s302, 8
      %s304 = scalar_lea.vmem %s5, %s303
      %s305 = smul.u32 32, %s21
      %p306 = scmp.lt.s32.totalorder %s305, 63
      %s307 = scalar_select %p306, %s305, 63
      %p308 = scmp.lt.s32.totalorder %s23, 0
      %s309 = scalar_select %p308, %s23, 0
      %s310 = sadd.s32 %s309, %s307
      %s311 = smul.addr %s310, 8
      %s312 = scalar_lea.vmem %s0, %s311
      %s313 = smul.u32 32, %s21
      %s314 = smul.u32 16, %s23
      %p315 = scmp.lt.s32.totalorder %s314, 15
      %s316 = scalar_select %p315, %s314, 15
      %p317 = scmp.lt.s32.totalorder %s22, 0
      %s318 = scalar_select %p317, %s22, 0
      %s319 = sadd.s32 %s318, %s316
      %s320 = smul.addr %s319, 4
      %s321 = scalar_lea.vmem %s1, %s320
      %s322 = smul.u32 16, %s23
      %p323 = scmp.lt.s32.totalorder %s23, 0
      %s324 = scalar_select %p323, %s23, 0
      %s325 = scalar_lea.vmem %s2, %s324
      %p326 = scmp.lt.s32.totalorder %s23, 0
      %s327 = scalar_select %p326, %s23, 0
      %s328 = scalar_lea.vmem %s3, %s327
      %p329 = scmp.lt.s32.totalorder %s22, 0
      %s330 = scalar_select %p329, %s22, 0
      %s331 = scalar_lea.vmem %s4, %s330
      %s332 = smul.u32 32, %s21
      %p333 = scmp.lt.s32.totalorder %s332, 63
      %s334 = scalar_select %p333, %s332, 63
      %p335 = scmp.lt.s32.totalorder %s22, 0
      %s336 = scalar_select %p335, %s22, 0
      %s337 = sadd.s32 %s336, %s334
      %s338 = smul.addr %s337, 8
      %s339 = scalar_lea.vmem %s5, %s338
      %s340 = smul.u32 32, %s21
      %p342 = scmp.eq.s32.totalorder %s23, 0
      // Predicated region
      $region41: #{augskip_bottleneck_forward.3} parent=39 // pred_check
        %p343 = pneg %p342
      $region42: #{augskip_bottleneck_forward.3} parent=39 // pred_check_branch
        %345 = sbr.rel (%p343) target = $region44
      $region43: #{augskip_bottleneck_forward.3} parent=39 // pred_region
        %346 = vst [vmem:[#allocation2] sm:$0xff] 0.0
        %347 = vst [vmem:[#allocation2 + $0x8] sm:$0xff] 0.0
        %348 = vst [vmem:[#allocation2 + $0x10] sm:$0xff] 0.0
        %349 = vst [vmem:[#allocation2 + $0x18] sm:$0xff] 0.0
        %350 = vst [vmem:[#allocation2 + $0x20] sm:$0xff] 0.0
        %351 = vst [vmem:[#allocation2 + $0x28] sm:$0xff] 0.0
        %352 = vst [vmem:[#allocation2 + $0x30] sm:$0xff] 0.0
        %353 = vst [vmem:[#allocation2 + $0x38] sm:$0xff] 0.0
        %354 = vst [vmem:[#allocation2 + $0x40] sm:$0xff] 0.0
        %355 = vst [vmem:[#allocation2 + $0x48] sm:$0xff] 0.0
        %356 = vst [vmem:[#allocation2 + $0x50] sm:$0xff] 0.0
        %357 = vst [vmem:[#allocation2 + $0x58] sm:$0xff] 0.0
        %358 = vst [vmem:[#allocation2 + $0x60] sm:$0xff] 0.0
        %359 = vst [vmem:[#allocation2 + $0x68] sm:$0xff] 0.0
        %360 = vst [vmem:[#allocation2 + $0x70] sm:$0xff] 0.0
        %361 = vst [vmem:[#allocation2 + $0x78] sm:$0xff] 0.0
        %362 = vst [vmem:[#allocation2 + $0x80] sm:$0xff] 0.0
        %363 = vst [vmem:[#allocation2 + $0x88] sm:$0xff] 0.0
        %364 = vst [vmem:[#allocation2 + $0x90] sm:$0xff] 0.0
        %365 = vst [vmem:[#allocation2 + $0x98] sm:$0xff] 0.0
        %366 = vst [vmem:[#allocation2 + $0xa0] sm:$0xff] 0.0
        %367 = vst [vmem:[#allocation2 + $0xa8] sm:$0xff] 0.0
        %368 = vst [vmem:[#allocation2 + $0xb0] sm:$0xff] 0.0
        %369 = vst [vmem:[#allocation2 + $0xb8] sm:$0xff] 0.0
        %370 = vst [vmem:[#allocation2 + $0xc0] sm:$0xff] 0.0
        %371 = vst [vmem:[#allocation2 + $0xc8] sm:$0xff] 0.0
        %372 = vst [vmem:[#allocation2 + $0xd0] sm:$0xff] 0.0
        %373 = vst [vmem:[#allocation2 + $0xd8] sm:$0xff] 0.0
        %374 = vst [vmem:[#allocation2 + $0xe0] sm:$0xff] 0.0
        %375 = vst [vmem:[#allocation2 + $0xe8] sm:$0xff] 0.0
        %376 = vst [vmem:[#allocation2 + $0xf0] sm:$0xff] 0.0
        %377 = vst [vmem:[#allocation2 + $0xf8] sm:$0xff] 0.0
      $region44: #{augskip_bottleneck_forward.3} parent=39 // pred_fallthru
        _
      %v378 = vld [vmem:[%s312] sm:$0xff]
      %v379 = vld [vmem:[%s312 + $0x8] sm:$0xff]
      %v380 = vld [vmem:[%s312 + $0x10] sm:$0xff]
      %v381 = vld [vmem:[%s312 + $0x18] sm:$0xff]
      %v382 = vld [vmem:[%s312 + $0x20] sm:$0xff]
      %v383 = vld [vmem:[%s312 + $0x28] sm:$0xff]
      %v384 = vld [vmem:[%s312 + $0x30] sm:$0xff]
      %v385 = vld [vmem:[%s312 + $0x38] sm:$0xff]
      %v386 = vld [vmem:[%s312 + $0x40] sm:$0xff]
      %v387 = vld [vmem:[%s312 + $0x48] sm:$0xff]
      %v388 = vld [vmem:[%s312 + $0x50] sm:$0xff]
      %v389 = vld [vmem:[%s312 + $0x58] sm:$0xff]
      %v390 = vld [vmem:[%s312 + $0x60] sm:$0xff]
      %v391 = vld [vmem:[%s312 + $0x68] sm:$0xff]
      %v392 = vld [vmem:[%s312 + $0x70] sm:$0xff]
      %v393 = vld [vmem:[%s312 + $0x78] sm:$0xff]
      %v394 = vld [vmem:[%s312 + $0x80] sm:$0xff]
      %v395 = vld [vmem:[%s312 + $0x88] sm:$0xff]
      %v396 = vld [vmem:[%s312 + $0x90] sm:$0xff]
      %v397 = vld [vmem:[%s312 + $0x98] sm:$0xff]
      %v398 = vld [vmem:[%s312 + $0xa0] sm:$0xff]
      %v399 = vld [vmem:[%s312 + $0xa8] sm:$0xff]
      %v400 = vld [vmem:[%s312 + $0xb0] sm:$0xff]
      %v401 = vld [vmem:[%s312 + $0xb8] sm:$0xff]
      %v402 = vld [vmem:[%s312 + $0xc0] sm:$0xff]
      %v403 = vld [vmem:[%s312 + $0xc8] sm:$0xff]
      %v404 = vld [vmem:[%s312 + $0xd0] sm:$0xff]
      %v405 = vld [vmem:[%s312 + $0xd8] sm:$0xff]
      %v406 = vld [vmem:[%s312 + $0xe0] sm:$0xff]
      %v407 = vld [vmem:[%s312 + $0xe8] sm:$0xff]
      %v408 = vld [vmem:[%s312 + $0xf0] sm:$0xff]
      %v409 = vld [vmem:[%s312 + $0xf8] sm:$0xff]
      %v410 = vmax.f32 %v378, 0.0
      %v411 = vmax.f32 %v379, 0.0
      %v412 = vmax.f32 %v380, 0.0
      %v413 = vmax.f32 %v381, 0.0
      %v414 = vmax.f32 %v382, 0.0
      %v415 = vmax.f32 %v383, 0.0
      %v416 = vmax.f32 %v384, 0.0
      %v417 = vmax.f32 %v385, 0.0
      %v418 = vmax.f32 %v386, 0.0
      %v419 = vmax.f32 %v387, 0.0
      %v420 = vmax.f32 %v388, 0.0
      %v421 = vmax.f32 %v389, 0.0
      %v422 = vmax.f32 %v390, 0.0
      %v423 = vmax.f32 %v391, 0.0
      %v424 = vmax.f32 %v392, 0.0
      %v425 = vmax.f32 %v393, 0.0
      %v426 = vmax.f32 %v394, 0.0
      %v427 = vmax.f32 %v395, 0.0
      %v428 = vmax.f32 %v396, 0.0
      %v429 = vmax.f32 %v397, 0.0
      %v430 = vmax.f32 %v398, 0.0
      %v431 = vmax.f32 %v399, 0.0
      %v432 = vmax.f32 %v400, 0.0
      %v433 = vmax.f32 %v401, 0.0
      %v434 = vmax.f32 %v402, 0.0
      %v435 = vmax.f32 %v403, 0.0
      %v436 = vmax.f32 %v404, 0.0
      %v437 = vmax.f32 %v405, 0.0
      %v438 = vmax.f32 %v406, 0.0
      %v439 = vmax.f32 %v407, 0.0
      %v440 = vmax.f32 %v408, 0.0
      %v441 = vmax.f32 %v409, 0.0
      %v442 = vld [vmem:[%s325] sm:$0x1]
      %v444 = vlaneseq
      %v445 = vshrl.u32 %v444, 7
      %v446 = vsub.s32 0, %v445
      %v447 = vrot.slane %v442, %v446
      %v449 = vmul.f32 %v410, %v447
      %v450 = vmul.f32 %v411, %v447
      %v451 = vmul.f32 %v412, %v447
      %v452 = vmul.f32 %v413, %v447
      %v453 = vmul.f32 %v414, %v447
      %v454 = vmul.f32 %v415, %v447
      %v455 = vmul.f32 %v416, %v447
      %v456 = vmul.f32 %v417, %v447
      %v457 = vmul.f32 %v418, %v447
      %v458 = vmul.f32 %v419, %v447
      %v459 = vmul.f32 %v420, %v447
      %v460 = vmul.f32 %v421, %v447
      %v461 = vmul.f32 %v422, %v447
      %v462 = vmul.f32 %v423, %v447
      %v463 = vmul.f32 %v424, %v447
      %v464 = vmul.f32 %v425, %v447
      %v465 = vmul.f32 %v426, %v447
      %v466 = vmul.f32 %v427, %v447
      %v467 = vmul.f32 %v428, %v447
      %v468 = vmul.f32 %v429, %v447
      %v469 = vmul.f32 %v430, %v447
      %v470 = vmul.f32 %v431, %v447
      %v471 = vmul.f32 %v432, %v447
      %v472 = vmul.f32 %v433, %v447
      %v473 = vmul.f32 %v434, %v447
      %v474 = vmul.f32 %v435, %v447
      %v475 = vmul.f32 %v436, %v447
      %v476 = vmul.f32 %v437, %v447
      %v477 = vmul.f32 %v438, %v447
      %v478 = vmul.f32 %v439, %v447
      %v479 = vmul.f32 %v440, %v447
      %v480 = vmul.f32 %v441, %v447
      %v481 = vld [vmem:[%s328] sm:$0x1]
      %v483 = vlaneseq
      %v484 = vshrl.u32 %v483, 7
      %v485 = vsub.s32 0, %v484
      %v486 = vrot.slane %v481, %v485
      %v488 = vadd.f32 %v449, %v486
      %v489 = vadd.f32 %v450, %v486
      %v490 = vadd.f32 %v451, %v486
      %v491 = vadd.f32 %v452, %v486
      %v492 = vadd.f32 %v453, %v486
      %v493 = vadd.f32 %v454, %v486
      %v494 = vadd.f32 %v455, %v486
      %v495 = vadd.f32 %v456, %v486
      %v496 = vadd.f32 %v457, %v486
      %v497 = vadd.f32 %v458, %v486
      %v498 = vadd.f32 %v459, %v486
      %v499 = vadd.f32 %v460, %v486
      %v500 = vadd.f32 %v461, %v486
      %v501 = vadd.f32 %v462, %v486
      %v502 = vadd.f32 %v463, %v486
      %v503 = vadd.f32 %v464, %v486
      %v504 = vadd.f32 %v465, %v486
      %v505 = vadd.f32 %v466, %v486
      %v506 = vadd.f32 %v467, %v486
      %v507 = vadd.f32 %v468, %v486
      %v508 = vadd.f32 %v469, %v486
      %v509 = vadd.f32 %v470, %v486
      %v510 = vadd.f32 %v471, %v486
      %v511 = vadd.f32 %v472, %v486
      %v512 = vadd.f32 %v473, %v486
      %v513 = vadd.f32 %v474, %v486
      %v514 = vadd.f32 %v475, %v486
      %v515 = vadd.f32 %v476, %v486
      %v516 = vadd.f32 %v477, %v486
      %v517 = vadd.f32 %v478, %v486
      %v518 = vadd.f32 %v479, %v486
      %v519 = vadd.f32 %v480, %v486
      %v520 = vld [vmem:[#allocation2] sm:$0xff]
      %v521 = vld [vmem:[#allocation2 + $0x8] sm:$0xff]
      %v522 = vld [vmem:[#allocation2 + $0x10] sm:$0xff]
      %v523 = vld [vmem:[#allocation2 + $0x18] sm:$0xff]
      %v524 = vld [vmem:[#allocation2 + $0x20] sm:$0xff]
      %v525 = vld [vmem:[#allocation2 + $0x28] sm:$0xff]
      %v526 = vld [vmem:[#allocation2 + $0x30] sm:$0xff]
      %v527 = vld [vmem:[#allocation2 + $0x38] sm:$0xff]
      %v528 = vld [vmem:[#allocation2 + $0x40] sm:$0xff]
      %v529 = vld [vmem:[#allocation2 + $0x48] sm:$0xff]
      %v530 = vld [vmem:[#allocation2 + $0x50] sm:$0xff]
      %v531 = vld [vmem:[#allocation2 + $0x58] sm:$0xff]
      %v532 = vld [vmem:[#allocation2 + $0x60] sm:$0xff]
      %v533 = vld [vmem:[#allocation2 + $0x68] sm:$0xff]
      %v534 = vld [vmem:[#allocation2 + $0x70] sm:$0xff]
      %v535 = vld [vmem:[#allocation2 + $0x78] sm:$0xff]
      %v536 = vld [vmem:[#allocation2 + $0x80] sm:$0xff]
      %v537 = vld [vmem:[#allocation2 + $0x88] sm:$0xff]
      %v538 = vld [vmem:[#allocation2 + $0x90] sm:$0xff]
      %v539 = vld [vmem:[#allocation2 + $0x98] sm:$0xff]
      %v540 = vld [vmem:[#allocation2 + $0xa0] sm:$0xff]
      %v541 = vld [vmem:[#allocation2 + $0xa8] sm:$0xff]
      %v542 = vld [vmem:[#allocation2 + $0xb0] sm:$0xff]
      %v543 = vld [vmem:[#allocation2 + $0xb8] sm:$0xff]
      %v544 = vld [vmem:[#allocation2 + $0xc0] sm:$0xff]
      %v545 = vld [vmem:[#allocation2 + $0xc8] sm:$0xff]
      %v546 = vld [vmem:[#allocation2 + $0xd0] sm:$0xff]
      %v547 = vld [vmem:[#allocation2 + $0xd8] sm:$0xff]
      %v548 = vld [vmem:[#allocation2 + $0xe0] sm:$0xff]
      %v549 = vld [vmem:[#allocation2 + $0xe8] sm:$0xff]
      %v550 = vld [vmem:[#allocation2 + $0xf0] sm:$0xff]
      %v551 = vld [vmem:[#allocation2 + $0xf8] sm:$0xff]
      %v552 = vpack.c.bf16 %v489, %v488
      %v553 = vpack.c.bf16 %v491, %v490
      %v554 = vpack.c.bf16 %v493, %v492
      %v555 = vpack.c.bf16 %v495, %v494
      %v556 = vpack.c.bf16 %v497, %v496
      %v557 = vpack.c.bf16 %v499, %v498
      %v558 = vpack.c.bf16 %v501, %v500
      %v559 = vpack.c.bf16 %v503, %v502
      %v560 = vpack.c.bf16 %v505, %v504
      %v561 = vpack.c.bf16 %v507, %v506
      %v562 = vpack.c.bf16 %v509, %v508
      %v563 = vpack.c.bf16 %v511, %v510
      %v564 = vpack.c.bf16 %v513, %v512
      %v565 = vpack.c.bf16 %v515, %v514
      %v566 = vpack.c.bf16 %v517, %v516
      %v567 = vpack.c.bf16 %v519, %v518
      %v568 = vld [vmem:[%s321] sm:$0xf]
      %v569 = vld [vmem:[%s321 + $0x4] sm:$0xf]
      %v570 = vld [vmem:[%s321 + $0x8] sm:$0xf]
      %v571 = vld [vmem:[%s321 + $0xc] sm:$0xf]
      %v572 = vld [vmem:[%s321 + $0x10] sm:$0xf]
      %v573 = vld [vmem:[%s321 + $0x14] sm:$0xf]
      %v574 = vld [vmem:[%s321 + $0x18] sm:$0xf]
      %v575 = vld [vmem:[%s321 + $0x1c] sm:$0xf]
      %v576 = vld [vmem:[%s321 + $0x20] sm:$0xf]
      %v577 = vld [vmem:[%s321 + $0x24] sm:$0xf]
      %v578 = vld [vmem:[%s321 + $0x28] sm:$0xf]
      %v579 = vld [vmem:[%s321 + $0x2c] sm:$0xf]
      %v580 = vld [vmem:[%s321 + $0x30] sm:$0xf]
      %v581 = vld [vmem:[%s321 + $0x34] sm:$0xf]
      %v582 = vld [vmem:[%s321 + $0x38] sm:$0xf]
      %v583 = vld [vmem:[%s321 + $0x3c] sm:$0xf]
      %v600 = vunpack.c.l.b16 %v568
      %v601 = vunpack.c.l.b16 %v569
      %v602 = vunpack.c.l.b16 %v570
      %v603 = vunpack.c.l.b16 %v571
      %v604 = vunpack.c.l.b16 %v572
      %v605 = vunpack.c.l.b16 %v573
      %v606 = vunpack.c.l.b16 %v574
      %v607 = vunpack.c.l.b16 %v575
      %v608 = vunpack.c.l.b16 %v576
      %v609 = vunpack.c.l.b16 %v577
      %v610 = vunpack.c.l.b16 %v578
      %v611 = vunpack.c.l.b16 %v579
      %v612 = vunpack.c.l.b16 %v580
      %v613 = vunpack.c.l.b16 %v581
      %v614 = vunpack.c.l.b16 %v582
      %v615 = vunpack.c.l.b16 %v583
      %v616 = vpack.c.b16 %v601, %v600
      %v617 = vpack.c.b16 %v603, %v602
      %v618 = vpack.c.b16 %v605, %v604
      %v619 = vpack.c.b16 %v607, %v606
      %v620 = vpack.c.b16 %v609, %v608
      %v621 = vpack.c.b16 %v611, %v610
      %v622 = vpack.c.b16 %v613, %v612
      %v623 = vpack.c.b16 %v615, %v614
      %632 = vmatprep.subr.bf16.mxu0 0
      %633 = vmatpush1.bf16.msra.mxu0 %v616
      %634 = vmatprep.subr.bf16.mxu0 0
      %635 = vmatpush1.bf16.msra.mxu0 %v617
      %636 = vmatprep.subr.bf16.mxu0 0
      %637 = vmatpush1.bf16.msra.mxu0 %v618
      %638 = vmatprep.subr.bf16.mxu0 0
      %639 = vmatpush1.bf16.msra.mxu0 %v619
      %640 = vmatprep.subr.bf16.mxu0 0
      %641 = vmatpush1.bf16.msra.mxu0 %v620
      %642 = vmatprep.subr.bf16.mxu0 0
      %643 = vmatpush1.bf16.msra.mxu0 %v621
      %644 = vmatprep.subr.bf16.mxu0 0
      %645 = vmatpush1.bf16.msra.mxu0 %v622
      %646 = vmatprep.subr.bf16.mxu0 0
      %647 = vmatpush1.bf16.msra.mxu0 %v623
      %648 = vmatprep.subr.bf16.mxu0 0
      %649 = vmatpush1.bf16.msra.mxu0 0
      %650 = vmatprep.subr.bf16.mxu0 0
      %651 = vmatpush1.bf16.msra.mxu0 0
      %652 = vmatprep.subr.bf16.mxu0 0
      %653 = vmatpush1.bf16.msra.mxu0 0
      %654 = vmatprep.subr.bf16.mxu0 0
      %655 = vmatpush1.bf16.msra.mxu0 0
      %656 = vmatprep.subr.bf16.mxu0 0
      %657 = vmatpush1.bf16.msra.mxu0 0
      %658 = vmatprep.subr.bf16.mxu0 0
      %659 = vmatpush1.bf16.msra.mxu0 0
      %660 = vmatprep.subr.bf16.mxu0 0
      %661 = vmatpush1.bf16.msra.mxu0 0
      %662 = vmatprep.subr.bf16.mxu0 0
      %663 = vmatpush1.bf16.msra.mxu0 0
      %664 = vmatprep.mubr.bf16.mxu0 0
      %665 = vmatmul.mubr.bf16.gmra.mrb[0].mxu0 %v552
      %v666 = vpop.f32.mrb[0].mxu0
      %v667 = vadd.f32 0.0, %v666
      %v668 = vpop.f32.mrb[0].mxu0
      %v669 = vpop.f32.mrb[0].mxu0
      %v670 = vadd.f32 0.0, %v669
      %v671 = vpop.f32.mrb[0].mxu0
      %672 = vmatprep.mubr.bf16.mxu0 0
      %673 = vmatmul.mubr.bf16.gmra.mrb[0].mxu0 %v553
      %v674 = vpop.f32.mrb[0].mxu0
      %v675 = vadd.f32 0.0, %v674
      %v676 = vpop.f32.mrb[0].mxu0
      %v677 = vpop.f32.mrb[0].mxu0
      %v678 = vadd.f32 0.0, %v677
      %v679 = vpop.f32.mrb[0].mxu0
      %680 = vmatprep.mubr.bf16.mxu0 0
      %681 = vmatmul.mubr.bf16.gmra.mrb[0].mxu0 %v554
      %v682 = vpop.f32.mrb[0].mxu0
      %v683 = vadd.f32 0.0, %v682
      %v684 = vpop.f32.mrb[0].mxu0
      %v685 = vpop.f32.mrb[0].mxu0
      %v686 = vadd.f32 0.0, %v685
      %v687 = vpop.f32.mrb[0].mxu0
      %688 = vmatprep.mubr.bf16.mxu0 0
      %689 = vmatmul.mubr.bf16.gmra.mrb[0].mxu0 %v555
      %v690 = vpop.f32.mrb[0].mxu0
      %v691 = vadd.f32 0.0, %v690
      %v692 = vpop.f32.mrb[0].mxu0
      %v693 = vpop.f32.mrb[0].mxu0
      %v694 = vadd.f32 0.0, %v693
      %v695 = vpop.f32.mrb[0].mxu0
      %696 = vmatprep.mubr.bf16.mxu0 0
      %697 = vmatmul.mubr.bf16.gmra.mrb[0].mxu0 %v556
      %v698 = vpop.f32.mrb[0].mxu0
      %v699 = vadd.f32 0.0, %v698
      %v700 = vpop.f32.mrb[0].mxu0
      %v701 = vpop.f32.mrb[0].mxu0
      %v702 = vadd.f32 0.0, %v701
      %v703 = vpop.f32.mrb[0].mxu0
      %704 = vmatprep.mubr.bf16.mxu0 0
      %705 = vmatmul.mubr.bf16.gmra.mrb[0].mxu0 %v557
      %v706 = vpop.f32.mrb[0].mxu0
      %v707 = vadd.f32 0.0, %v706
      %v708 = vpop.f32.mrb[0].mxu0
      %v709 = vpop.f32.mrb[0].mxu0
      %v710 = vadd.f32 0.0, %v709
      %v711 = vpop.f32.mrb[0].mxu0
      %712 = vmatprep.mubr.bf16.mxu0 0
      %713 = vmatmul.mubr.bf16.gmra.mrb[0].mxu0 %v558
      %v714 = vpop.f32.mrb[0].mxu0
      %v715 = vadd.f32 0.0, %v714
      %v716 = vpop.f32.mrb[0].mxu0
      %v717 = vpop.f32.mrb[0].mxu0
      %v718 = vadd.f32 0.0, %v717
      %v719 = vpop.f32.mrb[0].mxu0
      %720 = vmatprep.mubr.bf16.mxu0 0
      %721 = vmatmul.mubr.bf16.gmra.mrb[0].mxu0 %v559
      %v722 = vpop.f32.mrb[0].mxu0
      %v723 = vadd.f32 0.0, %v722
      %v724 = vpop.f32.mrb[0].mxu0
      %v725 = vpop.f32.mrb[0].mxu0
      %v726 = vadd.f32 0.0, %v725
      %v727 = vpop.f32.mrb[0].mxu0
      %728 = vmatprep.mubr.bf16.mxu0 0
      %729 = vmatmul.mubr.bf16.gmra.mrb[0].mxu0 %v560
      %v730 = vpop.f32.mrb[0].mxu0
      %v731 = vadd.f32 0.0, %v730
      %v732 = vpop.f32.mrb[0].mxu0
      %v733 = vpop.f32.mrb[0].mxu0
      %v734 = vadd.f32 0.0, %v733
      %v735 = vpop.f32.mrb[0].mxu0
      %736 = vmatprep.mubr.bf16.mxu0 0
      %737 = vmatmul.mubr.bf16.gmra.mrb[0].mxu0 %v561
      %v738 = vpop.f32.mrb[0].mxu0
      %v739 = vadd.f32 0.0, %v738
      %v740 = vpop.f32.mrb[0].mxu0
      %v741 = vpop.f32.mrb[0].mxu0
      %v742 = vadd.f32 0.0, %v741
      %v743 = vpop.f32.mrb[0].mxu0
      %744 = vmatprep.mubr.bf16.mxu0 0
      %745 = vmatmul.mubr.bf16.gmra.mrb[0].mxu0 %v562
      %v746 = vpop.f32.mrb[0].mxu0
      %v747 = vadd.f32 0.0, %v746
      %v748 = vpop.f32.mrb[0].mxu0
      %v749 = vpop.f32.mrb[0].mxu0
      %v750 = vadd.f32 0.0, %v749
      %v751 = vpop.f32.mrb[0].mxu0
      %752 = vmatprep.mubr.bf16.mxu0 0
      %753 = vmatmul.mubr.bf16.gmra.mrb[0].mxu0 %v563
      %v754 = vpop.f32.mrb[0].mxu0
      %v755 = vadd.f32 0.0, %v754
      %v756 = vpop.f32.mrb[0].mxu0
      %v757 = vpop.f32.mrb[0].mxu0
      %v758 = vadd.f32 0.0, %v757
      %v759 = vpop.f32.mrb[0].mxu0
      %760 = vmatprep.mubr.bf16.mxu0 0
      %761 = vmatmul.mubr.bf16.gmra.mrb[0].mxu0 %v564
      %v762 = vpop.f32.mrb[0].mxu0
      %v763 = vadd.f32 0.0, %v762
      %v764 = vpop.f32.mrb[0].mxu0
      %v765 = vpop.f32.mrb[0].mxu0
      %v766 = vadd.f32 0.0, %v765
      %v767 = vpop.f32.mrb[0].mxu0
      %768 = vmatprep.mubr.bf16.mxu0 0
      %769 = vmatmul.mubr.bf16.gmra.mrb[0].mxu0 %v565
      %v770 = vpop.f32.mrb[0].mxu0
      %v771 = vadd.f32 0.0, %v770
      %v772 = vpop.f32.mrb[0].mxu0
      %v773 = vpop.f32.mrb[0].mxu0
      %v774 = vadd.f32 0.0, %v773
      %v775 = vpop.f32.mrb[0].mxu0
      %776 = vmatprep.mubr.bf16.mxu0 0
      %777 = vmatmul.mubr.bf16.gmra.mrb[0].mxu0 %v566
      %v778 = vpop.f32.mrb[0].mxu0
      %v779 = vadd.f32 0.0, %v778
      %v780 = vpop.f32.mrb[0].mxu0
      %v781 = vpop.f32.mrb[0].mxu0
      %v782 = vadd.f32 0.0, %v781
      %v783 = vpop.f32.mrb[0].mxu0
      %784 = vmatprep.mubr.bf16.mxu0 0
      %785 = vmatmul.mubr.bf16.gmra.mrb[0].mxu0 %v567
      %v786 = vpop.f32.mrb[0].mxu0
      %v787 = vadd.f32 0.0, %v786
      %v788 = vpop.f32.mrb[0].mxu0
      %v789 = vpop.f32.mrb[0].mxu0
      %v790 = vadd.f32 0.0, %v789
      %v791 = vpop.f32.mrb[0].mxu0
      %792 = vdwg.mxu0
      %v793 = vadd.f32 %v520, %v667
      %v794 = vadd.f32 %v521, %v670
      %v795 = vadd.f32 %v522, %v675
      %v796 = vadd.f32 %v523, %v678
      %v797 = vadd.f32 %v524, %v683
      %v798 = vadd.f32 %v525, %v686
      %v799 = vadd.f32 %v526, %v691
      %v800 = vadd.f32 %v527, %v694
      %v801 = vadd.f32 %v528, %v699
      %v802 = vadd.f32 %v529, %v702
      %v803 = vadd.f32 %v530, %v707
      %v804 = vadd.f32 %v531, %v710
      %v805 = vadd.f32 %v532, %v715
      %v806 = vadd.f32 %v533, %v718
      %v807 = vadd.f32 %v534, %v723
      %v808 = vadd.f32 %v535, %v726
      %v809 = vadd.f32 %v536, %v731
      %v810 = vadd.f32 %v537, %v734
      %v811 = vadd.f32 %v538, %v739
      %v812 = vadd.f32 %v539, %v742
      %v813 = vadd.f32 %v540, %v747
      %v814 = vadd.f32 %v541, %v750
      %v815 = vadd.f32 %v542, %v755
      %v816 = vadd.f32 %v543, %v758
      %v817 = vadd.f32 %v544, %v763
      %v818 = vadd.f32 %v545, %v766
      %v819 = vadd.f32 %v546, %v771
      %v820 = vadd.f32 %v547, %v774
      %v821 = vadd.f32 %v548, %v779
      %v822 = vadd.f32 %v549, %v782
      %v823 = vadd.f32 %v550, %v787
      %v824 = vadd.f32 %v551, %v790
      %825 = vst [vmem:[#allocation2] sm:$0xff] %v793
      %826 = vst [vmem:[#allocation2 + $0x8] sm:$0xff] %v794
      %827 = vst [vmem:[#allocation2 + $0x10] sm:$0xff] %v795
      %828 = vst [vmem:[#allocation2 + $0x18] sm:$0xff] %v796
      %829 = vst [vmem:[#allocation2 + $0x20] sm:$0xff] %v797
      %830 = vst [vmem:[#allocation2 + $0x28] sm:$0xff] %v798
      %831 = vst [vmem:[#allocation2 + $0x30] sm:$0xff] %v799
      %832 = vst [vmem:[#allocation2 + $0x38] sm:$0xff] %v800
      %833 = vst [vmem:[#allocation2 + $0x40] sm:$0xff] %v801
      %834 = vst [vmem:[#allocation2 + $0x48] sm:$0xff] %v802
      %835 = vst [vmem:[#allocation2 + $0x50] sm:$0xff] %v803
      %836 = vst [vmem:[#allocation2 + $0x58] sm:$0xff] %v804
      %837 = vst [vmem:[#allocation2 + $0x60] sm:$0xff] %v805
      %838 = vst [vmem:[#allocation2 + $0x68] sm:$0xff] %v806
      %839 = vst [vmem:[#allocation2 + $0x70] sm:$0xff] %v807
      %840 = vst [vmem:[#allocation2 + $0x78] sm:$0xff] %v808
      %841 = vst [vmem:[#allocation2 + $0x80] sm:$0xff] %v809
      %842 = vst [vmem:[#allocation2 + $0x88] sm:$0xff] %v810
      %843 = vst [vmem:[#allocation2 + $0x90] sm:$0xff] %v811
      %844 = vst [vmem:[#allocation2 + $0x98] sm:$0xff] %v812
      %845 = vst [vmem:[#allocation2 + $0xa0] sm:$0xff] %v813
      %846 = vst [vmem:[#allocation2 + $0xa8] sm:$0xff] %v814
      %847 = vst [vmem:[#allocation2 + $0xb0] sm:$0xff] %v815
      %848 = vst [vmem:[#allocation2 + $0xb8] sm:$0xff] %v816
      %849 = vst [vmem:[#allocation2 + $0xc0] sm:$0xff] %v817
      %850 = vst [vmem:[#allocation2 + $0xc8] sm:$0xff] %v818
      %851 = vst [vmem:[#allocation2 + $0xd0] sm:$0xff] %v819
      %852 = vst [vmem:[#allocation2 + $0xd8] sm:$0xff] %v820
      %853 = vst [vmem:[#allocation2 + $0xe0] sm:$0xff] %v821
      %854 = vst [vmem:[#allocation2 + $0xe8] sm:$0xff] %v822
      %855 = vst [vmem:[#allocation2 + $0xf0] sm:$0xff] %v823
      %856 = vst [vmem:[#allocation2 + $0xf8] sm:$0xff] %v824
      // Predicated region
      $region45: #{augskip_bottleneck_forward.3} parent=39 // pred_check
        %p857 = pneg %p342
      $region46: #{augskip_bottleneck_forward.3} parent=39 // pred_check_branch
        %859 = sbr.rel (%p857) target = $region48
      $region47: #{augskip_bottleneck_forward.3} parent=39 // pred_region
        %v860 = vld [vmem:[#allocation2] sm:$0xff]
        %v861 = vld [vmem:[#allocation2 + $0x8] sm:$0xff]
        %v862 = vld [vmem:[#allocation2 + $0x10] sm:$0xff]
        %v863 = vld [vmem:[#allocation2 + $0x18] sm:$0xff]
        %v864 = vld [vmem:[#allocation2 + $0x20] sm:$0xff]
        %v865 = vld [vmem:[#allocation2 + $0x28] sm:$0xff]
        %v866 = vld [vmem:[#allocation2 + $0x30] sm:$0xff]
        %v867 = vld [vmem:[#allocation2 + $0x38] sm:$0xff]
        %v868 = vld [vmem:[#allocation2 + $0x40] sm:$0xff]
        %v869 = vld [vmem:[#allocation2 + $0x48] sm:$0xff]
        %v870 = vld [vmem:[#allocation2 + $0x50] sm:$0xff]
        %v871 = vld [vmem:[#allocation2 + $0x58] sm:$0xff]
        %v872 = vld [vmem:[#allocation2 + $0x60] sm:$0xff]
        %v873 = vld [vmem:[#allocation2 + $0x68] sm:$0xff]
        %v874 = vld [vmem:[#allocation2 + $0x70] sm:$0xff]
        %v875 = vld [vmem:[#allocation2 + $0x78] sm:$0xff]
        %v876 = vld [vmem:[#allocation2 + $0x80] sm:$0xff]
        %v877 = vld [vmem:[#allocation2 + $0x88] sm:$0xff]
        %v878 = vld [vmem:[#allocation2 + $0x90] sm:$0xff]
        %v879 = vld [vmem:[#allocation2 + $0x98] sm:$0xff]
        %v880 = vld [vmem:[#allocation2 + $0xa0] sm:$0xff]
        %v881 = vld [vmem:[#allocation2 + $0xa8] sm:$0xff]
        %v882 = vld [vmem:[#allocation2 + $0xb0] sm:$0xff]
        %v883 = vld [vmem:[#allocation2 + $0xb8] sm:$0xff]
        %v884 = vld [vmem:[#allocation2 + $0xc0] sm:$0xff]
        %v885 = vld [vmem:[#allocation2 + $0xc8] sm:$0xff]
        %v886 = vld [vmem:[#allocation2 + $0xd0] sm:$0xff]
        %v887 = vld [vmem:[#allocation2 + $0xd8] sm:$0xff]
        %v888 = vld [vmem:[#allocation2 + $0xe0] sm:$0xff]
        %v889 = vld [vmem:[#allocation2 + $0xe8] sm:$0xff]
        %v890 = vld [vmem:[#allocation2 + $0xf0] sm:$0xff]
        %v891 = vld [vmem:[#allocation2 + $0xf8] sm:$0xff]
        %v892 = vld [vmem:[%s331] sm:$0x1]
        %v894 = vlaneseq
        %v895 = vshrl.u32 %v894, 7
        %v896 = vsub.s32 0, %v895
        %v897 = vrot.slane %v892, %v896
        %v899 = vadd.f32 %v860, %v897
        %v900 = vadd.f32 %v861, %v897
        %v901 = vadd.f32 %v862, %v897
        %v902 = vadd.f32 %v863, %v897
        %v903 = vadd.f32 %v864, %v897
        %v904 = vadd.f32 %v865, %v897
        %v905 = vadd.f32 %v866, %v897
        %v906 = vadd.f32 %v867, %v897
        %v907 = vadd.f32 %v868, %v897
        %v908 = vadd.f32 %v869, %v897
        %v909 = vadd.f32 %v870, %v897
        %v910 = vadd.f32 %v871, %v897
        %v911 = vadd.f32 %v872, %v897
        %v912 = vadd.f32 %v873, %v897
        %v913 = vadd.f32 %v874, %v897
        %v914 = vadd.f32 %v875, %v897
        %v915 = vadd.f32 %v876, %v897
        %v916 = vadd.f32 %v877, %v897
        %v917 = vadd.f32 %v878, %v897
        %v918 = vadd.f32 %v879, %v897
        %v919 = vadd.f32 %v880, %v897
        %v920 = vadd.f32 %v881, %v897
        %v921 = vadd.f32 %v882, %v897
        %v922 = vadd.f32 %v883, %v897
        %v923 = vadd.f32 %v884, %v897
        %v924 = vadd.f32 %v885, %v897
        %v925 = vadd.f32 %v886, %v897
        %v926 = vadd.f32 %v887, %v897
        %v927 = vadd.f32 %v888, %v897
        %v928 = vadd.f32 %v889, %v897
        %v929 = vadd.f32 %v890, %v897
        %v930 = vadd.f32 %v891, %v897
        %931 = vst [vmem:[%s339] sm:$0xff] %v899
        %932 = vst [vmem:[%s339 + $0x8] sm:$0xff] %v900
        %933 = vst [vmem:[%s339 + $0x10] sm:$0xff] %v901
        %934 = vst [vmem:[%s339 + $0x18] sm:$0xff] %v902
        %935 = vst [vmem:[%s339 + $0x20] sm:$0xff] %v903
        %936 = vst [vmem:[%s339 + $0x28] sm:$0xff] %v904
        %937 = vst [vmem:[%s339 + $0x30] sm:$0xff] %v905
        %938 = vst [vmem:[%s339 + $0x38] sm:$0xff] %v906
        %939 = vst [vmem:[%s339 + $0x40] sm:$0xff] %v907
        %940 = vst [vmem:[%s339 + $0x48] sm:$0xff] %v908
        %941 = vst [vmem:[%s339 + $0x50] sm:$0xff] %v909
        %942 = vst [vmem:[%s339 + $0x58] sm:$0xff] %v910
        %943 = vst [vmem:[%s339 + $0x60] sm:$0xff] %v911
        %944 = vst [vmem:[%s339 + $0x68] sm:$0xff] %v912
        %945 = vst [vmem:[%s339 + $0x70] sm:$0xff] %v913
        %946 = vst [vmem:[%s339 + $0x78] sm:$0xff] %v914
        %947 = vst [vmem:[%s339 + $0x80] sm:$0xff] %v915
        %948 = vst [vmem:[%s339 + $0x88] sm:$0xff] %v916
        %949 = vst [vmem:[%s339 + $0x90] sm:$0xff] %v917
        %950 = vst [vmem:[%s339 + $0x98] sm:$0xff] %v918
        %951 = vst [vmem:[%s339 + $0xa0] sm:$0xff] %v919
        %952 = vst [vmem:[%s339 + $0xa8] sm:$0xff] %v920
        %953 = vst [vmem:[%s339 + $0xb0] sm:$0xff] %v921
        %954 = vst [vmem:[%s339 + $0xb8] sm:$0xff] %v922
        %955 = vst [vmem:[%s339 + $0xc0] sm:$0xff] %v923
        %956 = vst [vmem:[%s339 + $0xc8] sm:$0xff] %v924
        %957 = vst [vmem:[%s339 + $0xd0] sm:$0xff] %v925
        %958 = vst [vmem:[%s339 + $0xd8] sm:$0xff] %v926
        %959 = vst [vmem:[%s339 + $0xe0] sm:$0xff] %v927
        %960 = vst [vmem:[%s339 + $0xe8] sm:$0xff] %v928
        %961 = vst [vmem:[%s339 + $0xf0] sm:$0xff] %v929
        %962 = vst [vmem:[%s339 + $0xf8] sm:$0xff] %v930
      $region48: #{augskip_bottleneck_forward.3} parent=39 // pred_fallthru
        _
      %s963 = smul.u32 32, %s21
      %p964 = scmp.lt.s32.totalorder %s963, 63
      %s965 = scalar_select %p964, %s963, 63
      %p966 = scmp.lt.s32.totalorder %s22, 0
      %s967 = scalar_select %p966, %s22, 0
      %s968 = sadd.s32 %s967, %s965
      %s969 = smul.addr %s968, 8
      %s970 = scalar_lea.vmem %s5, %s969
      // Predicated region
      $region49: #{augskip_bottleneck_forward.3} parent=39 // pred_check
        %p971 = pneg %p189
      $region50: #{augskip_bottleneck_forward.3} parent=39 // pred_check_branch
        %973 = sbr.rel (%p971) target = $region52
      $region51: #{augskip_bottleneck_forward.3} parent=39 // pred_region
        %s974 = smul.u32 32, %s21
      $region52: #{augskip_bottleneck_forward.3} parent=39 // pred_fallthru
        _
    $region40: #{augskip_bottleneck_forward.3} parent=5 // pred_fallthru
      _
    %p975 = scmp.le.s32.totalorder 2, %s11
    // Predicated region
    $region53: #{augskip_bottleneck_forward.3} parent=5 // pred_check
      %p976 = pneg %p975
    $region54: #{augskip_bottleneck_forward.3} parent=5 // pred_check_branch
      %978 = sbr.rel (%p976) target = $region56
    $region55: #{augskip_bottleneck_forward.3} parent=5 // pred_region
      %s979 = ssub.s32 %s11, 2
      // Predicated region
      $region57: #{augskip_bottleneck_forward.3} parent=55 // pred_check
        %p980 = pneg %p195
      $region58: #{augskip_bottleneck_forward.3} parent=55 // pred_check_branch
        %982 = sbr.rel (%p980) target = $region60
      $region59: #{augskip_bottleneck_forward.3} parent=55 // pred_region
        %s983 = smul.u32 32, %s24
        %p984 = scmp.lt.s32.totalorder %s983, 63
        %s985 = scalar_select %p984, %s983, 63
        %p986 = scmp.lt.s32.totalorder %s25, 0
        %s987 = scalar_select %p986, %s25, 0
        %s988 = sadd.s32 %s987, %s985
        %s989 = smul.addr %s988, 8
        %s990 = scalar_lea.vmem %s5, %s989
      $region60: #{augskip_bottleneck_forward.3} parent=55 // pred_fallthru
        _
    $region56: #{augskip_bottleneck_forward.3} parent=5 // pred_fallthru
      _
  $region6: #{augskip_bottleneck_forward.3} parent=0 // loop_footer
    %s15 = sadd.s32 1, %s11
  $region7: #{augskip_bottleneck_forward.3} parent=0 // loop_footer_branch
    %10 = sbr.rel target = $region3
  $region8: #{augskip_bottleneck_forward.3} parent=0 // loop_exit
    _

// kernel: augskip_bottleneck_forward.5
$region0: #{augskip_bottleneck_forward.5}
  #allocation0 [shape = 'u32[]', space=smem, size = 0x4, offset = 0x4, fixed_abs, tag = 'smem constant byte address 0x4 - core index']
  #allocation1 [shape = 'u32[144,128]{1,0:T(1,128)}', space=vmem, size = 0x12000, scoped, tag = 'internal scratch']
  #allocation2 [shape = 'f32[256,128]{1,0:T(8,128)}', space=vmem, size = 0x20000, scoped, tag = 'scratch operand']
  %s0 = inlined_call_operand.vmem [shape: f32[512,128], index: 0, kind: input, shape index: {}]
  %s1 = inlined_call_operand.vmem [shape: bf16[128,128], index: 1, kind: input, shape index: {}]
  %s2 = inlined_call_operand.vmem [shape: f32[1,128], index: 2, kind: input, shape index: {}]
  %s3 = inlined_call_operand.vmem [shape: f32[1,128], index: 3, kind: input, shape index: {}]
  %s4 = inlined_call_operand.vmem [shape: f32[1,128], index: 4, kind: input, shape index: {}]
  %s5 = inlined_call_operand.vmem [shape: f32[512,128], index: 5, kind: input, shape index: {}]
  %s6 = inlined_call_operand.vmem [shape: f32[512,128], index: 6, kind: output, shape index: {}]
  %s7 = sld [smem:[#allocation0]]
  $region65: #{augskip_bottleneck_forward.5} parent=0
    _
  %s9 = ssub.s32 1, %s7
  %s10 = scalar_select 0, %s9, %s7
  loop: start=0, step=1, limit=4
  $region2: #{augskip_bottleneck_forward.5} parent=0 // loop_pre_header
    _
  $region3: #{augskip_bottleneck_forward.5} parent=0 // loop_header
    %s12 = sphi 0, %s16
    %p13 = scmp.ge.s32.totalorder %s12, 4
    %s19 = sphi 0, %s38
    %s20 = sphi 0, %s34
    %s21 = sphi 0, %s30
    %s22 = sphi 0, %s19
    %s23 = sphi 0, %s20
    %s24 = sphi 0, %s21
    %s25 = sphi 0, %s22
    %s26 = sphi 0, %s23
    %s27 = sphi 0, %s24
    %s43 = sphi 0, %s45
    %s46 = sphi 0, %s43
    %s47 = sphi 0, %s46
    %s63 = sphi 0, %s47
    %s71 = sphi 0, %s73
    %s74 = sphi 0, %s71
    %s75 = sphi 0, %s74
    %s91 = sphi 0, %s75
    %s97 = sphi 0, %s99
    %s100 = sphi 0, %s97
    %s101 = sphi 0, %s100
    %s117 = sphi 0, %s101
    %s123 = sphi 0, %s125
    %s126 = sphi 0, %s123
    %s127 = sphi 0, %s126
    %s143 = sphi 0, %s127
    %s149 = sphi 0, %s151
    %s152 = sphi 0, %s149
    %s153 = sphi 0, %s152
    %s169 = sphi 0, %s153
    %s177 = sphi 0, %s179
    %s180 = sphi 0, %s177
    %s181 = sphi 0, %s180
    %s197 = sphi 0, %s181
    %s205 = sphi 0, %s207
    %s208 = sphi 0, %s205
    %s209 = sphi 0, %s208
    %s225 = sphi 0, %s209
  $region4: #{augskip_bottleneck_forward.5} parent=0 // loop_header_branch
    %15 = sbr.rel (%p13) target = $region8
  $region5: #{augskip_bottleneck_forward.5} parent=0 // loop_body
    %s17 = ssub.s32 %s12, 1
    %s18 = ssub.s32 %s12, 2
    %s28 = sadd.s32 1, %s21
    %p29 = scmp.ge.s32.totalorder %s28, 1
    %s30 = scalar_select %p29, 0, %s28
    %s31 = sadd.s32 1, %s20
    %s32 = scalar_select %p29, %s31, %s20
    %p33 = scmp.ge.s32.totalorder %s32, 1
    %s34 = scalar_select %p33, 0, %s32
    %s35 = sadd.s32 1, %s19
    %s36 = scalar_select %p33, %s35, %s19
    %p37 = scmp.ge.s32.totalorder %s36, 2
    %s38 = scalar_select %p37, 0, %s36
    %s39 = ssub.s32 %s19, %s38
    %s40 = ssub.s32 %s21, %s30
    %s41 = sor.u32 %s39, %s40
    %p42 = scmp.eq.s32.totalorder %s41, 0
    %s44 = sadd.s32 %s43, 1
    %s45 = scalar_select %p42, %s43, %s44
    %p48 = pneg %p42
    %p49 = scmp.eq.s32.totalorder %s12, 1
    %p50 = por %p48, %p49
    %p51 = scmp.ne.s32.totalorder %s43, %s46
    %p52 = scmp.eq.s32.totalorder %s12, 0
    %p53 = por %p51, %p52
    %p54 = scmp.ne.s32.totalorder %s43, %s46
    %p55 = scmp.eq.s32.totalorder %s17, 1
    %p56 = por %p54, %p55
    %p57 = scmp.ne.s32.totalorder %s46, %s47
    %p58 = scmp.eq.s32.totalorder %s17, 0
    %p59 = por %p57, %p58
    %p60 = scmp.ne.s32.totalorder %s46, %s47
    %p61 = scmp.eq.s32.totalorder %s18, 1
    %p62 = por %p60, %p61
    %p64 = scmp.ne.s32.totalorder %s47, %s63
    %p65 = scmp.eq.s32.totalorder %s18, 0
    %p66 = por %p64, %p65
    %s67 = ssub.s32 %s21, %s30
    %s68 = ssub.s32 %s20, %s34
    %s69 = sor.u32 %s67, %s68
    %p70 = scmp.eq.s32.totalorder %s69, 0
    %s72 = sadd.s32 %s71, 1
    %s73 = scalar_select %p70, %s71, %s72
    %p76 = pneg %p70
    %p77 = scmp.eq.s32.totalorder %s12, 1
    %p78 = por %p76, %p77
    %p79 = scmp.ne.s32.totalorder %s71, %s74
    %p80 = scmp.eq.s32.totalorder %s12, 0
    %p81 = por %p79, %p80
    %p82 = scmp.ne.s32.totalorder %s71, %s74
    %p83 = scmp.eq.s32.totalorder %s17, 1
    %p84 = por %p82, %p83
    %p85 = scmp.ne.s32.totalorder %s74, %s75
    %p86 = scmp.eq.s32.totalorder %s17, 0
    %p87 = por %p85, %p86
    %p88 = scmp.ne.s32.totalorder %s74, %s75
    %p89 = scmp.eq.s32.totalorder %s18, 1
    %p90 = por %p88, %p89
    %p92 = scmp.ne.s32.totalorder %s75, %s91
    %p93 = scmp.eq.s32.totalorder %s18, 0
    %p94 = por %p92, %p93
    %s95 = ssub.s32 %s21, %s30
    %p96 = scmp.eq.s32.totalorder %s95, 0
    %s98 = sadd.s32 %s97, 1
    %s99 = scalar_select %p96, %s97, %s98
    %p102 = pneg %p96
    %p103 = scmp.eq.s32.totalorder %s12, 1
    %p104 = por %p102, %p103
    %p105 = scmp.ne.s32.totalorder %s97, %s100
    %p106 = scmp.eq.s32.totalorder %s12, 0
    %p107 = por %p105, %p106
    %p108 = scmp.ne.s32.totalorder %s97, %s100
    %p109 = scmp.eq.s32.totalorder %s17, 1
    %p110 = por %p108, %p109
    %p111 = scmp.ne.s32.totalorder %s100, %s101
    %p112 = scmp.eq.s32.totalorder %s17, 0
    %p113 = por %p111, %p112
    %p114 = scmp.ne.s32.totalorder %s100, %s101
    %p115 = scmp.eq.s32.totalorder %s18, 1
    %p116 = por %p114, %p115
    %p118 = scmp.ne.s32.totalorder %s101, %s117
    %p119 = scmp.eq.s32.totalorder %s18, 0
    %p120 = por %p118, %p119
    %s121 = ssub.s32 %s21, %s30
    %p122 = scmp.eq.s32.totalorder %s121, 0
    %s124 = sadd.s32 %s123, 1
    %s125 = scalar_select %p122, %s123, %s124
    %p128 = pneg %p122
    %p129 = scmp.eq.s32.totalorder %s12, 1
    %p130 = por %p128, %p129
    %p131 = scmp.ne.s32.totalorder %s123, %s126
    %p132 = scmp.eq.s32.totalorder %s12, 0
    %p133 = por %p131, %p132
    %p134 = scmp.ne.s32.totalorder %s123, %s126
    %p135 = scmp.eq.s32.totalorder %s17, 1
    %p136 = por %p134, %p135
    %p137 = scmp.ne.s32.totalorder %s126, %s127
    %p138 = scmp.eq.s32.totalorder %s17, 0
    %p139 = por %p137, %p138
    %p140 = scmp.ne.s32.totalorder %s126, %s127
    %p141 = scmp.eq.s32.totalorder %s18, 1
    %p142 = por %p140, %p141
    %p144 = scmp.ne.s32.totalorder %s127, %s143
    %p145 = scmp.eq.s32.totalorder %s18, 0
    %p146 = por %p144, %p145
    %s147 = ssub.s32 %s20, %s34
    %p148 = scmp.eq.s32.totalorder %s147, 0
    %s150 = sadd.s32 %s149, 1
    %s151 = scalar_select %p148, %s149, %s150
    %p154 = pneg %p148
    %p155 = scmp.eq.s32.totalorder %s12, 1
    %p156 = por %p154, %p155
    %p157 = scmp.ne.s32.totalorder %s149, %s152
    %p158 = scmp.eq.s32.totalorder %s12, 0
    %p159 = por %p157, %p158
    %p160 = scmp.ne.s32.totalorder %s149, %s152
    %p161 = scmp.eq.s32.totalorder %s17, 1
    %p162 = por %p160, %p161
    %p163 = scmp.ne.s32.totalorder %s152, %s153
    %p164 = scmp.eq.s32.totalorder %s17, 0
    %p165 = por %p163, %p164
    %p166 = scmp.ne.s32.totalorder %s152, %s153
    %p167 = scmp.eq.s32.totalorder %s18, 1
    %p168 = por %p166, %p167
    %p170 = scmp.ne.s32.totalorder %s153, %s169
    %p171 = scmp.eq.s32.totalorder %s18, 0
    %p172 = por %p170, %p171
    %s173 = ssub.s32 %s19, %s38
    %s174 = ssub.s32 %s20, %s34
    %s175 = sor.u32 %s173, %s174
    %p176 = scmp.eq.s32.totalorder %s175, 0
    %s178 = sadd.s32 %s177, 1
    %s179 = scalar_select %p176, %s177, %s178
    %p182 = pneg %p176
    %p183 = scmp.eq.s32.totalorder %s12, 1
    %p184 = por %p182, %p183
    %p185 = scmp.ne.s32.totalorder %s177, %s180
    %p186 = scmp.eq.s32.totalorder %s12, 0
    %p187 = por %p185, %p186
    %p188 = scmp.ne.s32.totalorder %s177, %s180
    %p189 = scmp.eq.s32.totalorder %s17, 1
    %p190 = por %p188, %p189
    %p191 = scmp.ne.s32.totalorder %s180, %s181
    %p192 = scmp.eq.s32.totalorder %s17, 0
    %p193 = por %p191, %p192
    %p194 = scmp.ne.s32.totalorder %s180, %s181
    %p195 = scmp.eq.s32.totalorder %s18, 1
    %p196 = por %p194, %p195
    %p198 = scmp.ne.s32.totalorder %s181, %s197
    %p199 = scmp.eq.s32.totalorder %s18, 0
    %p200 = por %p198, %p199
    %s201 = ssub.s32 %s19, %s38
    %s202 = ssub.s32 %s20, %s34
    %s203 = sor.u32 %s201, %s202
    %p204 = scmp.eq.s32.totalorder %s203, 0
    %s206 = sadd.s32 %s205, 1
    %s207 = scalar_select %p204, %s205, %s206
    %p210 = pneg %p204
    %p211 = scmp.eq.s32.totalorder %s12, 1
    %p212 = por %p210, %p211
    %p213 = scmp.ne.s32.totalorder %s205, %s208
    %p214 = scmp.eq.s32.totalorder %s12, 0
    %p215 = por %p213, %p214
    %p216 = scmp.ne.s32.totalorder %s205, %s208
    %p217 = scmp.eq.s32.totalorder %s17, 1
    %p218 = por %p216, %p217
    %p219 = scmp.ne.s32.totalorder %s208, %s209
    %p220 = scmp.eq.s32.totalorder %s17, 0
    %p221 = por %p219, %p220
    %p222 = scmp.ne.s32.totalorder %s208, %s209
    %p223 = scmp.eq.s32.totalorder %s18, 1
    %p224 = por %p222, %p223
    %p226 = scmp.ne.s32.totalorder %s209, %s225
    %p227 = scmp.eq.s32.totalorder %s18, 0
    %p228 = por %p226, %p227
    %p229 = scmp.le.s32.totalorder 1, %s12
    %p230 = scmp.lt.s32.totalorder %s12, 3
    %p231 = pnand %p229, %p230
    %p232 = pneg %p231
    // Predicated region
    $region9: #{augskip_bottleneck_forward.5} parent=5 // pred_check
      _
    $region10: #{augskip_bottleneck_forward.5} parent=5 // pred_check_branch
      %234 = sbr.rel (%p231) target = $region12
    $region11: #{augskip_bottleneck_forward.5} parent=5 // pred_region
      %s235 = ssub.s32 %s12, 1
      // Predicated region
      $region13: #{augskip_bottleneck_forward.5} parent=11 // pred_check
        %p236 = pneg %p87
      $region14: #{augskip_bottleneck_forward.5} parent=11 // pred_check_branch
        %238 = sbr.rel (%p236) target = $region16
      $region15: #{augskip_bottleneck_forward.5} parent=11 // pred_region
        %s239 = smul.u32 16, %s24
        %p240 = scmp.lt.s32.totalorder %s239, 15
        %s241 = scalar_select %p240, %s239, 15
        %p242 = scmp.lt.s32.totalorder %s23, 0
        %s243 = scalar_select %p242, %s23, 0
        %s244 = sadd.s32 %s243, %s241
        %s245 = smul.addr %s244, 4
        %s246 = scalar_lea.vmem %s1, %s245
        %s247 = smul.u32 16, %s24
      $region16: #{augskip_bottleneck_forward.5} parent=11 // pred_fallthru
        _
      // Predicated region
      $region17: #{augskip_bottleneck_forward.5} parent=11 // pred_check
        %p248 = pneg %p113
      $region18: #{augskip_bottleneck_forward.5} parent=11 // pred_check_branch
        %250 = sbr.rel (%p248) target = $region20
      $region19: #{augskip_bottleneck_forward.5} parent=11 // pred_region
        %p251 = scmp.lt.s32.totalorder %s24, 0
        %s252 = scalar_select %p251, %s24, 0
        %s253 = scalar_lea.vmem %s2, %s252
      $region20: #{augskip_bottleneck_forward.5} parent=11 // pred_fallthru
        _
      // Predicated region
      $region21: #{augskip_bottleneck_forward.5} parent=11 // pred_check
        %p254 = pneg %p139
      $region22: #{augskip_bottleneck_forward.5} parent=11 // pred_check_branch
        %256 = sbr.rel (%p254) target = $region24
      $region23: #{augskip_bottleneck_forward.5} parent=11 // pred_region
        %p257 = scmp.lt.s32.totalorder %s24, 0
        %s258 = scalar_select %p257, %s24, 0
        %s259 = scalar_lea.vmem %s3, %s258
      $region24: #{augskip_bottleneck_forward.5} parent=11 // pred_fallthru
        _
      // Predicated region
      $region25: #{augskip_bottleneck_forward.5} parent=11 // pred_check
        %p260 = pneg %p165
      $region26: #{augskip_bottleneck_forward.5} parent=11 // pred_check_branch
        %262 = sbr.rel (%p260) target = $region28
      $region27: #{augskip_bottleneck_forward.5} parent=11 // pred_region
        %p263 = scmp.lt.s32.totalorder %s23, 0
        %s264 = scalar_select %p263, %s23, 0
        %s265 = scalar_lea.vmem %s4, %s264
      $region28: #{augskip_bottleneck_forward.5} parent=11 // pred_fallthru
        _
    $region12: #{augskip_bottleneck_forward.5} parent=5 // pred_fallthru
      _
    %p266 = scmp.lt.s32.totalorder %s12, 2
    // Predicated region
    $region29: #{augskip_bottleneck_forward.5} parent=5 // pred_check
      %p267 = pneg %p266
    $region30: #{augskip_bottleneck_forward.5} parent=5 // pred_check_branch
      %269 = sbr.rel (%p267) target = $region32
    $region31: #{augskip_bottleneck_forward.5} parent=5 // pred_region
      // Predicated region
      $region33: #{augskip_bottleneck_forward.5} parent=31 // pred_check
        %p270 = pneg %p53
      $region34: #{augskip_bottleneck_forward.5} parent=31 // pred_check_branch
        %272 = sbr.rel (%p270) target = $region36
      $region35: #{augskip_bottleneck_forward.5} parent=31 // pred_region
        %s273 = smul.u32 32, %s19
        %p274 = scmp.lt.s32.totalorder %s273, 63
        %s275 = scalar_select %p274, %s273, 63
        %p276 = scmp.lt.s32.totalorder %s21, 0
        %s277 = scalar_select %p276, %s21, 0
        %s278 = sadd.s32 %s277, %s275
        %s279 = smul.addr %s278, 8
        %s280 = scalar_lea.vmem %s0, %s279
        %s281 = smul.u32 32, %s19
      $region36: #{augskip_bottleneck_forward.5} parent=31 // pred_fallthru
        _
      // Predicated region
      $region37: #{augskip_bottleneck_forward.5} parent=31 // pred_check
        %p282 = pneg %p187
      $region38: #{augskip_bottleneck_forward.5} parent=31 // pred_check_branch
        %284 = sbr.rel (%p282) target = $region40
      $region39: #{augskip_bottleneck_forward.5} parent=31 // pred_region
        %s285 = smul.u32 32, %s19
        %p286 = scmp.lt.s32.totalorder %s285, 63
        %s287 = scalar_select %p286, %s285, 63
        %p288 = scmp.lt.s32.totalorder %s20, 0
        %s289 = scalar_select %p288, %s20, 0
        %s290 = sadd.s32 %s289, %s287
        %s291 = smul.addr %s290, 8
        %s292 = scalar_lea.vmem %s5, %s291
        %s293 = smul.u32 32, %s19
      $region40: #{augskip_bottleneck_forward.5} parent=31 // pred_fallthru
        _
    $region32: #{augskip_bottleneck_forward.5} parent=5 // pred_fallthru
      _
    %p294 = scmp.le.s32.totalorder 1, %s12
    %p295 = scmp.lt.s32.totalorder %s12, 3
    %p296 = pnand %p294, %p295
    %p297 = pneg %p296
    // Predicated region
    $region41: #{augskip_bottleneck_forward.5} parent=5 // pred_check
      _
    $region42: #{augskip_bottleneck_forward.5} parent=5 // pred_check_branch
      %299 = sbr.rel (%p296) target = $region44
    $region43: #{augskip_bottleneck_forward.5} parent=5 // pred_region
      %s300 = ssub.s32 %s12, 1
      %s301 = smul.u32 32, %s22
      %p302 = scmp.lt.s32.totalorder %s301, 63
      %s303 = scalar_select %p302, %s301, 63
      %p304 = scmp.lt.s32.totalorder %s24, 0
      %s305 = scalar_select %p304, %s24, 0
      %s306 = sadd.s32 %s305, %s303
      %s307 = smul.addr %s306, 8
      %s308 = scalar_lea.vmem %s0, %s307
      %p309 = pneg %p59
      %p310 = pneg %p56
      %s311 = smul.u32 16, %s24
      %p312 = scmp.lt.s32.totalorder %s311, 15
      %s313 = scalar_select %p312, %s311, 15
      %p314 = scmp.lt.s32.totalorder %s23, 0
      %s315 = scalar_select %p314, %s23, 0
      %s316 = sadd.s32 %s315, %s313
      %s317 = smul.addr %s316, 4
      %s318 = scalar_lea.vmem %s1, %s317
      %p319 = pneg %p87
      %p320 = pneg %p84
      %p321 = scmp.lt.s32.totalorder %s24, 0
      %s322 = scalar_select %p321, %s24, 0
      %s323 = scalar_lea.vmem %s2, %s322
      %p324 = pneg %p113
      %p325 = pneg %p110
      %p326 = scmp.lt.s32.totalorder %s24, 0
      %s327 = scalar_select %p326, %s24, 0
      %s328 = scalar_lea.vmem %s3, %s327
      %p329 = pneg %p139
      %p330 = pneg %p136
      %p331 = scmp.lt.s32.totalorder %s23, 0
      %s332 = scalar_select %p331, %s23, 0
      %s333 = scalar_lea.vmem %s4, %s332
      %p334 = pneg %p165
      %p335 = pneg %p162
      %s336 = smul.u32 32, %s22
      %p337 = scmp.lt.s32.totalorder %s336, 63
      %s338 = scalar_select %p337, %s336, 63
      %p339 = scmp.lt.s32.totalorder %s23, 0
      %s340 = scalar_select %p339, %s23, 0
      %s341 = sadd.s32 %s340, %s338
      %s342 = smul.addr %s341, 8
      %s343 = scalar_lea.vmem %s5, %s342
      %p344 = pneg %p193
      %p345 = pneg %p190
      %p346 = pneg %p221
      %p347 = pneg %p218
      %s348 = smul.u32 32, %s22
      %p349 = scmp.lt.s32.totalorder %s348, 63
      %s350 = scalar_select %p349, %s348, 63
      %p351 = scmp.lt.s32.totalorder %s23, 0
      %s352 = scalar_select %p351, %s23, 0
      %s353 = sadd.s32 %s352, %s350
      %s354 = smul.addr %s353, 8
      %s355 = scalar_lea.vmem %s6, %s354
      %s356 = smul.u32 32, %s22
      %p357 = scmp.lt.s32.totalorder %s356, 63
      %s358 = scalar_select %p357, %s356, 63
      %p359 = scmp.lt.s32.totalorder %s24, 0
      %s360 = scalar_select %p359, %s24, 0
      %s361 = sadd.s32 %s360, %s358
      %s362 = smul.addr %s361, 8
      %s363 = scalar_lea.vmem %s0, %s362
      %s364 = smul.u32 32, %s22
      %s365 = smul.u32 16, %s24
      %p366 = scmp.lt.s32.totalorder %s365, 15
      %s367 = scalar_select %p366, %s365, 15
      %p368 = scmp.lt.s32.totalorder %s23, 0
      %s369 = scalar_select %p368, %s23, 0
      %s370 = sadd.s32 %s369, %s367
      %s371 = smul.addr %s370, 4
      %s372 = scalar_lea.vmem %s1, %s371
      %s373 = smul.u32 16, %s24
      %p374 = scmp.lt.s32.totalorder %s24, 0
      %s375 = scalar_select %p374, %s24, 0
      %s376 = scalar_lea.vmem %s2, %s375
      %p377 = scmp.lt.s32.totalorder %s24, 0
      %s378 = scalar_select %p377, %s24, 0
      %s379 = scalar_lea.vmem %s3, %s378
      %p380 = scmp.lt.s32.totalorder %s23, 0
      %s381 = scalar_select %p380, %s23, 0
      %s382 = scalar_lea.vmem %s4, %s381
      %s383 = smul.u32 32, %s22
      %p384 = scmp.lt.s32.totalorder %s383, 63
      %s385 = scalar_select %p384, %s383, 63
      %p386 = scmp.lt.s32.totalorder %s23, 0
      %s387 = scalar_select %p386, %s23, 0
      %s388 = sadd.s32 %s387, %s385
      %s389 = smul.addr %s388, 8
      %s390 = scalar_lea.vmem %s5, %s389
      %s391 = smul.u32 32, %s22
      %s392 = smul.u32 32, %s22
      %p393 = scmp.lt.s32.totalorder %s392, 63
      %s394 = scalar_select %p393, %s392, 63
      %p395 = scmp.lt.s32.totalorder %s23, 0
      %s396 = scalar_select %p395, %s23, 0
      %s397 = sadd.s32 %s396, %s394
      %s398 = smul.addr %s397, 8
      %s399 = scalar_lea.vmem %s6, %s398
      %s400 = smul.u32 32, %s22
      %p402 = scmp.eq.s32.totalorder %s24, 0
      // Predicated region
      $region45: #{augskip_bottleneck_forward.5} parent=43 // pred_check
        %p403 = pneg %p402
      $region46: #{augskip_bottleneck_forward.5} parent=43 // pred_check_branch
        %405 = sbr.rel (%p403) target = $region48
      $region47: #{augskip_bottleneck_forward.5} parent=43 // pred_region
        %406 = vst [vmem:[#allocation2] sm:$0xff] 0.0
        %407 = vst [vmem:[#allocation2 + $0x8] sm:$0xff] 0.0
        %408 = vst [vmem:[#allocation2 + $0x10] sm:$0xff] 0.0
        %409 = vst [vmem:[#allocation2 + $0x18] sm:$0xff] 0.0
        %410 = vst [vmem:[#allocation2 + $0x20] sm:$0xff] 0.0
        %411 = vst [vmem:[#allocation2 + $0x28] sm:$0xff] 0.0
        %412 = vst [vmem:[#allocation2 + $0x30] sm:$0xff] 0.0
        %413 = vst [vmem:[#allocation2 + $0x38] sm:$0xff] 0.0
        %414 = vst [vmem:[#allocation2 + $0x40] sm:$0xff] 0.0
        %415 = vst [vmem:[#allocation2 + $0x48] sm:$0xff] 0.0
        %416 = vst [vmem:[#allocation2 + $0x50] sm:$0xff] 0.0
        %417 = vst [vmem:[#allocation2 + $0x58] sm:$0xff] 0.0
        %418 = vst [vmem:[#allocation2 + $0x60] sm:$0xff] 0.0
        %419 = vst [vmem:[#allocation2 + $0x68] sm:$0xff] 0.0
        %420 = vst [vmem:[#allocation2 + $0x70] sm:$0xff] 0.0
        %421 = vst [vmem:[#allocation2 + $0x78] sm:$0xff] 0.0
        %422 = vst [vmem:[#allocation2 + $0x80] sm:$0xff] 0.0
        %423 = vst [vmem:[#allocation2 + $0x88] sm:$0xff] 0.0
        %424 = vst [vmem:[#allocation2 + $0x90] sm:$0xff] 0.0
        %425 = vst [vmem:[#allocation2 + $0x98] sm:$0xff] 0.0
        %426 = vst [vmem:[#allocation2 + $0xa0] sm:$0xff] 0.0
        %427 = vst [vmem:[#allocation2 + $0xa8] sm:$0xff] 0.0
        %428 = vst [vmem:[#allocation2 + $0xb0] sm:$0xff] 0.0
        %429 = vst [vmem:[#allocation2 + $0xb8] sm:$0xff] 0.0
        %430 = vst [vmem:[#allocation2 + $0xc0] sm:$0xff] 0.0
        %431 = vst [vmem:[#allocation2 + $0xc8] sm:$0xff] 0.0
        %432 = vst [vmem:[#allocation2 + $0xd0] sm:$0xff] 0.0
        %433 = vst [vmem:[#allocation2 + $0xd8] sm:$0xff] 0.0
        %434 = vst [vmem:[#allocation2 + $0xe0] sm:$0xff] 0.0
        %435 = vst [vmem:[#allocation2 + $0xe8] sm:$0xff] 0.0
        %436 = vst [vmem:[#allocation2 + $0xf0] sm:$0xff] 0.0
        %437 = vst [vmem:[#allocation2 + $0xf8] sm:$0xff] 0.0
      $region48: #{augskip_bottleneck_forward.5} parent=43 // pred_fallthru
        _
      %v438 = vld [vmem:[%s363] sm:$0xff]
      %v439 = vld [vmem:[%s363 + $0x8] sm:$0xff]
      %v440 = vld [vmem:[%s363 + $0x10] sm:$0xff]
      %v441 = vld [vmem:[%s363 + $0x18] sm:$0xff]
      %v442 = vld [vmem:[%s363 + $0x20] sm:$0xff]
      %v443 = vld [vmem:[%s363 + $0x28] sm:$0xff]
      %v444 = vld [vmem:[%s363 + $0x30] sm:$0xff]
      %v445 = vld [vmem:[%s363 + $0x38] sm:$0xff]
      %v446 = vld [vmem:[%s363 + $0x40] sm:$0xff]
      %v447 = vld [vmem:[%s363 + $0x48] sm:$0xff]
      %v448 = vld [vmem:[%s363 + $0x50] sm:$0xff]
      %v449 = vld [vmem:[%s363 + $0x58] sm:$0xff]
      %v450 = vld [vmem:[%s363 + $0x60] sm:$0xff]
      %v451 = vld [vmem:[%s363 + $0x68] sm:$0xff]
      %v452 = vld [vmem:[%s363 + $0x70] sm:$0xff]
      %v453 = vld [vmem:[%s363 + $0x78] sm:$0xff]
      %v454 = vld [vmem:[%s363 + $0x80] sm:$0xff]
      %v455 = vld [vmem:[%s363 + $0x88] sm:$0xff]
      %v456 = vld [vmem:[%s363 + $0x90] sm:$0xff]
      %v457 = vld [vmem:[%s363 + $0x98] sm:$0xff]
      %v458 = vld [vmem:[%s363 + $0xa0] sm:$0xff]
      %v459 = vld [vmem:[%s363 + $0xa8] sm:$0xff]
      %v460 = vld [vmem:[%s363 + $0xb0] sm:$0xff]
      %v461 = vld [vmem:[%s363 + $0xb8] sm:$0xff]
      %v462 = vld [vmem:[%s363 + $0xc0] sm:$0xff]
      %v463 = vld [vmem:[%s363 + $0xc8] sm:$0xff]
      %v464 = vld [vmem:[%s363 + $0xd0] sm:$0xff]
      %v465 = vld [vmem:[%s363 + $0xd8] sm:$0xff]
      %v466 = vld [vmem:[%s363 + $0xe0] sm:$0xff]
      %v467 = vld [vmem:[%s363 + $0xe8] sm:$0xff]
      %v468 = vld [vmem:[%s363 + $0xf0] sm:$0xff]
      %v469 = vld [vmem:[%s363 + $0xf8] sm:$0xff]
      %v470 = vmax.f32 %v438, 0.0
      %v471 = vmax.f32 %v439, 0.0
      %v472 = vmax.f32 %v440, 0.0
      %v473 = vmax.f32 %v441, 0.0
      %v474 = vmax.f32 %v442, 0.0
      %v475 = vmax.f32 %v443, 0.0
      %v476 = vmax.f32 %v444, 0.0
      %v477 = vmax.f32 %v445, 0.0
      %v478 = vmax.f32 %v446, 0.0
      %v479 = vmax.f32 %v447, 0.0
      %v480 = vmax.f32 %v448, 0.0
      %v481 = vmax.f32 %v449, 0.0
      %v482 = vmax.f32 %v450, 0.0
      %v483 = vmax.f32 %v451, 0.0
      %v484 = vmax.f32 %v452, 0.0
      %v485 = vmax.f32 %v453, 0.0
      %v486 = vmax.f32 %v454, 0.0
      %v487 = vmax.f32 %v455, 0.0
      %v488 = vmax.f32 %v456, 0.0
      %v489 = vmax.f32 %v457, 0.0
      %v490 = vmax.f32 %v458, 0.0
      %v491 = vmax.f32 %v459, 0.0
      %v492 = vmax.f32 %v460, 0.0
      %v493 = vmax.f32 %v461, 0.0
      %v494 = vmax.f32 %v462, 0.0
      %v495 = vmax.f32 %v463, 0.0
      %v496 = vmax.f32 %v464, 0.0
      %v497 = vmax.f32 %v465, 0.0
      %v498 = vmax.f32 %v466, 0.0
      %v499 = vmax.f32 %v467, 0.0
      %v500 = vmax.f32 %v468, 0.0
      %v501 = vmax.f32 %v469, 0.0
      %v502 = vld [vmem:[%s376] sm:$0x1]
      %v504 = vlaneseq
      %v505 = vshrl.u32 %v504, 7
      %v506 = vsub.s32 0, %v505
      %v507 = vrot.slane %v502, %v506
      %v509 = vmul.f32 %v470, %v507
      %v510 = vmul.f32 %v471, %v507
      %v511 = vmul.f32 %v472, %v507
      %v512 = vmul.f32 %v473, %v507
      %v513 = vmul.f32 %v474, %v507
      %v514 = vmul.f32 %v475, %v507
      %v515 = vmul.f32 %v476, %v507
      %v516 = vmul.f32 %v477, %v507
      %v517 = vmul.f32 %v478, %v507
      %v518 = vmul.f32 %v479, %v507
      %v519 = vmul.f32 %v480, %v507
      %v520 = vmul.f32 %v481, %v507
      %v521 = vmul.f32 %v482, %v507
      %v522 = vmul.f32 %v483, %v507
      %v523 = vmul.f32 %v484, %v507
      %v524 = vmul.f32 %v485, %v507
      %v525 = vmul.f32 %v486, %v507
      %v526 = vmul.f32 %v487, %v507
      %v527 = vmul.f32 %v488, %v507
      %v528 = vmul.f32 %v489, %v507
      %v529 = vmul.f32 %v490, %v507
      %v530 = vmul.f32 %v491, %v507
      %v531 = vmul.f32 %v492, %v507
      %v532 = vmul.f32 %v493, %v507
      %v533 = vmul.f32 %v494, %v507
      %v534 = vmul.f32 %v495, %v507
      %v535 = vmul.f32 %v496, %v507
      %v536 = vmul.f32 %v497, %v507
      %v537 = vmul.f32 %v498, %v507
      %v538 = vmul.f32 %v499, %v507
      %v539 = vmul.f32 %v500, %v507
      %v540 = vmul.f32 %v501, %v507
      %v541 = vld [vmem:[%s379] sm:$0x1]
      %v543 = vlaneseq
      %v544 = vshrl.u32 %v543, 7
      %v545 = vsub.s32 0, %v544
      %v546 = vrot.slane %v541, %v545
      %v548 = vadd.f32 %v509, %v546
      %v549 = vadd.f32 %v510, %v546
      %v550 = vadd.f32 %v511, %v546
      %v551 = vadd.f32 %v512, %v546
      %v552 = vadd.f32 %v513, %v546
      %v553 = vadd.f32 %v514, %v546
      %v554 = vadd.f32 %v515, %v546
      %v555 = vadd.f32 %v516, %v546
      %v556 = vadd.f32 %v517, %v546
      %v557 = vadd.f32 %v518, %v546
      %v558 = vadd.f32 %v519, %v546
      %v559 = vadd.f32 %v520, %v546
      %v560 = vadd.f32 %v521, %v546
      %v561 = vadd.f32 %v522, %v546
      %v562 = vadd.f32 %v523, %v546
      %v563 = vadd.f32 %v524, %v546
      %v564 = vadd.f32 %v525, %v546
      %v565 = vadd.f32 %v526, %v546
      %v566 = vadd.f32 %v527, %v546
      %v567 = vadd.f32 %v528, %v546
      %v568 = vadd.f32 %v529, %v546
      %v569 = vadd.f32 %v530, %v546
      %v570 = vadd.f32 %v531, %v546
      %v571 = vadd.f32 %v532, %v546
      %v572 = vadd.f32 %v533, %v546
      %v573 = vadd.f32 %v534, %v546
      %v574 = vadd.f32 %v535, %v546
      %v575 = vadd.f32 %v536, %v546
      %v576 = vadd.f32 %v537, %v546
      %v577 = vadd.f32 %v538, %v546
      %v578 = vadd.f32 %v539, %v546
      %v579 = vadd.f32 %v540, %v546
      %v580 = vld [vmem:[#allocation2] sm:$0xff]
      %v581 = vld [vmem:[#allocation2 + $0x8] sm:$0xff]
      %v582 = vld [vmem:[#allocation2 + $0x10] sm:$0xff]
      %v583 = vld [vmem:[#allocation2 + $0x18] sm:$0xff]
      %v584 = vld [vmem:[#allocation2 + $0x20] sm:$0xff]
      %v585 = vld [vmem:[#allocation2 + $0x28] sm:$0xff]
      %v586 = vld [vmem:[#allocation2 + $0x30] sm:$0xff]
      %v587 = vld [vmem:[#allocation2 + $0x38] sm:$0xff]
      %v588 = vld [vmem:[#allocation2 + $0x40] sm:$0xff]
      %v589 = vld [vmem:[#allocation2 + $0x48] sm:$0xff]
      %v590 = vld [vmem:[#allocation2 + $0x50] sm:$0xff]
      %v591 = vld [vmem:[#allocation2 + $0x58] sm:$0xff]
      %v592 = vld [vmem:[#allocation2 + $0x60] sm:$0xff]
      %v593 = vld [vmem:[#allocation2 + $0x68] sm:$0xff]
      %v594 = vld [vmem:[#allocation2 + $0x70] sm:$0xff]
      %v595 = vld [vmem:[#allocation2 + $0x78] sm:$0xff]
      %v596 = vld [vmem:[#allocation2 + $0x80] sm:$0xff]
      %v597 = vld [vmem:[#allocation2 + $0x88] sm:$0xff]
      %v598 = vld [vmem:[#allocation2 + $0x90] sm:$0xff]
      %v599 = vld [vmem:[#allocation2 + $0x98] sm:$0xff]
      %v600 = vld [vmem:[#allocation2 + $0xa0] sm:$0xff]
      %v601 = vld [vmem:[#allocation2 + $0xa8] sm:$0xff]
      %v602 = vld [vmem:[#allocation2 + $0xb0] sm:$0xff]
      %v603 = vld [vmem:[#allocation2 + $0xb8] sm:$0xff]
      %v604 = vld [vmem:[#allocation2 + $0xc0] sm:$0xff]
      %v605 = vld [vmem:[#allocation2 + $0xc8] sm:$0xff]
      %v606 = vld [vmem:[#allocation2 + $0xd0] sm:$0xff]
      %v607 = vld [vmem:[#allocation2 + $0xd8] sm:$0xff]
      %v608 = vld [vmem:[#allocation2 + $0xe0] sm:$0xff]
      %v609 = vld [vmem:[#allocation2 + $0xe8] sm:$0xff]
      %v610 = vld [vmem:[#allocation2 + $0xf0] sm:$0xff]
      %v611 = vld [vmem:[#allocation2 + $0xf8] sm:$0xff]
      %v612 = vpack.c.bf16 %v549, %v548
      %v613 = vpack.c.bf16 %v551, %v550
      %v614 = vpack.c.bf16 %v553, %v552
      %v615 = vpack.c.bf16 %v555, %v554
      %v616 = vpack.c.bf16 %v557, %v556
      %v617 = vpack.c.bf16 %v559, %v558
      %v618 = vpack.c.bf16 %v561, %v560
      %v619 = vpack.c.bf16 %v563, %v562
      %v620 = vpack.c.bf16 %v565, %v564
      %v621 = vpack.c.bf16 %v567, %v566
      %v622 = vpack.c.bf16 %v569, %v568
      %v623 = vpack.c.bf16 %v571, %v570
      %v624 = vpack.c.bf16 %v573, %v572
      %v625 = vpack.c.bf16 %v575, %v574
      %v626 = vpack.c.bf16 %v577, %v576
      %v627 = vpack.c.bf16 %v579, %v578
      %v628 = vld [vmem:[%s372] sm:$0xf]
      %v629 = vld [vmem:[%s372 + $0x4] sm:$0xf]
      %v630 = vld [vmem:[%s372 + $0x8] sm:$0xf]
      %v631 = vld [vmem:[%s372 + $0xc] sm:$0xf]
      %v632 = vld [vmem:[%s372 + $0x10] sm:$0xf]
      %v633 = vld [vmem:[%s372 + $0x14] sm:$0xf]
      %v634 = vld [vmem:[%s372 + $0x18] sm:$0xf]
      %v635 = vld [vmem:[%s372 + $0x1c] sm:$0xf]
      %v636 = vld [vmem:[%s372 + $0x20] sm:$0xf]
      %v637 = vld [vmem:[%s372 + $0x24] sm:$0xf]
      %v638 = vld [vmem:[%s372 + $0x28] sm:$0xf]
      %v639 = vld [vmem:[%s372 + $0x2c] sm:$0xf]
      %v640 = vld [vmem:[%s372 + $0x30] sm:$0xf]
      %v641 = vld [vmem:[%s372 + $0x34] sm:$0xf]
      %v642 = vld [vmem:[%s372 + $0x38] sm:$0xf]
      %v643 = vld [vmem:[%s372 + $0x3c] sm:$0xf]
      %v660 = vunpack.c.l.b16 %v628
      %v661 = vunpack.c.l.b16 %v629
      %v662 = vunpack.c.l.b16 %v630
      %v663 = vunpack.c.l.b16 %v631
      %v664 = vunpack.c.l.b16 %v632
      %v665 = vunpack.c.l.b16 %v633
      %v666 = vunpack.c.l.b16 %v634
      %v667 = vunpack.c.l.b16 %v635
      %v668 = vunpack.c.l.b16 %v636
      %v669 = vunpack.c.l.b16 %v637
      %v670 = vunpack.c.l.b16 %v638
      %v671 = vunpack.c.l.b16 %v639
      %v672 = vunpack.c.l.b16 %v640
      %v673 = vunpack.c.l.b16 %v641
      %v674 = vunpack.c.l.b16 %v642
      %v675 = vunpack.c.l.b16 %v643
      %v676 = vpack.c.b16 %v661, %v660
      %v677 = vpack.c.b16 %v663, %v662
      %v678 = vpack.c.b16 %v665, %v664
      %v679 = vpack.c.b16 %v667, %v666
      %v680 = vpack.c.b16 %v669, %v668
      %v681 = vpack.c.b16 %v671, %v670
      %v682 = vpack.c.b16 %v673, %v672
      %v683 = vpack.c.b16 %v675, %v674
      %692 = vmatprep.subr.bf16.mxu0 0
      %693 = vmatpush1.bf16.msra.mxu0 %v676
      %694 = vmatprep.subr.bf16.mxu0 0
      %695 = vmatpush1.bf16.msra.mxu0 %v677
      %696 = vmatprep.subr.bf16.mxu0 0
      %697 = vmatpush1.bf16.msra.mxu0 %v678
      %698 = vmatprep.subr.bf16.mxu0 0
      %699 = vmatpush1.bf16.msra.mxu0 %v679
      %700 = vmatprep.subr.bf16.mxu0 0
      %701 = vmatpush1.bf16.msra.mxu0 %v680
      %702 = vmatprep.subr.bf16.mxu0 0
      %703 = vmatpush1.bf16.msra.mxu0 %v681
      %704 = vmatprep.subr.bf16.mxu0 0
      %705 = vmatpush1.bf16.msra.mxu0 %v682
      %706 = vmatprep.subr.bf16.mxu0 0
      %707 = vmatpush1.bf16.msra.mxu0 %v683
      %708 = vmatprep.subr.bf16.mxu0 0
      %709 = vmatpush1.bf16.msra.mxu0 0
      %710 = vmatprep.subr.bf16.mxu0 0
      %711 = vmatpush1.bf16.msra.mxu0 0
      %712 = vmatprep.subr.bf16.mxu0 0
      %713 = vmatpush1.bf16.msra.mxu0 0
      %714 = vmatprep.subr.bf16.mxu0 0
      %715 = vmatpush1.bf16.msra.mxu0 0
      %716 = vmatprep.subr.bf16.mxu0 0
      %717 = vmatpush1.bf16.msra.mxu0 0
      %718 = vmatprep.subr.bf16.mxu0 0
      %719 = vmatpush1.bf16.msra.mxu0 0
      %720 = vmatprep.subr.bf16.mxu0 0
      %721 = vmatpush1.bf16.msra.mxu0 0
      %722 = vmatprep.subr.bf16.mxu0 0
      %723 = vmatpush1.bf16.msra.mxu0 0
      %724 = vmatprep.mubr.bf16.mxu0 0
      %725 = vmatmul.mubr.bf16.gmra.mrb[0].mxu0 %v612
      %v726 = vpop.f32.mrb[0].mxu0
      %v727 = vadd.f32 0.0, %v726
      %v728 = vpop.f32.mrb[0].mxu0
      %v729 = vpop.f32.mrb[0].mxu0
      %v730 = vadd.f32 0.0, %v729
      %v731 = vpop.f32.mrb[0].mxu0
      %732 = vmatprep.mubr.bf16.mxu0 0
      %733 = vmatmul.mubr.bf16.gmra.mrb[0].mxu0 %v613
      %v734 = vpop.f32.mrb[0].mxu0
      %v735 = vadd.f32 0.0, %v734
      %v736 = vpop.f32.mrb[0].mxu0
      %v737 = vpop.f32.mrb[0].mxu0
      %v738 = vadd.f32 0.0, %v737
      %v739 = vpop.f32.mrb[0].mxu0
      %740 = vmatprep.mubr.bf16.mxu0 0
      %741 = vmatmul.mubr.bf16.gmra.mrb[0].mxu0 %v614
      %v742 = vpop.f32.mrb[0].mxu0
      %v743 = vadd.f32 0.0, %v742
      %v744 = vpop.f32.mrb[0].mxu0
      %v745 = vpop.f32.mrb[0].mxu0
      %v746 = vadd.f32 0.0, %v745
      %v747 = vpop.f32.mrb[0].mxu0
      %748 = vmatprep.mubr.bf16.mxu0 0
      %749 = vmatmul.mubr.bf16.gmra.mrb[0].mxu0 %v615
      %v750 = vpop.f32.mrb[0].mxu0
      %v751 = vadd.f32 0.0, %v750
      %v752 = vpop.f32.mrb[0].mxu0
      %v753 = vpop.f32.mrb[0].mxu0
      %v754 = vadd.f32 0.0, %v753
      %v755 = vpop.f32.mrb[0].mxu0
      %756 = vmatprep.mubr.bf16.mxu0 0
      %757 = vmatmul.mubr.bf16.gmra.mrb[0].mxu0 %v616
      %v758 = vpop.f32.mrb[0].mxu0
      %v759 = vadd.f32 0.0, %v758
      %v760 = vpop.f32.mrb[0].mxu0
      %v761 = vpop.f32.mrb[0].mxu0
      %v762 = vadd.f32 0.0, %v761
      %v763 = vpop.f32.mrb[0].mxu0
      %764 = vmatprep.mubr.bf16.mxu0 0
      %765 = vmatmul.mubr.bf16.gmra.mrb[0].mxu0 %v617
      %v766 = vpop.f32.mrb[0].mxu0
      %v767 = vadd.f32 0.0, %v766
      %v768 = vpop.f32.mrb[0].mxu0
      %v769 = vpop.f32.mrb[0].mxu0
      %v770 = vadd.f32 0.0, %v769
      %v771 = vpop.f32.mrb[0].mxu0
      %772 = vmatprep.mubr.bf16.mxu0 0
      %773 = vmatmul.mubr.bf16.gmra.mrb[0].mxu0 %v618
      %v774 = vpop.f32.mrb[0].mxu0
      %v775 = vadd.f32 0.0, %v774
      %v776 = vpop.f32.mrb[0].mxu0
      %v777 = vpop.f32.mrb[0].mxu0
      %v778 = vadd.f32 0.0, %v777
      %v779 = vpop.f32.mrb[0].mxu0
      %780 = vmatprep.mubr.bf16.mxu0 0
      %781 = vmatmul.mubr.bf16.gmra.mrb[0].mxu0 %v619
      %v782 = vpop.f32.mrb[0].mxu0
      %v783 = vadd.f32 0.0, %v782
      %v784 = vpop.f32.mrb[0].mxu0
      %v785 = vpop.f32.mrb[0].mxu0
      %v786 = vadd.f32 0.0, %v785
      %v787 = vpop.f32.mrb[0].mxu0
      %788 = vmatprep.mubr.bf16.mxu0 0
      %789 = vmatmul.mubr.bf16.gmra.mrb[0].mxu0 %v620
      %v790 = vpop.f32.mrb[0].mxu0
      %v791 = vadd.f32 0.0, %v790
      %v792 = vpop.f32.mrb[0].mxu0
      %v793 = vpop.f32.mrb[0].mxu0
      %v794 = vadd.f32 0.0, %v793
      %v795 = vpop.f32.mrb[0].mxu0
      %796 = vmatprep.mubr.bf16.mxu0 0
      %797 = vmatmul.mubr.bf16.gmra.mrb[0].mxu0 %v621
      %v798 = vpop.f32.mrb[0].mxu0
      %v799 = vadd.f32 0.0, %v798
      %v800 = vpop.f32.mrb[0].mxu0
      %v801 = vpop.f32.mrb[0].mxu0
      %v802 = vadd.f32 0.0, %v801
      %v803 = vpop.f32.mrb[0].mxu0
      %804 = vmatprep.mubr.bf16.mxu0 0
      %805 = vmatmul.mubr.bf16.gmra.mrb[0].mxu0 %v622
      %v806 = vpop.f32.mrb[0].mxu0
      %v807 = vadd.f32 0.0, %v806
      %v808 = vpop.f32.mrb[0].mxu0
      %v809 = vpop.f32.mrb[0].mxu0
      %v810 = vadd.f32 0.0, %v809
      %v811 = vpop.f32.mrb[0].mxu0
      %812 = vmatprep.mubr.bf16.mxu0 0
      %813 = vmatmul.mubr.bf16.gmra.mrb[0].mxu0 %v623
      %v814 = vpop.f32.mrb[0].mxu0
      %v815 = vadd.f32 0.0, %v814
      %v816 = vpop.f32.mrb[0].mxu0
      %v817 = vpop.f32.mrb[0].mxu0
      %v818 = vadd.f32 0.0, %v817
      %v819 = vpop.f32.mrb[0].mxu0
      %820 = vmatprep.mubr.bf16.mxu0 0
      %821 = vmatmul.mubr.bf16.gmra.mrb[0].mxu0 %v624
      %v822 = vpop.f32.mrb[0].mxu0
      %v823 = vadd.f32 0.0, %v822
      %v824 = vpop.f32.mrb[0].mxu0
      %v825 = vpop.f32.mrb[0].mxu0
      %v826 = vadd.f32 0.0, %v825
      %v827 = vpop.f32.mrb[0].mxu0
      %828 = vmatprep.mubr.bf16.mxu0 0
      %829 = vmatmul.mubr.bf16.gmra.mrb[0].mxu0 %v625
      %v830 = vpop.f32.mrb[0].mxu0
      %v831 = vadd.f32 0.0, %v830
      %v832 = vpop.f32.mrb[0].mxu0
      %v833 = vpop.f32.mrb[0].mxu0
      %v834 = vadd.f32 0.0, %v833
      %v835 = vpop.f32.mrb[0].mxu0
      %836 = vmatprep.mubr.bf16.mxu0 0
      %837 = vmatmul.mubr.bf16.gmra.mrb[0].mxu0 %v626
      %v838 = vpop.f32.mrb[0].mxu0
      %v839 = vadd.f32 0.0, %v838
      %v840 = vpop.f32.mrb[0].mxu0
      %v841 = vpop.f32.mrb[0].mxu0
      %v842 = vadd.f32 0.0, %v841
      %v843 = vpop.f32.mrb[0].mxu0
      %844 = vmatprep.mubr.bf16.mxu0 0
      %845 = vmatmul.mubr.bf16.gmra.mrb[0].mxu0 %v627
      %v846 = vpop.f32.mrb[0].mxu0
      %v847 = vadd.f32 0.0, %v846
      %v848 = vpop.f32.mrb[0].mxu0
      %v849 = vpop.f32.mrb[0].mxu0
      %v850 = vadd.f32 0.0, %v849
      %v851 = vpop.f32.mrb[0].mxu0
      %852 = vdwg.mxu0
      %v853 = vadd.f32 %v580, %v727
      %v854 = vadd.f32 %v581, %v730
      %v855 = vadd.f32 %v582, %v735
      %v856 = vadd.f32 %v583, %v738
      %v857 = vadd.f32 %v584, %v743
      %v858 = vadd.f32 %v585, %v746
      %v859 = vadd.f32 %v586, %v751
      %v860 = vadd.f32 %v587, %v754
      %v861 = vadd.f32 %v588, %v759
      %v862 = vadd.f32 %v589, %v762
      %v863 = vadd.f32 %v590, %v767
      %v864 = vadd.f32 %v591, %v770
      %v865 = vadd.f32 %v592, %v775
      %v866 = vadd.f32 %v593, %v778
      %v867 = vadd.f32 %v594, %v783
      %v868 = vadd.f32 %v595, %v786
      %v869 = vadd.f32 %v596, %v791
      %v870 = vadd.f32 %v597, %v794
      %v871 = vadd.f32 %v598, %v799
      %v872 = vadd.f32 %v599, %v802
      %v873 = vadd.f32 %v600, %v807
      %v874 = vadd.f32 %v601, %v810
      %v875 = vadd.f32 %v602, %v815
      %v876 = vadd.f32 %v603, %v818
      %v877 = vadd.f32 %v604, %v823
      %v878 = vadd.f32 %v605, %v826
      %v879 = vadd.f32 %v606, %v831
      %v880 = vadd.f32 %v607, %v834
      %v881 = vadd.f32 %v608, %v839
      %v882 = vadd.f32 %v609, %v842
      %v883 = vadd.f32 %v610, %v847
      %v884 = vadd.f32 %v611, %v850
      %885 = vst [vmem:[#allocation2] sm:$0xff] %v853
      %886 = vst [vmem:[#allocation2 + $0x8] sm:$0xff] %v854
      %887 = vst [vmem:[#allocation2 + $0x10] sm:$0xff] %v855
      %888 = vst [vmem:[#allocation2 + $0x18] sm:$0xff] %v856
      %889 = vst [vmem:[#allocation2 + $0x20] sm:$0xff] %v857
      %890 = vst [vmem:[#allocation2 + $0x28] sm:$0xff] %v858
      %891 = vst [vmem:[#allocation2 + $0x30] sm:$0xff] %v859
      %892 = vst [vmem:[#allocation2 + $0x38] sm:$0xff] %v860
      %893 = vst [vmem:[#allocation2 + $0x40] sm:$0xff] %v861
      %894 = vst [vmem:[#allocation2 + $0x48] sm:$0xff] %v862
      %895 = vst [vmem:[#allocation2 + $0x50] sm:$0xff] %v863
      %896 = vst [vmem:[#allocation2 + $0x58] sm:$0xff] %v864
      %897 = vst [vmem:[#allocation2 + $0x60] sm:$0xff] %v865
      %898 = vst [vmem:[#allocation2 + $0x68] sm:$0xff] %v866
      %899 = vst [vmem:[#allocation2 + $0x70] sm:$0xff] %v867
      %900 = vst [vmem:[#allocation2 + $0x78] sm:$0xff] %v868
      %901 = vst [vmem:[#allocation2 + $0x80] sm:$0xff] %v869
      %902 = vst [vmem:[#allocation2 + $0x88] sm:$0xff] %v870
      %903 = vst [vmem:[#allocation2 + $0x90] sm:$0xff] %v871
      %904 = vst [vmem:[#allocation2 + $0x98] sm:$0xff] %v872
      %905 = vst [vmem:[#allocation2 + $0xa0] sm:$0xff] %v873
      %906 = vst [vmem:[#allocation2 + $0xa8] sm:$0xff] %v874
      %907 = vst [vmem:[#allocation2 + $0xb0] sm:$0xff] %v875
      %908 = vst [vmem:[#allocation2 + $0xb8] sm:$0xff] %v876
      %909 = vst [vmem:[#allocation2 + $0xc0] sm:$0xff] %v877
      %910 = vst [vmem:[#allocation2 + $0xc8] sm:$0xff] %v878
      %911 = vst [vmem:[#allocation2 + $0xd0] sm:$0xff] %v879
      %912 = vst [vmem:[#allocation2 + $0xd8] sm:$0xff] %v880
      %913 = vst [vmem:[#allocation2 + $0xe0] sm:$0xff] %v881
      %914 = vst [vmem:[#allocation2 + $0xe8] sm:$0xff] %v882
      %915 = vst [vmem:[#allocation2 + $0xf0] sm:$0xff] %v883
      %916 = vst [vmem:[#allocation2 + $0xf8] sm:$0xff] %v884
      // Predicated region
      $region49: #{augskip_bottleneck_forward.5} parent=43 // pred_check
        %p917 = pneg %p402
      $region50: #{augskip_bottleneck_forward.5} parent=43 // pred_check_branch
        %919 = sbr.rel (%p917) target = $region52
      $region51: #{augskip_bottleneck_forward.5} parent=43 // pred_region
        %v920 = vld [vmem:[#allocation2] sm:$0xff]
        %v921 = vld [vmem:[#allocation2 + $0x8] sm:$0xff]
        %v922 = vld [vmem:[#allocation2 + $0x10] sm:$0xff]
        %v923 = vld [vmem:[#allocation2 + $0x18] sm:$0xff]
        %v924 = vld [vmem:[#allocation2 + $0x20] sm:$0xff]
        %v925 = vld [vmem:[#allocation2 + $0x28] sm:$0xff]
        %v926 = vld [vmem:[#allocation2 + $0x30] sm:$0xff]
        %v927 = vld [vmem:[#allocation2 + $0x38] sm:$0xff]
        %v928 = vld [vmem:[#allocation2 + $0x40] sm:$0xff]
        %v929 = vld [vmem:[#allocation2 + $0x48] sm:$0xff]
        %v930 = vld [vmem:[#allocation2 + $0x50] sm:$0xff]
        %v931 = vld [vmem:[#allocation2 + $0x58] sm:$0xff]
        %v932 = vld [vmem:[#allocation2 + $0x60] sm:$0xff]
        %v933 = vld [vmem:[#allocation2 + $0x68] sm:$0xff]
        %v934 = vld [vmem:[#allocation2 + $0x70] sm:$0xff]
        %v935 = vld [vmem:[#allocation2 + $0x78] sm:$0xff]
        %v936 = vld [vmem:[#allocation2 + $0x80] sm:$0xff]
        %v937 = vld [vmem:[#allocation2 + $0x88] sm:$0xff]
        %v938 = vld [vmem:[#allocation2 + $0x90] sm:$0xff]
        %v939 = vld [vmem:[#allocation2 + $0x98] sm:$0xff]
        %v940 = vld [vmem:[#allocation2 + $0xa0] sm:$0xff]
        %v941 = vld [vmem:[#allocation2 + $0xa8] sm:$0xff]
        %v942 = vld [vmem:[#allocation2 + $0xb0] sm:$0xff]
        %v943 = vld [vmem:[#allocation2 + $0xb8] sm:$0xff]
        %v944 = vld [vmem:[#allocation2 + $0xc0] sm:$0xff]
        %v945 = vld [vmem:[#allocation2 + $0xc8] sm:$0xff]
        %v946 = vld [vmem:[#allocation2 + $0xd0] sm:$0xff]
        %v947 = vld [vmem:[#allocation2 + $0xd8] sm:$0xff]
        %v948 = vld [vmem:[#allocation2 + $0xe0] sm:$0xff]
        %v949 = vld [vmem:[#allocation2 + $0xe8] sm:$0xff]
        %v950 = vld [vmem:[#allocation2 + $0xf0] sm:$0xff]
        %v951 = vld [vmem:[#allocation2 + $0xf8] sm:$0xff]
        %v952 = vld [vmem:[%s382] sm:$0x1]
        %v954 = vlaneseq
        %v955 = vshrl.u32 %v954, 7
        %v956 = vsub.s32 0, %v955
        %v957 = vrot.slane %v952, %v956
        %v959 = vadd.f32 %v920, %v957
        %v960 = vadd.f32 %v921, %v957
        %v961 = vadd.f32 %v922, %v957
        %v962 = vadd.f32 %v923, %v957
        %v963 = vadd.f32 %v924, %v957
        %v964 = vadd.f32 %v925, %v957
        %v965 = vadd.f32 %v926, %v957
        %v966 = vadd.f32 %v927, %v957
        %v967 = vadd.f32 %v928, %v957
        %v968 = vadd.f32 %v929, %v957
        %v969 = vadd.f32 %v930, %v957
        %v970 = vadd.f32 %v931, %v957
        %v971 = vadd.f32 %v932, %v957
        %v972 = vadd.f32 %v933, %v957
        %v973 = vadd.f32 %v934, %v957
        %v974 = vadd.f32 %v935, %v957
        %v975 = vadd.f32 %v936, %v957
        %v976 = vadd.f32 %v937, %v957
        %v977 = vadd.f32 %v938, %v957
        %v978 = vadd.f32 %v939, %v957
        %v979 = vadd.f32 %v940, %v957
        %v980 = vadd.f32 %v941, %v957
        %v981 = vadd.f32 %v942, %v957
        %v982 = vadd.f32 %v943, %v957
        %v983 = vadd.f32 %v944, %v957
        %v984 = vadd.f32 %v945, %v957
        %v985 = vadd.f32 %v946, %v957
        %v986 = vadd.f32 %v947, %v957
        %v987 = vadd.f32 %v948, %v957
        %v988 = vadd.f32 %v949, %v957
        %v989 = vadd.f32 %v950, %v957
        %v990 = vadd.f32 %v951, %v957
        %v991 = vld [vmem:[%s390] sm:$0xff]
        %v992 = vld [vmem:[%s390 + $0x8] sm:$0xff]
        %v993 = vld [vmem:[%s390 + $0x10] sm:$0xff]
        %v994 = vld [vmem:[%s390 + $0x18] sm:$0xff]
        %v995 = vld [vmem:[%s390 + $0x20] sm:$0xff]
        %v996 = vld [vmem:[%s390 + $0x28] sm:$0xff]
        %v997 = vld [vmem:[%s390 + $0x30] sm:$0xff]
        %v998 = vld [vmem:[%s390 + $0x38] sm:$0xff]
        %v999 = vld [vmem:[%s390 + $0x40] sm:$0xff]
        %v1000 = vld [vmem:[%s390 + $0x48] sm:$0xff]
        %v1001 = vld [vmem:[%s390 + $0x50] sm:$0xff]
        %v1002 = vld [vmem:[%s390 + $0x58] sm:$0xff]
        %v1003 = vld [vmem:[%s390 + $0x60] sm:$0xff]
        %v1004 = vld [vmem:[%s390 + $0x68] sm:$0xff]
        %v1005 = vld [vmem:[%s390 + $0x70] sm:$0xff]
        %v1006 = vld [vmem:[%s390 + $0x78] sm:$0xff]
        %v1007 = vld [vmem:[%s390 + $0x80] sm:$0xff]
        %v1008 = vld [vmem:[%s390 + $0x88] sm:$0xff]
        %v1009 = vld [vmem:[%s390 + $0x90] sm:$0xff]
        %v1010 = vld [vmem:[%s390 + $0x98] sm:$0xff]
        %v1011 = vld [vmem:[%s390 + $0xa0] sm:$0xff]
        %v1012 = vld [vmem:[%s390 + $0xa8] sm:$0xff]
        %v1013 = vld [vmem:[%s390 + $0xb0] sm:$0xff]
        %v1014 = vld [vmem:[%s390 + $0xb8] sm:$0xff]
        %v1015 = vld [vmem:[%s390 + $0xc0] sm:$0xff]
        %v1016 = vld [vmem:[%s390 + $0xc8] sm:$0xff]
        %v1017 = vld [vmem:[%s390 + $0xd0] sm:$0xff]
        %v1018 = vld [vmem:[%s390 + $0xd8] sm:$0xff]
        %v1019 = vld [vmem:[%s390 + $0xe0] sm:$0xff]
        %v1020 = vld [vmem:[%s390 + $0xe8] sm:$0xff]
        %v1021 = vld [vmem:[%s390 + $0xf0] sm:$0xff]
        %v1022 = vld [vmem:[%s390 + $0xf8] sm:$0xff]
        %v1023 = vadd.f32 %v959, %v991
        %v1024 = vadd.f32 %v960, %v992
        %v1025 = vadd.f32 %v961, %v993
        %v1026 = vadd.f32 %v962, %v994
        %v1027 = vadd.f32 %v963, %v995
        %v1028 = vadd.f32 %v964, %v996
        %v1029 = vadd.f32 %v965, %v997
        %v1030 = vadd.f32 %v966, %v998
        %v1031 = vadd.f32 %v967, %v999
        %v1032 = vadd.f32 %v968, %v1000
        %v1033 = vadd.f32 %v969, %v1001
        %v1034 = vadd.f32 %v970, %v1002
        %v1035 = vadd.f32 %v971, %v1003
        %v1036 = vadd.f32 %v972, %v1004
        %v1037 = vadd.f32 %v973, %v1005
        %v1038 = vadd.f32 %v974, %v1006
        %v1039 = vadd.f32 %v975, %v1007
        %v1040 = vadd.f32 %v976, %v1008
        %v1041 = vadd.f32 %v977, %v1009
        %v1042 = vadd.f32 %v978, %v1010
        %v1043 = vadd.f32 %v979, %v1011
        %v1044 = vadd.f32 %v980, %v1012
        %v1045 = vadd.f32 %v981, %v1013
        %v1046 = vadd.f32 %v982, %v1014
        %v1047 = vadd.f32 %v983, %v1015
        %v1048 = vadd.f32 %v984, %v1016
        %v1049 = vadd.f32 %v985, %v1017
        %v1050 = vadd.f32 %v986, %v1018
        %v1051 = vadd.f32 %v987, %v1019
        %v1052 = vadd.f32 %v988, %v1020
        %v1053 = vadd.f32 %v989, %v1021
        %v1054 = vadd.f32 %v990, %v1022
        %1055 = vst [vmem:[%s399] sm:$0xff] %v1023
        %1056 = vst [vmem:[%s399 + $0x8] sm:$0xff] %v1024
        %1057 = vst [vmem:[%s399 + $0x10] sm:$0xff] %v1025
        %1058 = vst [vmem:[%s399 + $0x18] sm:$0xff] %v1026
        %1059 = vst [vmem:[%s399 + $0x20] sm:$0xff] %v1027
        %1060 = vst [vmem:[%s399 + $0x28] sm:$0xff] %v1028
        %1061 = vst [vmem:[%s399 + $0x30] sm:$0xff] %v1029
        %1062 = vst [vmem:[%s399 + $0x38] sm:$0xff] %v1030
        %1063 = vst [vmem:[%s399 + $0x40] sm:$0xff] %v1031
        %1064 = vst [vmem:[%s399 + $0x48] sm:$0xff] %v1032
        %1065 = vst [vmem:[%s399 + $0x50] sm:$0xff] %v1033
        %1066 = vst [vmem:[%s399 + $0x58] sm:$0xff] %v1034
        %1067 = vst [vmem:[%s399 + $0x60] sm:$0xff] %v1035
        %1068 = vst [vmem:[%s399 + $0x68] sm:$0xff] %v1036
        %1069 = vst [vmem:[%s399 + $0x70] sm:$0xff] %v1037
        %1070 = vst [vmem:[%s399 + $0x78] sm:$0xff] %v1038
        %1071 = vst [vmem:[%s399 + $0x80] sm:$0xff] %v1039
        %1072 = vst [vmem:[%s399 + $0x88] sm:$0xff] %v1040
        %1073 = vst [vmem:[%s399 + $0x90] sm:$0xff] %v1041
        %1074 = vst [vmem:[%s399 + $0x98] sm:$0xff] %v1042
        %1075 = vst [vmem:[%s399 + $0xa0] sm:$0xff] %v1043
        %1076 = vst [vmem:[%s399 + $0xa8] sm:$0xff] %v1044
        %1077 = vst [vmem:[%s399 + $0xb0] sm:$0xff] %v1045
        %1078 = vst [vmem:[%s399 + $0xb8] sm:$0xff] %v1046
        %1079 = vst [vmem:[%s399 + $0xc0] sm:$0xff] %v1047
        %1080 = vst [vmem:[%s399 + $0xc8] sm:$0xff] %v1048
        %1081 = vst [vmem:[%s399 + $0xd0] sm:$0xff] %v1049
        %1082 = vst [vmem:[%s399 + $0xd8] sm:$0xff] %v1050
        %1083 = vst [vmem:[%s399 + $0xe0] sm:$0xff] %v1051
        %1084 = vst [vmem:[%s399 + $0xe8] sm:$0xff] %v1052
        %1085 = vst [vmem:[%s399 + $0xf0] sm:$0xff] %v1053
        %1086 = vst [vmem:[%s399 + $0xf8] sm:$0xff] %v1054
      $region52: #{augskip_bottleneck_forward.5} parent=43 // pred_fallthru
        _
      %s1087 = smul.u32 32, %s22
      %p1088 = scmp.lt.s32.totalorder %s1087, 63
      %s1089 = scalar_select %p1088, %s1087, 63
      %p1090 = scmp.lt.s32.totalorder %s23, 0
      %s1091 = scalar_select %p1090, %s23, 0
      %s1092 = sadd.s32 %s1091, %s1089
      %s1093 = smul.addr %s1092, 8
      %s1094 = scalar_lea.vmem %s6, %s1093
      // Predicated region
      $region53: #{augskip_bottleneck_forward.5} parent=43 // pred_check
        %p1095 = pneg %p218
      $region54: #{augskip_bottleneck_forward.5} parent=43 // pred_check_branch
        %1097 = sbr.rel (%p1095) target = $region56
      $region55: #{augskip_bottleneck_forward.5} parent=43 // pred_region
        %s1098 = smul.u32 32, %s22
      $region56: #{augskip_bottleneck_forward.5} parent=43 // pred_fallthru
        _
    $region44: #{augskip_bottleneck_forward.5} parent=5 // pred_fallthru
      _
    %p1099 = scmp.le.s32.totalorder 2, %s12
    // Predicated region
    $region57: #{augskip_bottleneck_forward.5} parent=5 // pred_check
      %p1100 = pneg %p1099
    $region58: #{augskip_bottleneck_forward.5} parent=5 // pred_check_branch
      %1102 = sbr.rel (%p1100) target = $region60
    $region59: #{augskip_bottleneck_forward.5} parent=5 // pred_region
      %s1103 = ssub.s32 %s12, 2
      // Predicated region
      $region61: #{augskip_bottleneck_forward.5} parent=59 // pred_check
        %p1104 = pneg %p224
      $region62: #{augskip_bottleneck_forward.5} parent=59 // pred_check_branch
        %1106 = sbr.rel (%p1104) target = $region64
      $region63: #{augskip_bottleneck_forward.5} parent=59 // pred_region
        %s1107 = smul.u32 32, %s25
        %p1108 = scmp.lt.s32.totalorder %s1107, 63
        %s1109 = scalar_select %p1108, %s1107, 63
        %p1110 = scmp.lt.s32.totalorder %s26, 0
        %s1111 = scalar_select %p1110, %s26, 0
        %s1112 = sadd.s32 %s1111, %s1109
        %s1113 = smul.addr %s1112, 8
        %s1114 = scalar_lea.vmem %s6, %s1113
      $region64: #{augskip_bottleneck_forward.5} parent=59 // pred_fallthru
        _
    $region60: #{augskip_bottleneck_forward.5} parent=5 // pred_fallthru
      _
  $region6: #{augskip_bottleneck_forward.5} parent=0 // loop_footer
    %s16 = sadd.s32 1, %s12
  $region7: #{augskip_bottleneck_forward.5} parent=0 // loop_footer_branch
    %11 = sbr.rel target = $region3
  $region8: #{augskip_bottleneck_forward.5} parent=0 // loop_exit
    _

// kernel: augskip_bottleneck_forward.4
$region0: #{augskip_bottleneck_forward.4}
  #allocation0 [shape = 'u32[]', space=smem, size = 0x4, offset = 0x4, fixed_abs, tag = 'smem constant byte address 0x4 - core index']
  #allocation1 [shape = 'u32[144,128]{1,0:T(1,128)}', space=vmem, size = 0x12000, scoped, tag = 'internal scratch']
  %s0 = inlined_call_operand.vmem [shape: f32[2,1,342,128], index: 0, kind: input, shape index: {}]
  %s1 = inlined_call_operand.vmem [shape: bf16[9,128,128], index: 1, kind: input, shape index: {}]
  %s2 = inlined_call_operand.vmem [shape: f32[1,128], index: 2, kind: input, shape index: {}]
  %s3 = inlined_call_operand.vmem [shape: f32[2,288,128], index: 3, kind: input, shape index: {}]
  %s4 = inlined_call_operand.vmem [shape: f32[2,288,128], index: 4, kind: output, shape index: {}]
  %s5 = sld [smem:[#allocation0]]
  $region49: #{augskip_bottleneck_forward.4} parent=0
    _
  %s7 = ssub.s32 1, %s5
  %s8 = scalar_select 0, %s7, %s5
  loop: start=0, step=1, limit=4
  $region2: #{augskip_bottleneck_forward.4} parent=0 // loop_pre_header
    _
  $region3: #{augskip_bottleneck_forward.4} parent=0 // loop_header
    %s10 = sphi 0, %s14
    %p11 = scmp.ge.s32.totalorder %s10, 4
    %s20 = sphi 0, %s22
    %s23 = sphi 0, %s20
    %s24 = sphi 0, %s23
    %s40 = sphi 0, %s24
    %s44 = sphi 0, %s44
    %s46 = sphi 0, %s44
    %s47 = sphi 0, %s46
    %s61 = sphi 0, %s47
    %s65 = sphi 0, %s65
    %s67 = sphi 0, %s65
    %s68 = sphi 0, %s67
    %s82 = sphi 0, %s68
    %s88 = sphi 0, %s90
    %s91 = sphi 0, %s88
    %s92 = sphi 0, %s91
    %s108 = sphi 0, %s92
    %s114 = sphi 0, %s116
    %s117 = sphi 0, %s114
    %s118 = sphi 0, %s117
    %s134 = sphi 0, %s118
  $region4: #{augskip_bottleneck_forward.4} parent=0 // loop_header_branch
    %13 = sbr.rel (%p11) target = $region8
  $region5: #{augskip_bottleneck_forward.4} parent=0 // loop_body
    %s15 = ssub.s32 %s10, 1
    %s16 = ssub.s32 %s10, 2
    %s17 = sadd.s32 %s10, 1
    %s18 = ssub.s32 %s10, %s17
    %p19 = scmp.eq.s32.totalorder %s18, 0
    %s21 = sadd.s32 %s20, 1
    %s22 = scalar_select %p19, %s20, %s21
    %p25 = pneg %p19
    %p26 = scmp.eq.s32.totalorder %s10, 1
    %p27 = por %p25, %p26
    %p28 = scmp.ne.s32.totalorder %s20, %s23
    %p29 = scmp.eq.s32.totalorder %s10, 0
    %p30 = por %p28, %p29
    %p31 = scmp.ne.s32.totalorder %s20, %s23
    %p32 = scmp.eq.s32.totalorder %s15, 1
    %p33 = por %p31, %p32
    %p34 = scmp.ne.s32.totalorder %s23, %s24
    %p35 = scmp.eq.s32.totalorder %s15, 0
    %p36 = por %p34, %p35
    %p37 = scmp.ne.s32.totalorder %s23, %s24
    %p38 = scmp.eq.s32.totalorder %s16, 1
    %p39 = por %p37, %p38
    %p41 = scmp.ne.s32.totalorder %s24, %s40
    %p42 = scmp.eq.s32.totalorder %s16, 0
    %p43 = por %p41, %p42
    %s45 = sadd.s32 %s44, 1
    %p48 = scmp.eq.s32.totalorder %s10, 1
    %p49 = scmp.ne.s32.totalorder %s44, %s46
    %p50 = scmp.eq.s32.totalorder %s10, 0
    %p51 = por %p49, %p50
    %p52 = scmp.ne.s32.totalorder %s44, %s46
    %p53 = scmp.eq.s32.totalorder %s15, 1
    %p54 = por %p52, %p53
    %p55 = scmp.ne.s32.totalorder %s46, %s47
    %p56 = scmp.eq.s32.totalorder %s15, 0
    %p57 = por %p55, %p56
    %p58 = scmp.ne.s32.totalorder %s46, %s47
    %p59 = scmp.eq.s32.totalorder %s16, 1
    %p60 = por %p58, %p59
    %p62 = scmp.ne.s32.totalorder %s47, %s61
    %p63 = scmp.eq.s32.totalorder %s16, 0
    %p64 = por %p62, %p63
    %s66 = sadd.s32 %s65, 1
    %p69 = scmp.eq.s32.totalorder %s10, 1
    %p70 = scmp.ne.s32.totalorder %s65, %s67
    %p71 = scmp.eq.s32.totalorder %s10, 0
    %p72 = por %p70, %p71
    %p73 = scmp.ne.s32.totalorder %s65, %s67
    %p74 = scmp.eq.s32.totalorder %s15, 1
    %p75 = por %p73, %p74
    %p76 = scmp.ne.s32.totalorder %s67, %s68
    %p77 = scmp.eq.s32.totalorder %s15, 0
    %p78 = por %p76, %p77
    %p79 = scmp.ne.s32.totalorder %s67, %s68
    %p80 = scmp.eq.s32.totalorder %s16, 1
    %p81 = por %p79, %p80
    %p83 = scmp.ne.s32.totalorder %s68, %s82
    %p84 = scmp.eq.s32.totalorder %s16, 0
    %p85 = por %p83, %p84
    %s86 = ssub.s32 %s10, %s17
    %p87 = scmp.eq.s32.totalorder %s86, 0
    %s89 = sadd.s32 %s88, 1
    %s90 = scalar_select %p87, %s88, %s89
    %p93 = pneg %p87
    %p94 = scmp.eq.s32.totalorder %s10, 1
    %p95 = por %p93, %p94
    %p96 = scmp.ne.s32.totalorder %s88, %s91
    %p97 = scmp.eq.s32.totalorder %s10, 0
    %p98 = por %p96, %p97
    %p99 = scmp.ne.s32.totalorder %s88, %s91
    %p100 = scmp.eq.s32.totalorder %s15, 1
    %p101 = por %p99, %p100
    %p102 = scmp.ne.s32.totalorder %s91, %s92
    %p103 = scmp.eq.s32.totalorder %s15, 0
    %p104 = por %p102, %p103
    %p105 = scmp.ne.s32.totalorder %s91, %s92
    %p106 = scmp.eq.s32.totalorder %s16, 1
    %p107 = por %p105, %p106
    %p109 = scmp.ne.s32.totalorder %s92, %s108
    %p110 = scmp.eq.s32.totalorder %s16, 0
    %p111 = por %p109, %p110
    %s112 = ssub.s32 %s10, %s17
    %p113 = scmp.eq.s32.totalorder %s112, 0
    %s115 = sadd.s32 %s114, 1
    %s116 = scalar_select %p113, %s114, %s115
    %p119 = pneg %p113
    %p120 = scmp.eq.s32.totalorder %s10, 1
    %p121 = por %p119, %p120
    %p122 = scmp.ne.s32.totalorder %s114, %s117
    %p123 = scmp.eq.s32.totalorder %s10, 0
    %p124 = por %p122, %p123
    %p125 = scmp.ne.s32.totalorder %s114, %s117
    %p126 = scmp.eq.s32.totalorder %s15, 1
    %p127 = por %p125, %p126
    %p128 = scmp.ne.s32.totalorder %s117, %s118
    %p129 = scmp.eq.s32.totalorder %s15, 0
    %p130 = por %p128, %p129
    %p131 = scmp.ne.s32.totalorder %s117, %s118
    %p132 = scmp.eq.s32.totalorder %s16, 1
    %p133 = por %p131, %p132
    %p135 = scmp.ne.s32.totalorder %s118, %s134
    %p136 = scmp.eq.s32.totalorder %s16, 0
    %p137 = por %p135, %p136
    %p138 = scmp.le.s32.totalorder 1, %s10
    %p139 = scmp.lt.s32.totalorder %s10, 3
    %p140 = pnand %p138, %p139
    %p141 = pneg %p140
    // Predicated region
    $region9: #{augskip_bottleneck_forward.4} parent=5 // pred_check
      _
    $region10: #{augskip_bottleneck_forward.4} parent=5 // pred_check_branch
      %143 = sbr.rel (%p140) target = $region12
    $region11: #{augskip_bottleneck_forward.4} parent=5 // pred_region
      %s144 = ssub.s32 %s10, 1
      // Predicated region
      $region13: #{augskip_bottleneck_forward.4} parent=11 // pred_check
        %p145 = pneg %p57
      $region14: #{augskip_bottleneck_forward.4} parent=11 // pred_check_branch
        %147 = sbr.rel (%p145) target = $region16
      $region15: #{augskip_bottleneck_forward.4} parent=11 // pred_region
        _
      $region16: #{augskip_bottleneck_forward.4} parent=11 // pred_fallthru
        _
      // Predicated region
      $region17: #{augskip_bottleneck_forward.4} parent=11 // pred_check
        %p148 = pneg %p78
      $region18: #{augskip_bottleneck_forward.4} parent=11 // pred_check_branch
        %150 = sbr.rel (%p148) target = $region20
      $region19: #{augskip_bottleneck_forward.4} parent=11 // pred_region
        _
      $region20: #{augskip_bottleneck_forward.4} parent=11 // pred_fallthru
        _
    $region12: #{augskip_bottleneck_forward.4} parent=5 // pred_fallthru
      _
    %p151 = scmp.lt.s32.totalorder %s10, 2
    // Predicated region
    $region21: #{augskip_bottleneck_forward.4} parent=5 // pred_check
      %p152 = pneg %p151
    $region22: #{augskip_bottleneck_forward.4} parent=5 // pred_check_branch
      %154 = sbr.rel (%p152) target = $region24
    $region23: #{augskip_bottleneck_forward.4} parent=5 // pred_region
      // Predicated region
      $region25: #{augskip_bottleneck_forward.4} parent=23 // pred_check
        %p155 = pneg %p30
      $region26: #{augskip_bottleneck_forward.4} parent=23 // pred_check_branch
        %157 = sbr.rel (%p155) target = $region28
      $region27: #{augskip_bottleneck_forward.4} parent=23 // pred_region
        %p158 = scmp.lt.s32.totalorder %s10, 1
        %s159 = scalar_select %p158, %s10, 1
        %s160 = smul.addr %s159, 43
        %s161 = smul.addr %s160, 8
        %s162 = scalar_lea.vmem %s0, %s161
      $region28: #{augskip_bottleneck_forward.4} parent=23 // pred_fallthru
        _
      // Predicated region
      $region29: #{augskip_bottleneck_forward.4} parent=23 // pred_check
        %p163 = pneg %p98
      $region30: #{augskip_bottleneck_forward.4} parent=23 // pred_check_branch
        %165 = sbr.rel (%p163) target = $region32
      $region31: #{augskip_bottleneck_forward.4} parent=23 // pred_region
        %p166 = scmp.lt.s32.totalorder %s10, 1
        %s167 = scalar_select %p166, %s10, 1
        %s168 = smul.addr %s167, 36
        %s169 = smul.addr %s168, 8
        %s170 = scalar_lea.vmem %s3, %s169
      $region32: #{augskip_bottleneck_forward.4} parent=23 // pred_fallthru
        _
    $region24: #{augskip_bottleneck_forward.4} parent=5 // pred_fallthru
      _
    %p171 = scmp.le.s32.totalorder 1, %s10
    %p172 = scmp.lt.s32.totalorder %s10, 3
    %p173 = pnand %p171, %p172
    %p174 = pneg %p173
    // Predicated region
    $region33: #{augskip_bottleneck_forward.4} parent=5 // pred_check
      _
    $region34: #{augskip_bottleneck_forward.4} parent=5 // pred_check_branch
      %176 = sbr.rel (%p173) target = $region36
    $region35: #{augskip_bottleneck_forward.4} parent=5 // pred_region
      %s177 = ssub.s32 %s10, 1
      %p178 = scmp.lt.s32.totalorder %s15, 1
      %s179 = scalar_select %p178, %s15, 1
      %s180 = smul.addr %s179, 43
      %s181 = smul.addr %s180, 8
      %s182 = scalar_lea.vmem %s0, %s181
      %p183 = pneg %p36
      %p184 = pneg %p33
      %p185 = pneg %p57
      %p186 = pneg %p54
      %p187 = pneg %p78
      %p188 = pneg %p75
      %p189 = scmp.lt.s32.totalorder %s15, 1
      %s190 = scalar_select %p189, %s15, 1
      %s191 = smul.addr %s190, 36
      %s192 = smul.addr %s191, 8
      %s193 = scalar_lea.vmem %s3, %s192
      %p194 = pneg %p104
      %p195 = pneg %p101
      %p196 = pneg %p130
      %p197 = pneg %p127
      %p198 = scmp.lt.s32.totalorder %s15, 1
      %s199 = scalar_select %p198, %s15, 1
      %s200 = smul.addr %s199, 36
      %s201 = smul.addr %s200, 8
      %s202 = scalar_lea.vmem %s4, %s201
      %p203 = scmp.lt.s32.totalorder %s15, 1
      %s204 = scalar_select %p203, %s15, 1
      %s205 = smul.addr %s204, 43
      %s206 = smul.addr %s205, 8
      %s207 = scalar_lea.vmem %s0, %s206
      %p208 = scmp.lt.s32.totalorder %s15, 1
      %s209 = scalar_select %p208, %s15, 1
      %s210 = smul.addr %s209, 36
      %s211 = smul.addr %s210, 8
      %s212 = scalar_lea.vmem %s3, %s211
      %p213 = scmp.lt.s32.totalorder %s15, 1
      %s214 = scalar_select %p213, %s15, 1
      %s215 = smul.addr %s214, 36
      %s216 = smul.addr %s215, 8
      %s217 = scalar_lea.vmem %s4, %s216
      %v219 = vld [vmem:[%s207] sm:$0xff]
      %v220 = vld [vmem:[%s207 + $0x8] sm:$0xff]
      %v221 = vld [vmem:[%s207 + $0x10] sm:$0xff]
      %v222 = vld [vmem:[%s207 + $0x18] sm:$0xff]
      %v223 = vld [vmem:[%s207 + $0x20] sm:$0xff]
      %v224 = vld [vmem:[%s207 + $0x28] sm:$0xff]
      %v225 = vld [vmem:[%s207 + $0x30] sm:$0xff]
      %v226 = vld [vmem:[%s207 + $0x38] sm:$0xff]
      %v227 = vld [vmem:[%s207 + $0x40] sm:$0xff]
      %v228 = vld [vmem:[%s207 + $0x48] sm:$0xff]
      %v229 = vld [vmem:[%s207 + $0x50] sm:$0xff]
      %v230 = vld [vmem:[%s207 + $0x58] sm:$0xff]
      %v231 = vld [vmem:[%s207 + $0x60] sm:$0xff]
      %v232 = vld [vmem:[%s207 + $0x68] sm:$0xff]
      %v233 = vld [vmem:[%s207 + $0x70] sm:$0xff]
      %v234 = vld [vmem:[%s207 + $0x78] sm:$0xff]
      %v235 = vld [vmem:[%s207 + $0x80] sm:$0xff]
      %v236 = vld [vmem:[%s207 + $0x88] sm:$0xff]
      %v237 = vld [vmem:[%s207 + $0x90] sm:$0xff]
      %v238 = vld [vmem:[%s207 + $0x98] sm:$0xff]
      %v239 = vld [vmem:[%s207 + $0xa0] sm:$0xff]
      %v240 = vld [vmem:[%s207 + $0xa8] sm:$0xff]
      %v241 = vld [vmem:[%s207 + $0xb0] sm:$0xff]
      %v242 = vld [vmem:[%s207 + $0xb8] sm:$0xff]
      %v243 = vld [vmem:[%s207 + $0xc0] sm:$0xff]
      %v244 = vld [vmem:[%s207 + $0xc8] sm:$0xff]
      %v245 = vld [vmem:[%s207 + $0xd0] sm:$0xff]
      %v246 = vld [vmem:[%s207 + $0xd8] sm:$0xff]
      %v247 = vld [vmem:[%s207 + $0xe0] sm:$0xff]
      %v248 = vld [vmem:[%s207 + $0xe8] sm:$0xff]
      %v249 = vld [vmem:[%s207 + $0xf0] sm:$0xff]
      %v250 = vld [vmem:[%s207 + $0xf8] sm:$0xff]
      %v251 = vld [vmem:[%s207 + $0x100] sm:$0xff]
      %v252 = vld [vmem:[%s207 + $0x108] sm:$0xff]
      %v253 = vld [vmem:[%s207 + $0x110] sm:$0xff]
      %v254 = vld [vmem:[%s207 + $0x118] sm:$0xff]
      %v255 = vpack.c.bf16 %v220, %v219
      %v256 = vpack.c.bf16 %v222, %v221
      %v257 = vpack.c.bf16 %v224, %v223
      %v258 = vpack.c.bf16 %v226, %v225
      %v259 = vpack.c.bf16 %v228, %v227
      %v260 = vpack.c.bf16 %v230, %v229
      %v261 = vpack.c.bf16 %v232, %v231
      %v262 = vpack.c.bf16 %v234, %v233
      %v263 = vpack.c.bf16 %v236, %v235
      %v264 = vpack.c.bf16 %v238, %v237
      %v265 = vpack.c.bf16 %v240, %v239
      %v266 = vpack.c.bf16 %v242, %v241
      %v267 = vpack.c.bf16 %v244, %v243
      %v268 = vpack.c.bf16 %v246, %v245
      %v269 = vpack.c.bf16 %v248, %v247
      %v270 = vpack.c.bf16 %v250, %v249
      %v271 = vpack.c.bf16 %v252, %v251
      %v272 = vpack.c.bf16 %v254, %v253
      %v273 = vld [vmem:[%s1] sm:$0xf]
      %v274 = vld [vmem:[%s1 + $0x4] sm:$0xf]
      %v275 = vld [vmem:[%s1 + $0x8] sm:$0xf]
      %v276 = vld [vmem:[%s1 + $0xc] sm:$0xf]
      %v277 = vld [vmem:[%s1 + $0x10] sm:$0xf]
      %v278 = vld [vmem:[%s1 + $0x14] sm:$0xf]
      %v279 = vld [vmem:[%s1 + $0x18] sm:$0xf]
      %v280 = vld [vmem:[%s1 + $0x1c] sm:$0xf]
      %v281 = vld [vmem:[%s1 + $0x20] sm:$0xf]
      %v282 = vld [vmem:[%s1 + $0x24] sm:$0xf]
      %v283 = vld [vmem:[%s1 + $0x28] sm:$0xf]
      %v284 = vld [vmem:[%s1 + $0x2c] sm:$0xf]
      %v285 = vld [vmem:[%s1 + $0x30] sm:$0xf]
      %v286 = vld [vmem:[%s1 + $0x34] sm:$0xf]
      %v287 = vld [vmem:[%s1 + $0x38] sm:$0xf]
      %v288 = vld [vmem:[%s1 + $0x3c] sm:$0xf]
      %v289 = vld [vmem:[%s207 + $0x1] sm:$0xff]
      %v290 = vld [vmem:[%s207 + $0x9] sm:$0xff]
      %v291 = vld [vmem:[%s207 + $0x11] sm:$0xff]
      %v292 = vld [vmem:[%s207 + $0x19] sm:$0xff]
      %v293 = vld [vmem:[%s207 + $0x21] sm:$0xff]
      %v294 = vld [vmem:[%s207 + $0x29] sm:$0xff]
      %v295 = vld [vmem:[%s207 + $0x31] sm:$0xff]
      %v296 = vld [vmem:[%s207 + $0x39] sm:$0xff]
      %v297 = vld [vmem:[%s207 + $0x41] sm:$0xff]
      %v298 = vld [vmem:[%s207 + $0x49] sm:$0xff]
      %v299 = vld [vmem:[%s207 + $0x51] sm:$0xff]
      %v300 = vld [vmem:[%s207 + $0x59] sm:$0xff]
      %v301 = vld [vmem:[%s207 + $0x61] sm:$0xff]
      %v302 = vld [vmem:[%s207 + $0x69] sm:$0xff]
      %v303 = vld [vmem:[%s207 + $0x71] sm:$0xff]
      %v304 = vld [vmem:[%s207 + $0x79] sm:$0xff]
      %v305 = vld [vmem:[%s207 + $0x81] sm:$0xff]
      %v306 = vld [vmem:[%s207 + $0x89] sm:$0xff]
      %v307 = vld [vmem:[%s207 + $0x91] sm:$0xff]
      %v308 = vld [vmem:[%s207 + $0x99] sm:$0xff]
      %v309 = vld [vmem:[%s207 + $0xa1] sm:$0xff]
      %v310 = vld [vmem:[%s207 + $0xa9] sm:$0xff]
      %v311 = vld [vmem:[%s207 + $0xb1] sm:$0xff]
      %v312 = vld [vmem:[%s207 + $0xb9] sm:$0xff]
      %v313 = vld [vmem:[%s207 + $0xc1] sm:$0xff]
      %v314 = vld [vmem:[%s207 + $0xc9] sm:$0xff]
      %v315 = vld [vmem:[%s207 + $0xd1] sm:$0xff]
      %v316 = vld [vmem:[%s207 + $0xd9] sm:$0xff]
      %v317 = vld [vmem:[%s207 + $0xe1] sm:$0xff]
      %v318 = vld [vmem:[%s207 + $0xe9] sm:$0xff]
      %v319 = vld [vmem:[%s207 + $0xf1] sm:$0xff]
      %v320 = vld [vmem:[%s207 + $0xf9] sm:$0xff]
      %v321 = vld [vmem:[%s207 + $0x101] sm:$0xff]
      %v322 = vld [vmem:[%s207 + $0x109] sm:$0xff]
      %v323 = vld [vmem:[%s207 + $0x111] sm:$0xff]
      %v324 = vld [vmem:[%s207 + $0x119] sm:$0xff]
      %v325 = vpack.c.bf16 %v290, %v289
      %v326 = vpack.c.bf16 %v292, %v291
      %v327 = vpack.c.bf16 %v294, %v293
      %v328 = vpack.c.bf16 %v296, %v295
      %v329 = vpack.c.bf16 %v298, %v297
      %v330 = vpack.c.bf16 %v300, %v299
      %v331 = vpack.c.bf16 %v302, %v301
      %v332 = vpack.c.bf16 %v304, %v303
      %v333 = vpack.c.bf16 %v306, %v305
      %v334 = vpack.c.bf16 %v308, %v307
      %v335 = vpack.c.bf16 %v310, %v309
      %v336 = vpack.c.bf16 %v312, %v311
      %v337 = vpack.c.bf16 %v314, %v313
      %v338 = vpack.c.bf16 %v316, %v315
      %v339 = vpack.c.bf16 %v318, %v317
      %v340 = vpack.c.bf16 %v320, %v319
      %v341 = vpack.c.bf16 %v322, %v321
      %v342 = vpack.c.bf16 %v324, %v323
      %s343 = scalar_lea.vmem %s1, 64
      %v344 = vld [vmem:[%s343] sm:$0xf]
      %v345 = vld [vmem:[%s343 + $0x4] sm:$0xf]
      %v346 = vld [vmem:[%s343 + $0x8] sm:$0xf]
      %v347 = vld [vmem:[%s343 + $0xc] sm:$0xf]
      %v348 = vld [vmem:[%s343 + $0x10] sm:$0xf]
      %v349 = vld [vmem:[%s343 + $0x14] sm:$0xf]
      %v350 = vld [vmem:[%s343 + $0x18] sm:$0xf]
      %v351 = vld [vmem:[%s343 + $0x1c] sm:$0xf]
      %v352 = vld [vmem:[%s343 + $0x20] sm:$0xf]
      %v353 = vld [vmem:[%s343 + $0x24] sm:$0xf]
      %v354 = vld [vmem:[%s343 + $0x28] sm:$0xf]
      %v355 = vld [vmem:[%s343 + $0x2c] sm:$0xf]
      %v356 = vld [vmem:[%s343 + $0x30] sm:$0xf]
      %v357 = vld [vmem:[%s343 + $0x34] sm:$0xf]
      %v358 = vld [vmem:[%s343 + $0x38] sm:$0xf]
      %v359 = vld [vmem:[%s343 + $0x3c] sm:$0xf]
      %v376 = vunpack.c.l.b16 %v344
      %v377 = vunpack.c.l.b16 %v345
      %v378 = vunpack.c.l.b16 %v346
      %v379 = vunpack.c.l.b16 %v347
      %v380 = vunpack.c.l.b16 %v348
      %v381 = vunpack.c.l.b16 %v349
      %v382 = vunpack.c.l.b16 %v350
      %v383 = vunpack.c.l.b16 %v351
      %v384 = vunpack.c.l.b16 %v352
      %v385 = vunpack.c.l.b16 %v353
      %v386 = vunpack.c.l.b16 %v354
      %v387 = vunpack.c.l.b16 %v355
      %v388 = vunpack.c.l.b16 %v356
      %v389 = vunpack.c.l.b16 %v357
      %v390 = vunpack.c.l.b16 %v358
      %v391 = vunpack.c.l.b16 %v359
      %v392 = vpack.c.b16 %v377, %v376
      %v393 = vpack.c.b16 %v379, %v378
      %v394 = vpack.c.b16 %v381, %v380
      %v395 = vpack.c.b16 %v383, %v382
      %v396 = vpack.c.b16 %v385, %v384
      %v397 = vpack.c.b16 %v387, %v386
      %v398 = vpack.c.b16 %v389, %v388
      %v399 = vpack.c.b16 %v391, %v390
      %408 = vmatprep.subr.bf16.mxu0 0
      %409 = vmatpush1.bf16.msra.mxu0 %v392
      %410 = vmatprep.subr.bf16.mxu0 0
      %411 = vmatpush1.bf16.msra.mxu0 %v393
      %412 = vmatprep.subr.bf16.mxu0 0
      %413 = vmatpush1.bf16.msra.mxu0 %v394
      %414 = vmatprep.subr.bf16.mxu0 0
      %415 = vmatpush1.bf16.msra.mxu0 %v395
      %416 = vmatprep.subr.bf16.mxu0 0
      %417 = vmatpush1.bf16.msra.mxu0 %v396
      %418 = vmatprep.subr.bf16.mxu0 0
      %419 = vmatpush1.bf16.msra.mxu0 %v397
      %420 = vmatprep.subr.bf16.mxu0 0
      %421 = vmatpush1.bf16.msra.mxu0 %v398
      %422 = vmatprep.subr.bf16.mxu0 0
      %423 = vmatpush1.bf16.msra.mxu0 %v399
      %424 = vmatprep.subr.bf16.mxu0 0
      %425 = vmatpush1.bf16.msra.mxu0 0
      %426 = vmatprep.subr.bf16.mxu0 0
      %427 = vmatpush1.bf16.msra.mxu0 0
      %428 = vmatprep.subr.bf16.mxu0 0
      %429 = vmatpush1.bf16.msra.mxu0 0
      %430 = vmatprep.subr.bf16.mxu0 0
      %431 = vmatpush1.bf16.msra.mxu0 0
      %432 = vmatprep.subr.bf16.mxu0 0
      %433 = vmatpush1.bf16.msra.mxu0 0
      %434 = vmatprep.subr.bf16.mxu0 0
      %435 = vmatpush1.bf16.msra.mxu0 0
      %436 = vmatprep.subr.bf16.mxu0 0
      %437 = vmatpush1.bf16.msra.mxu0 0
      %438 = vmatprep.subr.bf16.mxu0 0
      %439 = vmatpush1.bf16.msra.mxu0 0
      %440 = vmatprep.mubr.bf16.mxu0 0
      %441 = vmatmul.mubr.bf16.gmra.mrb[0].mxu0 %v325
      %v442 = vpop.f32.mrb[0].mxu0
      %v443 = vadd.f32 0.0, %v442
      %v444 = vpop.f32.mrb[0].mxu0
      %v445 = vpop.f32.mrb[0].mxu0
      %v446 = vadd.f32 0.0, %v445
      %v447 = vpop.f32.mrb[0].mxu0
      %448 = vmatprep.mubr.bf16.mxu0 0
      %449 = vmatmul.mubr.bf16.gmra.mrb[0].mxu0 %v326
      %v450 = vpop.f32.mrb[0].mxu0
      %v451 = vadd.f32 0.0, %v450
      %v452 = vpop.f32.mrb[0].mxu0
      %v453 = vpop.f32.mrb[0].mxu0
      %v454 = vadd.f32 0.0, %v453
      %v455 = vpop.f32.mrb[0].mxu0
      %456 = vmatprep.mubr.bf16.mxu0 0
      %457 = vmatmul.mubr.bf16.gmra.mrb[0].mxu0 %v327
      %v458 = vpop.f32.mrb[0].mxu0
      %v459 = vadd.f32 0.0, %v458
      %v460 = vpop.f32.mrb[0].mxu0
      %v461 = vpop.f32.mrb[0].mxu0
      %v462 = vadd.f32 0.0, %v461
      %v463 = vpop.f32.mrb[0].mxu0
      %464 = vmatprep.mubr.bf16.mxu0 0
      %465 = vmatmul.mubr.bf16.gmra.mrb[0].mxu0 %v328
      %v466 = vpop.f32.mrb[0].mxu0
      %v467 = vadd.f32 0.0, %v466
      %v468 = vpop.f32.mrb[0].mxu0
      %v469 = vpop.f32.mrb[0].mxu0
      %v470 = vadd.f32 0.0, %v469
      %v471 = vpop.f32.mrb[0].mxu0
      %472 = vmatprep.mubr.bf16.mxu0 0
      %473 = vmatmul.mubr.bf16.gmra.mrb[0].mxu0 %v329
      %v474 = vpop.f32.mrb[0].mxu0
      %v475 = vadd.f32 0.0, %v474
      %v476 = vpop.f32.mrb[0].mxu0
      %v477 = vpop.f32.mrb[0].mxu0
      %v478 = vadd.f32 0.0, %v477
      %v479 = vpop.f32.mrb[0].mxu0
      %480 = vmatprep.mubr.bf16.mxu0 0
      %481 = vmatmul.mubr.bf16.gmra.mrb[0].mxu0 %v330
      %v482 = vpop.f32.mrb[0].mxu0
      %v483 = vadd.f32 0.0, %v482
      %v484 = vpop.f32.mrb[0].mxu0
      %v485 = vpop.f32.mrb[0].mxu0
      %v486 = vadd.f32 0.0, %v485
      %v487 = vpop.f32.mrb[0].mxu0
      %488 = vmatprep.mubr.bf16.mxu0 0
      %489 = vmatmul.mubr.bf16.gmra.mrb[0].mxu0 %v331
      %v490 = vpop.f32.mrb[0].mxu0
      %v491 = vadd.f32 0.0, %v490
      %v492 = vpop.f32.mrb[0].mxu0
      %v493 = vpop.f32.mrb[0].mxu0
      %v494 = vadd.f32 0.0, %v493
      %v495 = vpop.f32.mrb[0].mxu0
      %496 = vmatprep.mubr.bf16.mxu0 0
      %497 = vmatmul.mubr.bf16.gmra.mrb[0].mxu0 %v332
      %v498 = vpop.f32.mrb[0].mxu0
      %v499 = vadd.f32 0.0, %v498
      %v500 = vpop.f32.mrb[0].mxu0
      %v501 = vpop.f32.mrb[0].mxu0
      %v502 = vadd.f32 0.0, %v501
      %v503 = vpop.f32.mrb[0].mxu0
      %504 = vmatprep.mubr.bf16.mxu0 0
      %505 = vmatmul.mubr.bf16.gmra.mrb[0].mxu0 %v333
      %v506 = vpop.f32.mrb[0].mxu0
      %v507 = vadd.f32 0.0, %v506
      %v508 = vpop.f32.mrb[0].mxu0
      %v509 = vpop.f32.mrb[0].mxu0
      %v510 = vadd.f32 0.0, %v509
      %v511 = vpop.f32.mrb[0].mxu0
      %512 = vmatprep.mubr.bf16.mxu0 0
      %513 = vmatmul.mubr.bf16.gmra.mrb[0].mxu0 %v334
      %v514 = vpop.f32.mrb[0].mxu0
      %v515 = vadd.f32 0.0, %v514
      %v516 = vpop.f32.mrb[0].mxu0
      %v517 = vpop.f32.mrb[0].mxu0
      %v518 = vadd.f32 0.0, %v517
      %v519 = vpop.f32.mrb[0].mxu0
      %520 = vmatprep.mubr.bf16.mxu0 0
      %521 = vmatmul.mubr.bf16.gmra.mrb[0].mxu0 %v335
      %v522 = vpop.f32.mrb[0].mxu0
      %v523 = vadd.f32 0.0, %v522
      %v524 = vpop.f32.mrb[0].mxu0
      %v525 = vpop.f32.mrb[0].mxu0
      %v526 = vadd.f32 0.0, %v525
      %v527 = vpop.f32.mrb[0].mxu0
      %528 = vmatprep.mubr.bf16.mxu0 0
      %529 = vmatmul.mubr.bf16.gmra.mrb[0].mxu0 %v336
      %v530 = vpop.f32.mrb[0].mxu0
      %v531 = vadd.f32 0.0, %v530
      %v532 = vpop.f32.mrb[0].mxu0
      %v533 = vpop.f32.mrb[0].mxu0
      %v534 = vadd.f32 0.0, %v533
      %v535 = vpop.f32.mrb[0].mxu0
      %536 = vmatprep.mubr.bf16.mxu0 0
      %537 = vmatmul.mubr.bf16.gmra.mrb[0].mxu0 %v337
      %v538 = vpop.f32.mrb[0].mxu0
      %v539 = vadd.f32 0.0, %v538
      %v540 = vpop.f32.mrb[0].mxu0
      %v541 = vpop.f32.mrb[0].mxu0
      %v542 = vadd.f32 0.0, %v541
      %v543 = vpop.f32.mrb[0].mxu0
      %544 = vmatprep.mubr.bf16.mxu0 0
      %545 = vmatmul.mubr.bf16.gmra.mrb[0].mxu0 %v338
      %v546 = vpop.f32.mrb[0].mxu0
      %v547 = vadd.f32 0.0, %v546
      %v548 = vpop.f32.mrb[0].mxu0
      %v549 = vpop.f32.mrb[0].mxu0
      %v550 = vadd.f32 0.0, %v549
      %v551 = vpop.f32.mrb[0].mxu0
      %552 = vmatprep.mubr.bf16.mxu0 0
      %553 = vmatmul.mubr.bf16.gmra.mrb[0].mxu0 %v339
      %v554 = vpop.f32.mrb[0].mxu0
      %v555 = vadd.f32 0.0, %v554
      %v556 = vpop.f32.mrb[0].mxu0
      %v557 = vpop.f32.mrb[0].mxu0
      %v558 = vadd.f32 0.0, %v557
      %v559 = vpop.f32.mrb[0].mxu0
      %560 = vmatprep.mubr.bf16.mxu0 0
      %561 = vmatmul.mubr.bf16.gmra.mrb[0].mxu0 %v340
      %v562 = vpop.f32.mrb[0].mxu0
      %v563 = vadd.f32 0.0, %v562
      %v564 = vpop.f32.mrb[0].mxu0
      %v565 = vpop.f32.mrb[0].mxu0
      %v566 = vadd.f32 0.0, %v565
      %v567 = vpop.f32.mrb[0].mxu0
      %568 = vmatprep.mubr.bf16.mxu0 0
      %569 = vmatmul.mubr.bf16.gmra.mrb[0].mxu0 %v341
      %v570 = vpop.f32.mrb[0].mxu0
      %v571 = vadd.f32 0.0, %v570
      %v572 = vpop.f32.mrb[0].mxu0
      %v573 = vpop.f32.mrb[0].mxu0
      %v574 = vadd.f32 0.0, %v573
      %v575 = vpop.f32.mrb[0].mxu0
      %576 = vmatprep.mubr.bf16.mxu0 0
      %577 = vmatmul.mubr.bf16.gmra.mrb[0].mxu0 %v342
      %v578 = vpop.f32.mrb[0].mxu0
      %v579 = vadd.f32 0.0, %v578
      %v580 = vpop.f32.mrb[0].mxu0
      %v581 = vpop.f32.mrb[0].mxu0
      %v582 = vadd.f32 0.0, %v581
      %v583 = vpop.f32.mrb[0].mxu0
      %584 = vdwg.mxu0
      %v601 = vunpack.c.l.b16 %v273
      %v602 = vunpack.c.l.b16 %v274
      %v603 = vunpack.c.l.b16 %v275
      %v604 = vunpack.c.l.b16 %v276
      %v605 = vunpack.c.l.b16 %v277
      %v606 = vunpack.c.l.b16 %v278
      %v607 = vunpack.c.l.b16 %v279
      %v608 = vunpack.c.l.b16 %v280
      %v609 = vunpack.c.l.b16 %v281
      %v610 = vunpack.c.l.b16 %v282
      %v611 = vunpack.c.l.b16 %v283
      %v612 = vunpack.c.l.b16 %v284
      %v613 = vunpack.c.l.b16 %v285
      %v614 = vunpack.c.l.b16 %v286
      %v615 = vunpack.c.l.b16 %v287
      %v616 = vunpack.c.l.b16 %v288
      %v617 = vpack.c.b16 %v602, %v601
      %v618 = vpack.c.b16 %v604, %v603
      %v619 = vpack.c.b16 %v606, %v605
      %v620 = vpack.c.b16 %v608, %v607
      %v621 = vpack.c.b16 %v610, %v609
      %v622 = vpack.c.b16 %v612, %v611
      %v623 = vpack.c.b16 %v614, %v613
      %v624 = vpack.c.b16 %v616, %v615
      %633 = vmatprep.subr.bf16.mxu0 0
      %634 = vmatpush1.bf16.msra.mxu0 %v617
      %635 = vmatprep.subr.bf16.mxu0 0
      %636 = vmatpush1.bf16.msra.mxu0 %v618
      %637 = vmatprep.subr.bf16.mxu0 0
      %638 = vmatpush1.bf16.msra.mxu0 %v619
      %639 = vmatprep.subr.bf16.mxu0 0
      %640 = vmatpush1.bf16.msra.mxu0 %v620
      %641 = vmatprep.subr.bf16.mxu0 0
      %642 = vmatpush1.bf16.msra.mxu0 %v621
      %643 = vmatprep.subr.bf16.mxu0 0
      %644 = vmatpush1.bf16.msra.mxu0 %v622
      %645 = vmatprep.subr.bf16.mxu0 0
      %646 = vmatpush1.bf16.msra.mxu0 %v623
      %647 = vmatprep.subr.bf16.mxu0 0
      %648 = vmatpush1.bf16.msra.mxu0 %v624
      %649 = vmatprep.subr.bf16.mxu0 0
      %650 = vmatpush1.bf16.msra.mxu0 0
      %651 = vmatprep.subr.bf16.mxu0 0
      %652 = vmatpush1.bf16.msra.mxu0 0
      %653 = vmatprep.subr.bf16.mxu0 0
      %654 = vmatpush1.bf16.msra.mxu0 0
      %655 = vmatprep.subr.bf16.mxu0 0
      %656 = vmatpush1.bf16.msra.mxu0 0
      %657 = vmatprep.subr.bf16.mxu0 0
      %658 = vmatpush1.bf16.msra.mxu0 0
      %659 = vmatprep.subr.bf16.mxu0 0
      %660 = vmatpush1.bf16.msra.mxu0 0
      %661 = vmatprep.subr.bf16.mxu0 0
      %662 = vmatpush1.bf16.msra.mxu0 0
      %663 = vmatprep.subr.bf16.mxu0 0
      %664 = vmatpush1.bf16.msra.mxu0 0
      %665 = vmatprep.mubr.bf16.mxu0 0
      %666 = vmatmul.mubr.bf16.gmra.mrb[0].mxu0 %v255
      %v667 = vpop.f32.mrb[0].mxu0
      %v668 = vadd.f32 %v443, %v667
      %v669 = vpop.f32.mrb[0].mxu0
      %v670 = vpop.f32.mrb[0].mxu0
      %v671 = vadd.f32 %v446, %v670
      %v672 = vpop.f32.mrb[0].mxu0
      %673 = vmatprep.mubr.bf16.mxu0 0
      %674 = vmatmul.mubr.bf16.gmra.mrb[0].mxu0 %v256
      %v675 = vpop.f32.mrb[0].mxu0
      %v676 = vadd.f32 %v451, %v675
      %v677 = vpop.f32.mrb[0].mxu0
      %v678 = vpop.f32.mrb[0].mxu0
      %v679 = vadd.f32 %v454, %v678
      %v680 = vpop.f32.mrb[0].mxu0
      %681 = vmatprep.mubr.bf16.mxu0 0
      %682 = vmatmul.mubr.bf16.gmra.mrb[0].mxu0 %v257
      %v683 = vpop.f32.mrb[0].mxu0
      %v684 = vadd.f32 %v459, %v683
      %v685 = vpop.f32.mrb[0].mxu0
      %v686 = vpop.f32.mrb[0].mxu0
      %v687 = vadd.f32 %v462, %v686
      %v688 = vpop.f32.mrb[0].mxu0
      %689 = vmatprep.mubr.bf16.mxu0 0
      %690 = vmatmul.mubr.bf16.gmra.mrb[0].mxu0 %v258
      %v691 = vpop.f32.mrb[0].mxu0
      %v692 = vadd.f32 %v467, %v691
      %v693 = vpop.f32.mrb[0].mxu0
      %v694 = vpop.f32.mrb[0].mxu0
      %v695 = vadd.f32 %v470, %v694
      %v696 = vpop.f32.mrb[0].mxu0
      %697 = vmatprep.mubr.bf16.mxu0 0
      %698 = vmatmul.mubr.bf16.gmra.mrb[0].mxu0 %v259
      %v699 = vpop.f32.mrb[0].mxu0
      %v700 = vadd.f32 %v475, %v699
      %v701 = vpop.f32.mrb[0].mxu0
      %v702 = vpop.f32.mrb[0].mxu0
      %v703 = vadd.f32 %v478, %v702
      %v704 = vpop.f32.mrb[0].mxu0
      %705 = vmatprep.mubr.bf16.mxu0 0
      %706 = vmatmul.mubr.bf16.gmra.mrb[0].mxu0 %v260
      %v707 = vpop.f32.mrb[0].mxu0
      %v708 = vadd.f32 %v483, %v707
      %v709 = vpop.f32.mrb[0].mxu0
      %v710 = vpop.f32.mrb[0].mxu0
      %v711 = vadd.f32 %v486, %v710
      %v712 = vpop.f32.mrb[0].mxu0
      %713 = vmatprep.mubr.bf16.mxu0 0
      %714 = vmatmul.mubr.bf16.gmra.mrb[0].mxu0 %v261
      %v715 = vpop.f32.mrb[0].mxu0
      %v716 = vadd.f32 %v491, %v715
      %v717 = vpop.f32.mrb[0].mxu0
      %v718 = vpop.f32.mrb[0].mxu0
      %v719 = vadd.f32 %v494, %v718
      %v720 = vpop.f32.mrb[0].mxu0
      %721 = vmatprep.mubr.bf16.mxu0 0
      %722 = vmatmul.mubr.bf16.gmra.mrb[0].mxu0 %v262
      %v723 = vpop.f32.mrb[0].mxu0
      %v724 = vadd.f32 %v499, %v723
      %v725 = vpop.f32.mrb[0].mxu0
      %v726 = vpop.f32.mrb[0].mxu0
      %v727 = vadd.f32 %v502, %v726
      %v728 = vpop.f32.mrb[0].mxu0
      %729 = vmatprep.mubr.bf16.mxu0 0
      %730 = vmatmul.mubr.bf16.gmra.mrb[0].mxu0 %v263
      %v731 = vpop.f32.mrb[0].mxu0
      %v732 = vadd.f32 %v507, %v731
      %v733 = vpop.f32.mrb[0].mxu0
      %v734 = vpop.f32.mrb[0].mxu0
      %v735 = vadd.f32 %v510, %v734
      %v736 = vpop.f32.mrb[0].mxu0
      %737 = vmatprep.mubr.bf16.mxu0 0
      %738 = vmatmul.mubr.bf16.gmra.mrb[0].mxu0 %v264
      %v739 = vpop.f32.mrb[0].mxu0
      %v740 = vadd.f32 %v515, %v739
      %v741 = vpop.f32.mrb[0].mxu0
      %v742 = vpop.f32.mrb[0].mxu0
      %v743 = vadd.f32 %v518, %v742
      %v744 = vpop.f32.mrb[0].mxu0
      %745 = vmatprep.mubr.bf16.mxu0 0
      %746 = vmatmul.mubr.bf16.gmra.mrb[0].mxu0 %v265
      %v747 = vpop.f32.mrb[0].mxu0
      %v748 = vadd.f32 %v523, %v747
      %v749 = vpop.f32.mrb[0].mxu0
      %v750 = vpop.f32.mrb[0].mxu0
      %v751 = vadd.f32 %v526, %v750
      %v752 = vpop.f32.mrb[0].mxu0
      %753 = vmatprep.mubr.bf16.mxu0 0
      %754 = vmatmul.mubr.bf16.gmra.mrb[0].mxu0 %v266
      %v755 = vpop.f32.mrb[0].mxu0
      %v756 = vadd.f32 %v531, %v755
      %v757 = vpop.f32.mrb[0].mxu0
      %v758 = vpop.f32.mrb[0].mxu0
      %v759 = vadd.f32 %v534, %v758
      %v760 = vpop.f32.mrb[0].mxu0
      %761 = vmatprep.mubr.bf16.mxu0 0
      %762 = vmatmul.mubr.bf16.gmra.mrb[0].mxu0 %v267
      %v763 = vpop.f32.mrb[0].mxu0
      %v764 = vadd.f32 %v539, %v763
      %v765 = vpop.f32.mrb[0].mxu0
      %v766 = vpop.f32.mrb[0].mxu0
      %v767 = vadd.f32 %v542, %v766
      %v768 = vpop.f32.mrb[0].mxu0
      %769 = vmatprep.mubr.bf16.mxu0 0
      %770 = vmatmul.mubr.bf16.gmra.mrb[0].mxu0 %v268
      %v771 = vpop.f32.mrb[0].mxu0
      %v772 = vadd.f32 %v547, %v771
      %v773 = vpop.f32.mrb[0].mxu0
      %v774 = vpop.f32.mrb[0].mxu0
      %v775 = vadd.f32 %v550, %v774
      %v776 = vpop.f32.mrb[0].mxu0
      %777 = vmatprep.mubr.bf16.mxu0 0
      %778 = vmatmul.mubr.bf16.gmra.mrb[0].mxu0 %v269
      %v779 = vpop.f32.mrb[0].mxu0
      %v780 = vadd.f32 %v555, %v779
      %v781 = vpop.f32.mrb[0].mxu0
      %v782 = vpop.f32.mrb[0].mxu0
      %v783 = vadd.f32 %v558, %v782
      %v784 = vpop.f32.mrb[0].mxu0
      %785 = vmatprep.mubr.bf16.mxu0 0
      %786 = vmatmul.mubr.bf16.gmra.mrb[0].mxu0 %v270
      %v787 = vpop.f32.mrb[0].mxu0
      %v788 = vadd.f32 %v563, %v787
      %v789 = vpop.f32.mrb[0].mxu0
      %v790 = vpop.f32.mrb[0].mxu0
      %v791 = vadd.f32 %v566, %v790
      %v792 = vpop.f32.mrb[0].mxu0
      %793 = vmatprep.mubr.bf16.mxu0 0
      %794 = vmatmul.mubr.bf16.gmra.mrb[0].mxu0 %v271
      %v795 = vpop.f32.mrb[0].mxu0
      %v796 = vadd.f32 %v571, %v795
      %v797 = vpop.f32.mrb[0].mxu0
      %v798 = vpop.f32.mrb[0].mxu0
      %v799 = vadd.f32 %v574, %v798
      %v800 = vpop.f32.mrb[0].mxu0
      %801 = vmatprep.mubr.bf16.mxu0 0
      %802 = vmatmul.mubr.bf16.gmra.mrb[0].mxu0 %v272
      %v803 = vpop.f32.mrb[0].mxu0
      %v804 = vadd.f32 %v579, %v803
      %v805 = vpop.f32.mrb[0].mxu0
      %v806 = vpop.f32.mrb[0].mxu0
      %v807 = vadd.f32 %v582, %v806
      %v808 = vpop.f32.mrb[0].mxu0
      %809 = vdwg.mxu0
      %v810 = vld [vmem:[%s207 + $0x2] sm:$0xff]
      %v811 = vld [vmem:[%s207 + $0xa] sm:$0xff]
      %v812 = vld [vmem:[%s207 + $0x12] sm:$0xff]
      %v813 = vld [vmem:[%s207 + $0x1a] sm:$0xff]
      %v814 = vld [vmem:[%s207 + $0x22] sm:$0xff]
      %v815 = vld [vmem:[%s207 + $0x2a] sm:$0xff]
      %v816 = vld [vmem:[%s207 + $0x32] sm:$0xff]
      %v817 = vld [vmem:[%s207 + $0x3a] sm:$0xff]
      %v818 = vld [vmem:[%s207 + $0x42] sm:$0xff]
      %v819 = vld [vmem:[%s207 + $0x4a] sm:$0xff]
      %v820 = vld [vmem:[%s207 + $0x52] sm:$0xff]
      %v821 = vld [vmem:[%s207 + $0x5a] sm:$0xff]
      %v822 = vld [vmem:[%s207 + $0x62] sm:$0xff]
      %v823 = vld [vmem:[%s207 + $0x6a] sm:$0xff]
      %v824 = vld [vmem:[%s207 + $0x72] sm:$0xff]
      %v825 = vld [vmem:[%s207 + $0x7a] sm:$0xff]
      %v826 = vld [vmem:[%s207 + $0x82] sm:$0xff]
      %v827 = vld [vmem:[%s207 + $0x8a] sm:$0xff]
      %v828 = vld [vmem:[%s207 + $0x92] sm:$0xff]
      %v829 = vld [vmem:[%s207 + $0x9a] sm:$0xff]
      %v830 = vld [vmem:[%s207 + $0xa2] sm:$0xff]
      %v831 = vld [vmem:[%s207 + $0xaa] sm:$0xff]
      %v832 = vld [vmem:[%s207 + $0xb2] sm:$0xff]
      %v833 = vld [vmem:[%s207 + $0xba] sm:$0xff]
      %v834 = vld [vmem:[%s207 + $0xc2] sm:$0xff]
      %v835 = vld [vmem:[%s207 + $0xca] sm:$0xff]
      %v836 = vld [vmem:[%s207 + $0xd2] sm:$0xff]
      %v837 = vld [vmem:[%s207 + $0xda] sm:$0xff]
      %v838 = vld [vmem:[%s207 + $0xe2] sm:$0xff]
      %v839 = vld [vmem:[%s207 + $0xea] sm:$0xff]
      %v840 = vld [vmem:[%s207 + $0xf2] sm:$0xff]
      %v841 = vld [vmem:[%s207 + $0xfa] sm:$0xff]
      %v842 = vld [vmem:[%s207 + $0x102] sm:$0xff]
      %v843 = vld [vmem:[%s207 + $0x10a] sm:$0xff]
      %v844 = vld [vmem:[%s207 + $0x112] sm:$0xff]
      %v845 = vld [vmem:[%s207 + $0x11a] sm:$0xff]
      %v846 = vpack.c.bf16 %v811, %v810
      %v847 = vpack.c.bf16 %v813, %v812
      %v848 = vpack.c.bf16 %v815, %v814
      %v849 = vpack.c.bf16 %v817, %v816
      %v850 = vpack.c.bf16 %v819, %v818
      %v851 = vpack.c.bf16 %v821, %v820
      %v852 = vpack.c.bf16 %v823, %v822
      %v853 = vpack.c.bf16 %v825, %v824
      %v854 = vpack.c.bf16 %v827, %v826
      %v855 = vpack.c.bf16 %v829, %v828
      %v856 = vpack.c.bf16 %v831, %v830
      %v857 = vpack.c.bf16 %v833, %v832
      %v858 = vpack.c.bf16 %v835, %v834
      %v859 = vpack.c.bf16 %v837, %v836
      %v860 = vpack.c.bf16 %v839, %v838
      %v861 = vpack.c.bf16 %v841, %v840
      %v862 = vpack.c.bf16 %v843, %v842
      %v863 = vpack.c.bf16 %v845, %v844
      %s864 = scalar_lea.vmem %s1, 128
      %v865 = vld [vmem:[%s864] sm:$0xf]
      %v866 = vld [vmem:[%s864 + $0x4] sm:$0xf]
      %v867 = vld [vmem:[%s864 + $0x8] sm:$0xf]
      %v868 = vld [vmem:[%s864 + $0xc] sm:$0xf]
      %v869 = vld [vmem:[%s864 + $0x10] sm:$0xf]
      %v870 = vld [vmem:[%s864 + $0x14] sm:$0xf]
      %v871 = vld [vmem:[%s864 + $0x18] sm:$0xf]
      %v872 = vld [vmem:[%s864 + $0x1c] sm:$0xf]
      %v873 = vld [vmem:[%s864 + $0x20] sm:$0xf]
      %v874 = vld [vmem:[%s864 + $0x24] sm:$0xf]
      %v875 = vld [vmem:[%s864 + $0x28] sm:$0xf]
      %v876 = vld [vmem:[%s864 + $0x2c] sm:$0xf]
      %v877 = vld [vmem:[%s864 + $0x30] sm:$0xf]
      %v878 = vld [vmem:[%s864 + $0x34] sm:$0xf]
      %v879 = vld [vmem:[%s864 + $0x38] sm:$0xf]
      %v880 = vld [vmem:[%s864 + $0x3c] sm:$0xf]
      %v897 = vunpack.c.l.b16 %v865
      %v898 = vunpack.c.l.b16 %v866
      %v899 = vunpack.c.l.b16 %v867
      %v900 = vunpack.c.l.b16 %v868
      %v901 = vunpack.c.l.b16 %v869
      %v902 = vunpack.c.l.b16 %v870
      %v903 = vunpack.c.l.b16 %v871
      %v904 = vunpack.c.l.b16 %v872
      %v905 = vunpack.c.l.b16 %v873
      %v906 = vunpack.c.l.b16 %v874
      %v907 = vunpack.c.l.b16 %v875
      %v908 = vunpack.c.l.b16 %v876
      %v909 = vunpack.c.l.b16 %v877
      %v910 = vunpack.c.l.b16 %v878
      %v911 = vunpack.c.l.b16 %v879
      %v912 = vunpack.c.l.b16 %v880
      %v913 = vpack.c.b16 %v898, %v897
      %v914 = vpack.c.b16 %v900, %v899
      %v915 = vpack.c.b16 %v902, %v901
      %v916 = vpack.c.b16 %v904, %v903
      %v917 = vpack.c.b16 %v906, %v905
      %v918 = vpack.c.b16 %v908, %v907
      %v919 = vpack.c.b16 %v910, %v909
      %v920 = vpack.c.b16 %v912, %v911
      %929 = vmatprep.subr.bf16.mxu0 0
      %930 = vmatpush1.bf16.msra.mxu0 %v913
      %931 = vmatprep.subr.bf16.mxu0 0
      %932 = vmatpush1.bf16.msra.mxu0 %v914
      %933 = vmatprep.subr.bf16.mxu0 0
      %934 = vmatpush1.bf16.msra.mxu0 %v915
      %935 = vmatprep.subr.bf16.mxu0 0
      %936 = vmatpush1.bf16.msra.mxu0 %v916
      %937 = vmatprep.subr.bf16.mxu0 0
      %938 = vmatpush1.bf16.msra.mxu0 %v917
      %939 = vmatprep.subr.bf16.mxu0 0
      %940 = vmatpush1.bf16.msra.mxu0 %v918
      %941 = vmatprep.subr.bf16.mxu0 0
      %942 = vmatpush1.bf16.msra.mxu0 %v919
      %943 = vmatprep.subr.bf16.mxu0 0
      %944 = vmatpush1.bf16.msra.mxu0 %v920
      %945 = vmatprep.subr.bf16.mxu0 0
      %946 = vmatpush1.bf16.msra.mxu0 0
      %947 = vmatprep.subr.bf16.mxu0 0
      %948 = vmatpush1.bf16.msra.mxu0 0
      %949 = vmatprep.subr.bf16.mxu0 0
      %950 = vmatpush1.bf16.msra.mxu0 0
      %951 = vmatprep.subr.bf16.mxu0 0
      %952 = vmatpush1.bf16.msra.mxu0 0
      %953 = vmatprep.subr.bf16.mxu0 0
      %954 = vmatpush1.bf16.msra.mxu0 0
      %955 = vmatprep.subr.bf16.mxu0 0
      %956 = vmatpush1.bf16.msra.mxu0 0
      %957 = vmatprep.subr.bf16.mxu0 0
      %958 = vmatpush1.bf16.msra.mxu0 0
      %959 = vmatprep.subr.bf16.mxu0 0
      %960 = vmatpush1.bf16.msra.mxu0 0
      %961 = vmatprep.mubr.bf16.mxu0 0
      %962 = vmatmul.mubr.bf16.gmra.mrb[0].mxu0 %v846
      %v963 = vpop.f32.mrb[0].mxu0
      %v964 = vadd.f32 0.0, %v963
      %v965 = vpop.f32.mrb[0].mxu0
      %v966 = vpop.f32.mrb[0].mxu0
      %v967 = vadd.f32 0.0, %v966
      %v968 = vpop.f32.mrb[0].mxu0
      %969 = vmatprep.mubr.bf16.mxu0 0
      %970 = vmatmul.mubr.bf16.gmra.mrb[0].mxu0 %v847
      %v971 = vpop.f32.mrb[0].mxu0
      %v972 = vadd.f32 0.0, %v971
      %v973 = vpop.f32.mrb[0].mxu0
      %v974 = vpop.f32.mrb[0].mxu0
      %v975 = vadd.f32 0.0, %v974
      %v976 = vpop.f32.mrb[0].mxu0
      %977 = vmatprep.mubr.bf16.mxu0 0
      %978 = vmatmul.mubr.bf16.gmra.mrb[0].mxu0 %v848
      %v979 = vpop.f32.mrb[0].mxu0
      %v980 = vadd.f32 0.0, %v979
      %v981 = vpop.f32.mrb[0].mxu0
      %v982 = vpop.f32.mrb[0].mxu0
      %v983 = vadd.f32 0.0, %v982
      %v984 = vpop.f32.mrb[0].mxu0
      %985 = vmatprep.mubr.bf16.mxu0 0
      %986 = vmatmul.mubr.bf16.gmra.mrb[0].mxu0 %v849
      %v987 = vpop.f32.mrb[0].mxu0
      %v988 = vadd.f32 0.0, %v987
      %v989 = vpop.f32.mrb[0].mxu0
      %v990 = vpop.f32.mrb[0].mxu0
      %v991 = vadd.f32 0.0, %v990
      %v992 = vpop.f32.mrb[0].mxu0
      %993 = vmatprep.mubr.bf16.mxu0 0
      %994 = vmatmul.mubr.bf16.gmra.mrb[0].mxu0 %v850
      %v995 = vpop.f32.mrb[0].mxu0
      %v996 = vadd.f32 0.0, %v995
      %v997 = vpop.f32.mrb[0].mxu0
      %v998 = vpop.f32.mrb[0].mxu0
      %v999 = vadd.f32 0.0, %v998
      %v1000 = vpop.f32.mrb[0].mxu0
      %1001 = vmatprep.mubr.bf16.mxu0 0
      %1002 = vmatmul.mubr.bf16.gmra.mrb[0].mxu0 %v851
      %v1003 = vpop.f32.mrb[0].mxu0
      %v1004 = vadd.f32 0.0, %v1003
      %v1005 = vpop.f32.mrb[0].mxu0
      %v1006 = vpop.f32.mrb[0].mxu0
      %v1007 = vadd.f32 0.0, %v1006
      %v1008 = vpop.f32.mrb[0].mxu0
      %1009 = vmatprep.mubr.bf16.mxu0 0
      %1010 = vmatmul.mubr.bf16.gmra.mrb[0].mxu0 %v852
      %v1011 = vpop.f32.mrb[0].mxu0
      %v1012 = vadd.f32 0.0, %v1011
      %v1013 = vpop.f32.mrb[0].mxu0
      %v1014 = vpop.f32.mrb[0].mxu0
      %v1015 = vadd.f32 0.0, %v1014
      %v1016 = vpop.f32.mrb[0].mxu0
      %1017 = vmatprep.mubr.bf16.mxu0 0
      %1018 = vmatmul.mubr.bf16.gmra.mrb[0].mxu0 %v853
      %v1019 = vpop.f32.mrb[0].mxu0
      %v1020 = vadd.f32 0.0, %v1019
      %v1021 = vpop.f32.mrb[0].mxu0
      %v1022 = vpop.f32.mrb[0].mxu0
      %v1023 = vadd.f32 0.0, %v1022
      %v1024 = vpop.f32.mrb[0].mxu0
      %1025 = vmatprep.mubr.bf16.mxu0 0
      %1026 = vmatmul.mubr.bf16.gmra.mrb[0].mxu0 %v854
      %v1027 = vpop.f32.mrb[0].mxu0
      %v1028 = vadd.f32 0.0, %v1027
      %v1029 = vpop.f32.mrb[0].mxu0
      %v1030 = vpop.f32.mrb[0].mxu0
      %v1031 = vadd.f32 0.0, %v1030
      %v1032 = vpop.f32.mrb[0].mxu0
      %1033 = vmatprep.mubr.bf16.mxu0 0
      %1034 = vmatmul.mubr.bf16.gmra.mrb[0].mxu0 %v855
      %v1035 = vpop.f32.mrb[0].mxu0
      %v1036 = vadd.f32 0.0, %v1035
      %v1037 = vpop.f32.mrb[0].mxu0
      %v1038 = vpop.f32.mrb[0].mxu0
      %v1039 = vadd.f32 0.0, %v1038
      %v1040 = vpop.f32.mrb[0].mxu0
      %1041 = vmatprep.mubr.bf16.mxu0 0
      %1042 = vmatmul.mubr.bf16.gmra.mrb[0].mxu0 %v856
      %v1043 = vpop.f32.mrb[0].mxu0
      %v1044 = vadd.f32 0.0, %v1043
      %v1045 = vpop.f32.mrb[0].mxu0
      %v1046 = vpop.f32.mrb[0].mxu0
      %v1047 = vadd.f32 0.0, %v1046
      %v1048 = vpop.f32.mrb[0].mxu0
      %1049 = vmatprep.mubr.bf16.mxu0 0
      %1050 = vmatmul.mubr.bf16.gmra.mrb[0].mxu0 %v857
      %v1051 = vpop.f32.mrb[0].mxu0
      %v1052 = vadd.f32 0.0, %v1051
      %v1053 = vpop.f32.mrb[0].mxu0
      %v1054 = vpop.f32.mrb[0].mxu0
      %v1055 = vadd.f32 0.0, %v1054
      %v1056 = vpop.f32.mrb[0].mxu0
      %1057 = vmatprep.mubr.bf16.mxu0 0
      %1058 = vmatmul.mubr.bf16.gmra.mrb[0].mxu0 %v858
      %v1059 = vpop.f32.mrb[0].mxu0
      %v1060 = vadd.f32 0.0, %v1059
      %v1061 = vpop.f32.mrb[0].mxu0
      %v1062 = vpop.f32.mrb[0].mxu0
      %v1063 = vadd.f32 0.0, %v1062
      %v1064 = vpop.f32.mrb[0].mxu0
      %1065 = vmatprep.mubr.bf16.mxu0 0
      %1066 = vmatmul.mubr.bf16.gmra.mrb[0].mxu0 %v859
      %v1067 = vpop.f32.mrb[0].mxu0
      %v1068 = vadd.f32 0.0, %v1067
      %v1069 = vpop.f32.mrb[0].mxu0
      %v1070 = vpop.f32.mrb[0].mxu0
      %v1071 = vadd.f32 0.0, %v1070
      %v1072 = vpop.f32.mrb[0].mxu0
      %1073 = vmatprep.mubr.bf16.mxu0 0
      %1074 = vmatmul.mubr.bf16.gmra.mrb[0].mxu0 %v860
      %v1075 = vpop.f32.mrb[0].mxu0
      %v1076 = vadd.f32 0.0, %v1075
      %v1077 = vpop.f32.mrb[0].mxu0
      %v1078 = vpop.f32.mrb[0].mxu0
      %v1079 = vadd.f32 0.0, %v1078
      %v1080 = vpop.f32.mrb[0].mxu0
      %1081 = vmatprep.mubr.bf16.mxu0 0
      %1082 = vmatmul.mubr.bf16.gmra.mrb[0].mxu0 %v861
      %v1083 = vpop.f32.mrb[0].mxu0
      %v1084 = vadd.f32 0.0, %v1083
      %v1085 = vpop.f32.mrb[0].mxu0
      %v1086 = vpop.f32.mrb[0].mxu0
      %v1087 = vadd.f32 0.0, %v1086
      %v1088 = vpop.f32.mrb[0].mxu0
      %1089 = vmatprep.mubr.bf16.mxu0 0
      %1090 = vmatmul.mubr.bf16.gmra.mrb[0].mxu0 %v862
      %v1091 = vpop.f32.mrb[0].mxu0
      %v1092 = vadd.f32 0.0, %v1091
      %v1093 = vpop.f32.mrb[0].mxu0
      %v1094 = vpop.f32.mrb[0].mxu0
      %v1095 = vadd.f32 0.0, %v1094
      %v1096 = vpop.f32.mrb[0].mxu0
      %1097 = vmatprep.mubr.bf16.mxu0 0
      %1098 = vmatmul.mubr.bf16.gmra.mrb[0].mxu0 %v863
      %v1099 = vpop.f32.mrb[0].mxu0
      %v1100 = vadd.f32 0.0, %v1099
      %v1101 = vpop.f32.mrb[0].mxu0
      %v1102 = vpop.f32.mrb[0].mxu0
      %v1103 = vadd.f32 0.0, %v1102
      %v1104 = vpop.f32.mrb[0].mxu0
      %1105 = vdwg.mxu0
      %v1106 = vadd.f32 %v668, %v964
      %v1107 = vadd.f32 %v671, %v967
      %v1108 = vadd.f32 %v676, %v972
      %v1109 = vadd.f32 %v679, %v975
      %v1110 = vadd.f32 %v684, %v980
      %v1111 = vadd.f32 %v687, %v983
      %v1112 = vadd.f32 %v692, %v988
      %v1113 = vadd.f32 %v695, %v991
      %v1114 = vadd.f32 %v700, %v996
      %v1115 = vadd.f32 %v703, %v999
      %v1116 = vadd.f32 %v708, %v1004
      %v1117 = vadd.f32 %v711, %v1007
      %v1118 = vadd.f32 %v716, %v1012
      %v1119 = vadd.f32 %v719, %v1015
      %v1120 = vadd.f32 %v724, %v1020
      %v1121 = vadd.f32 %v727, %v1023
      %v1122 = vadd.f32 %v732, %v1028
      %v1123 = vadd.f32 %v735, %v1031
      %v1124 = vadd.f32 %v740, %v1036
      %v1125 = vadd.f32 %v743, %v1039
      %v1126 = vadd.f32 %v748, %v1044
      %v1127 = vadd.f32 %v751, %v1047
      %v1128 = vadd.f32 %v756, %v1052
      %v1129 = vadd.f32 %v759, %v1055
      %v1130 = vadd.f32 %v764, %v1060
      %v1131 = vadd.f32 %v767, %v1063
      %v1132 = vadd.f32 %v772, %v1068
      %v1133 = vadd.f32 %v775, %v1071
      %v1134 = vadd.f32 %v780, %v1076
      %v1135 = vadd.f32 %v783, %v1079
      %v1136 = vadd.f32 %v788, %v1084
      %v1137 = vadd.f32 %v791, %v1087
      %v1138 = vadd.f32 %v796, %v1092
      %v1139 = vadd.f32 %v799, %v1095
      %v1140 = vadd.f32 %v804, %v1100
      %v1141 = vadd.f32 %v807, %v1103
      %v1142 = vld [vmem:[%s207 + $0x12] sm:$0xff]
      %v1143 = vld [vmem:[%s207 + $0x1a] sm:$0xff]
      %v1144 = vld [vmem:[%s207 + $0x22] sm:$0xff]
      %v1145 = vld [vmem:[%s207 + $0x2a] sm:$0xff]
      %v1146 = vld [vmem:[%s207 + $0x32] sm:$0xff]
      %v1147 = vld [vmem:[%s207 + $0x3a] sm:$0xff]
      %v1148 = vld [vmem:[%s207 + $0x42] sm:$0xff]
      %v1149 = vld [vmem:[%s207 + $0x4a] sm:$0xff]
      %v1150 = vld [vmem:[%s207 + $0x52] sm:$0xff]
      %v1151 = vld [vmem:[%s207 + $0x5a] sm:$0xff]
      %v1152 = vld [vmem:[%s207 + $0x62] sm:$0xff]
      %v1153 = vld [vmem:[%s207 + $0x6a] sm:$0xff]
      %v1154 = vld [vmem:[%s207 + $0x72] sm:$0xff]
      %v1155 = vld [vmem:[%s207 + $0x7a] sm:$0xff]
      %v1156 = vld [vmem:[%s207 + $0x82] sm:$0xff]
      %v1157 = vld [vmem:[%s207 + $0x8a] sm:$0xff]
      %v1158 = vld [vmem:[%s207 + $0x92] sm:$0xff]
      %v1159 = vld [vmem:[%s207 + $0x9a] sm:$0xff]
      %v1160 = vld [vmem:[%s207 + $0xa2] sm:$0xff]
      %v1161 = vld [vmem:[%s207 + $0xaa] sm:$0xff]
      %v1162 = vld [vmem:[%s207 + $0xb2] sm:$0xff]
      %v1163 = vld [vmem:[%s207 + $0xba] sm:$0xff]
      %v1164 = vld [vmem:[%s207 + $0xc2] sm:$0xff]
      %v1165 = vld [vmem:[%s207 + $0xca] sm:$0xff]
      %v1166 = vld [vmem:[%s207 + $0xd2] sm:$0xff]
      %v1167 = vld [vmem:[%s207 + $0xda] sm:$0xff]
      %v1168 = vld [vmem:[%s207 + $0xe2] sm:$0xff]
      %v1169 = vld [vmem:[%s207 + $0xea] sm:$0xff]
      %v1170 = vld [vmem:[%s207 + $0xf2] sm:$0xff]
      %v1171 = vld [vmem:[%s207 + $0xfa] sm:$0xff]
      %v1172 = vld [vmem:[%s207 + $0x102] sm:$0xff]
      %v1173 = vld [vmem:[%s207 + $0x10a] sm:$0xff]
      %v1174 = vld [vmem:[%s207 + $0x112] sm:$0xff]
      %v1175 = vld [vmem:[%s207 + $0x11a] sm:$0xff]
      %v1176 = vld [vmem:[%s207 + $0x122] sm:$0xff]
      %v1177 = vld [vmem:[%s207 + $0x12a] sm:$0xff]
      %v1178 = vpack.c.bf16 %v1143, %v1142
      %v1179 = vpack.c.bf16 %v1145, %v1144
      %v1180 = vpack.c.bf16 %v1147, %v1146
      %v1181 = vpack.c.bf16 %v1149, %v1148
      %v1182 = vpack.c.bf16 %v1151, %v1150
      %v1183 = vpack.c.bf16 %v1153, %v1152
      %v1184 = vpack.c.bf16 %v1155, %v1154
      %v1185 = vpack.c.bf16 %v1157, %v1156
      %v1186 = vpack.c.bf16 %v1159, %v1158
      %v1187 = vpack.c.bf16 %v1161, %v1160
      %v1188 = vpack.c.bf16 %v1163, %v1162
      %v1189 = vpack.c.bf16 %v1165, %v1164
      %v1190 = vpack.c.bf16 %v1167, %v1166
      %v1191 = vpack.c.bf16 %v1169, %v1168
      %v1192 = vpack.c.bf16 %v1171, %v1170
      %v1193 = vpack.c.bf16 %v1173, %v1172
      %v1194 = vpack.c.bf16 %v1175, %v1174
      %v1195 = vpack.c.bf16 %v1177, %v1176
      %s1196 = scalar_lea.vmem %s1, 192
      %v1197 = vld [vmem:[%s1196] sm:$0xf]
      %v1198 = vld [vmem:[%s1196 + $0x4] sm:$0xf]
      %v1199 = vld [vmem:[%s1196 + $0x8] sm:$0xf]
      %v1200 = vld [vmem:[%s1196 + $0xc] sm:$0xf]
      %v1201 = vld [vmem:[%s1196 + $0x10] sm:$0xf]
      %v1202 = vld [vmem:[%s1196 + $0x14] sm:$0xf]
      %v1203 = vld [vmem:[%s1196 + $0x18] sm:$0xf]
      %v1204 = vld [vmem:[%s1196 + $0x1c] sm:$0xf]
      %v1205 = vld [vmem:[%s1196 + $0x20] sm:$0xf]
      %v1206 = vld [vmem:[%s1196 + $0x24] sm:$0xf]
      %v1207 = vld [vmem:[%s1196 + $0x28] sm:$0xf]
      %v1208 = vld [vmem:[%s1196 + $0x2c] sm:$0xf]
      %v1209 = vld [vmem:[%s1196 + $0x30] sm:$0xf]
      %v1210 = vld [vmem:[%s1196 + $0x34] sm:$0xf]
      %v1211 = vld [vmem:[%s1196 + $0x38] sm:$0xf]
      %v1212 = vld [vmem:[%s1196 + $0x3c] sm:$0xf]
      %v1229 = vunpack.c.l.b16 %v1197
      %v1230 = vunpack.c.l.b16 %v1198
      %v1231 = vunpack.c.l.b16 %v1199
      %v1232 = vunpack.c.l.b16 %v1200
      %v1233 = vunpack.c.l.b16 %v1201
      %v1234 = vunpack.c.l.b16 %v1202
      %v1235 = vunpack.c.l.b16 %v1203
      %v1236 = vunpack.c.l.b16 %v1204
      %v1237 = vunpack.c.l.b16 %v1205
      %v1238 = vunpack.c.l.b16 %v1206
      %v1239 = vunpack.c.l.b16 %v1207
      %v1240 = vunpack.c.l.b16 %v1208
      %v1241 = vunpack.c.l.b16 %v1209
      %v1242 = vunpack.c.l.b16 %v1210
      %v1243 = vunpack.c.l.b16 %v1211
      %v1244 = vunpack.c.l.b16 %v1212
      %v1245 = vpack.c.b16 %v1230, %v1229
      %v1246 = vpack.c.b16 %v1232, %v1231
      %v1247 = vpack.c.b16 %v1234, %v1233
      %v1248 = vpack.c.b16 %v1236, %v1235
      %v1249 = vpack.c.b16 %v1238, %v1237
      %v1250 = vpack.c.b16 %v1240, %v1239
      %v1251 = vpack.c.b16 %v1242, %v1241
      %v1252 = vpack.c.b16 %v1244, %v1243
      %1261 = vmatprep.subr.bf16.mxu0 0
      %1262 = vmatpush1.bf16.msra.mxu0 %v1245
      %1263 = vmatprep.subr.bf16.mxu0 0
      %1264 = vmatpush1.bf16.msra.mxu0 %v1246
      %1265 = vmatprep.subr.bf16.mxu0 0
      %1266 = vmatpush1.bf16.msra.mxu0 %v1247
      %1267 = vmatprep.subr.bf16.mxu0 0
      %1268 = vmatpush1.bf16.msra.mxu0 %v1248
      %1269 = vmatprep.subr.bf16.mxu0 0
      %1270 = vmatpush1.bf16.msra.mxu0 %v1249
      %1271 = vmatprep.subr.bf16.mxu0 0
      %1272 = vmatpush1.bf16.msra.mxu0 %v1250
      %1273 = vmatprep.subr.bf16.mxu0 0
      %1274 = vmatpush1.bf16.msra.mxu0 %v1251
      %1275 = vmatprep.subr.bf16.mxu0 0
      %1276 = vmatpush1.bf16.msra.mxu0 %v1252
      %1277 = vmatprep.subr.bf16.mxu0 0
      %1278 = vmatpush1.bf16.msra.mxu0 0
      %1279 = vmatprep.subr.bf16.mxu0 0
      %1280 = vmatpush1.bf16.msra.mxu0 0
      %1281 = vmatprep.subr.bf16.mxu0 0
      %1282 = vmatpush1.bf16.msra.mxu0 0
      %1283 = vmatprep.subr.bf16.mxu0 0
      %1284 = vmatpush1.bf16.msra.mxu0 0
      %1285 = vmatprep.subr.bf16.mxu0 0
      %1286 = vmatpush1.bf16.msra.mxu0 0
      %1287 = vmatprep.subr.bf16.mxu0 0
      %1288 = vmatpush1.bf16.msra.mxu0 0
      %1289 = vmatprep.subr.bf16.mxu0 0
      %1290 = vmatpush1.bf16.msra.mxu0 0
      %1291 = vmatprep.subr.bf16.mxu0 0
      %1292 = vmatpush1.bf16.msra.mxu0 0
      %1293 = vmatprep.mubr.bf16.mxu0 0
      %1294 = vmatmul.mubr.bf16.gmra.mrb[0].mxu0 %v1178
      %v1295 = vpop.f32.mrb[0].mxu0
      %v1296 = vadd.f32 0.0, %v1295
      %v1297 = vpop.f32.mrb[0].mxu0
      %v1298 = vpop.f32.mrb[0].mxu0
      %v1299 = vadd.f32 0.0, %v1298
      %v1300 = vpop.f32.mrb[0].mxu0
      %1301 = vmatprep.mubr.bf16.mxu0 0
      %1302 = vmatmul.mubr.bf16.gmra.mrb[0].mxu0 %v1179
      %v1303 = vpop.f32.mrb[0].mxu0
      %v1304 = vadd.f32 0.0, %v1303
      %v1305 = vpop.f32.mrb[0].mxu0
      %v1306 = vpop.f32.mrb[0].mxu0
      %v1307 = vadd.f32 0.0, %v1306
      %v1308 = vpop.f32.mrb[0].mxu0
      %1309 = vmatprep.mubr.bf16.mxu0 0
      %1310 = vmatmul.mubr.bf16.gmra.mrb[0].mxu0 %v1180
      %v1311 = vpop.f32.mrb[0].mxu0
      %v1312 = vadd.f32 0.0, %v1311
      %v1313 = vpop.f32.mrb[0].mxu0
      %v1314 = vpop.f32.mrb[0].mxu0
      %v1315 = vadd.f32 0.0, %v1314
      %v1316 = vpop.f32.mrb[0].mxu0
      %1317 = vmatprep.mubr.bf16.mxu0 0
      %1318 = vmatmul.mubr.bf16.gmra.mrb[0].mxu0 %v1181
      %v1319 = vpop.f32.mrb[0].mxu0
      %v1320 = vadd.f32 0.0, %v1319
      %v1321 = vpop.f32.mrb[0].mxu0
      %v1322 = vpop.f32.mrb[0].mxu0
      %v1323 = vadd.f32 0.0, %v1322
      %v1324 = vpop.f32.mrb[0].mxu0
      %1325 = vmatprep.mubr.bf16.mxu0 0
      %1326 = vmatmul.mubr.bf16.gmra.mrb[0].mxu0 %v1182
      %v1327 = vpop.f32.mrb[0].mxu0
      %v1328 = vadd.f32 0.0, %v1327
      %v1329 = vpop.f32.mrb[0].mxu0
      %v1330 = vpop.f32.mrb[0].mxu0
      %v1331 = vadd.f32 0.0, %v1330
      %v1332 = vpop.f32.mrb[0].mxu0
      %1333 = vmatprep.mubr.bf16.mxu0 0
      %1334 = vmatmul.mubr.bf16.gmra.mrb[0].mxu0 %v1183
      %v1335 = vpop.f32.mrb[0].mxu0
      %v1336 = vadd.f32 0.0, %v1335
      %v1337 = vpop.f32.mrb[0].mxu0
      %v1338 = vpop.f32.mrb[0].mxu0
      %v1339 = vadd.f32 0.0, %v1338
      %v1340 = vpop.f32.mrb[0].mxu0
      %1341 = vmatprep.mubr.bf16.mxu0 0
      %1342 = vmatmul.mubr.bf16.gmra.mrb[0].mxu0 %v1184
      %v1343 = vpop.f32.mrb[0].mxu0
      %v1344 = vadd.f32 0.0, %v1343
      %v1345 = vpop.f32.mrb[0].mxu0
      %v1346 = vpop.f32.mrb[0].mxu0
      %v1347 = vadd.f32 0.0, %v1346
      %v1348 = vpop.f32.mrb[0].mxu0
      %1349 = vmatprep.mubr.bf16.mxu0 0
      %1350 = vmatmul.mubr.bf16.gmra.mrb[0].mxu0 %v1185
      %v1351 = vpop.f32.mrb[0].mxu0
      %v1352 = vadd.f32 0.0, %v1351
      %v1353 = vpop.f32.mrb[0].mxu0
      %v1354 = vpop.f32.mrb[0].mxu0
      %v1355 = vadd.f32 0.0, %v1354
      %v1356 = vpop.f32.mrb[0].mxu0
      %1357 = vmatprep.mubr.bf16.mxu0 0
      %1358 = vmatmul.mubr.bf16.gmra.mrb[0].mxu0 %v1186
      %v1359 = vpop.f32.mrb[0].mxu0
      %v1360 = vadd.f32 0.0, %v1359
      %v1361 = vpop.f32.mrb[0].mxu0
      %v1362 = vpop.f32.mrb[0].mxu0
      %v1363 = vadd.f32 0.0, %v1362
      %v1364 = vpop.f32.mrb[0].mxu0
      %1365 = vmatprep.mubr.bf16.mxu0 0
      %1366 = vmatmul.mubr.bf16.gmra.mrb[0].mxu0 %v1187
      %v1367 = vpop.f32.mrb[0].mxu0
      %v1368 = vadd.f32 0.0, %v1367
      %v1369 = vpop.f32.mrb[0].mxu0
      %v1370 = vpop.f32.mrb[0].mxu0
      %v1371 = vadd.f32 0.0, %v1370
      %v1372 = vpop.f32.mrb[0].mxu0
      %1373 = vmatprep.mubr.bf16.mxu0 0
      %1374 = vmatmul.mubr.bf16.gmra.mrb[0].mxu0 %v1188
      %v1375 = vpop.f32.mrb[0].mxu0
      %v1376 = vadd.f32 0.0, %v1375
      %v1377 = vpop.f32.mrb[0].mxu0
      %v1378 = vpop.f32.mrb[0].mxu0
      %v1379 = vadd.f32 0.0, %v1378
      %v1380 = vpop.f32.mrb[0].mxu0
      %1381 = vmatprep.mubr.bf16.mxu0 0
      %1382 = vmatmul.mubr.bf16.gmra.mrb[0].mxu0 %v1189
      %v1383 = vpop.f32.mrb[0].mxu0
      %v1384 = vadd.f32 0.0, %v1383
      %v1385 = vpop.f32.mrb[0].mxu0
      %v1386 = vpop.f32.mrb[0].mxu0
      %v1387 = vadd.f32 0.0, %v1386
      %v1388 = vpop.f32.mrb[0].mxu0
      %1389 = vmatprep.mubr.bf16.mxu0 0
      %1390 = vmatmul.mubr.bf16.gmra.mrb[0].mxu0 %v1190
      %v1391 = vpop.f32.mrb[0].mxu0
      %v1392 = vadd.f32 0.0, %v1391
      %v1393 = vpop.f32.mrb[0].mxu0
      %v1394 = vpop.f32.mrb[0].mxu0
      %v1395 = vadd.f32 0.0, %v1394
      %v1396 = vpop.f32.mrb[0].mxu0
      %1397 = vmatprep.mubr.bf16.mxu0 0
      %1398 = vmatmul.mubr.bf16.gmra.mrb[0].mxu0 %v1191
      %v1399 = vpop.f32.mrb[0].mxu0
      %v1400 = vadd.f32 0.0, %v1399
      %v1401 = vpop.f32.mrb[0].mxu0
      %v1402 = vpop.f32.mrb[0].mxu0
      %v1403 = vadd.f32 0.0, %v1402
      %v1404 = vpop.f32.mrb[0].mxu0
      %1405 = vmatprep.mubr.bf16.mxu0 0
      %1406 = vmatmul.mubr.bf16.gmra.mrb[0].mxu0 %v1192
      %v1407 = vpop.f32.mrb[0].mxu0
      %v1408 = vadd.f32 0.0, %v1407
      %v1409 = vpop.f32.mrb[0].mxu0
      %v1410 = vpop.f32.mrb[0].mxu0
      %v1411 = vadd.f32 0.0, %v1410
      %v1412 = vpop.f32.mrb[0].mxu0
      %1413 = vmatprep.mubr.bf16.mxu0 0
      %1414 = vmatmul.mubr.bf16.gmra.mrb[0].mxu0 %v1193
      %v1415 = vpop.f32.mrb[0].mxu0
      %v1416 = vadd.f32 0.0, %v1415
      %v1417 = vpop.f32.mrb[0].mxu0
      %v1418 = vpop.f32.mrb[0].mxu0
      %v1419 = vadd.f32 0.0, %v1418
      %v1420 = vpop.f32.mrb[0].mxu0
      %1421 = vmatprep.mubr.bf16.mxu0 0
      %1422 = vmatmul.mubr.bf16.gmra.mrb[0].mxu0 %v1194
      %v1423 = vpop.f32.mrb[0].mxu0
      %v1424 = vadd.f32 0.0, %v1423
      %v1425 = vpop.f32.mrb[0].mxu0
      %v1426 = vpop.f32.mrb[0].mxu0
      %v1427 = vadd.f32 0.0, %v1426
      %v1428 = vpop.f32.mrb[0].mxu0
      %1429 = vmatprep.mubr.bf16.mxu0 0
      %1430 = vmatmul.mubr.bf16.gmra.mrb[0].mxu0 %v1195
      %v1431 = vpop.f32.mrb[0].mxu0
      %v1432 = vadd.f32 0.0, %v1431
      %v1433 = vpop.f32.mrb[0].mxu0
      %v1434 = vpop.f32.mrb[0].mxu0
      %v1435 = vadd.f32 0.0, %v1434
      %v1436 = vpop.f32.mrb[0].mxu0
      %1437 = vdwg.mxu0
      %v1438 = vadd.f32 %v1106, %v1296
      %v1439 = vadd.f32 %v1107, %v1299
      %v1440 = vadd.f32 %v1108, %v1304
      %v1441 = vadd.f32 %v1109, %v1307
      %v1442 = vadd.f32 %v1110, %v1312
      %v1443 = vadd.f32 %v1111, %v1315
      %v1444 = vadd.f32 %v1112, %v1320
      %v1445 = vadd.f32 %v1113, %v1323
      %v1446 = vadd.f32 %v1114, %v1328
      %v1447 = vadd.f32 %v1115, %v1331
      %v1448 = vadd.f32 %v1116, %v1336
      %v1449 = vadd.f32 %v1117, %v1339
      %v1450 = vadd.f32 %v1118, %v1344
      %v1451 = vadd.f32 %v1119, %v1347
      %v1452 = vadd.f32 %v1120, %v1352
      %v1453 = vadd.f32 %v1121, %v1355
      %v1454 = vadd.f32 %v1122, %v1360
      %v1455 = vadd.f32 %v1123, %v1363
      %v1456 = vadd.f32 %v1124, %v1368
      %v1457 = vadd.f32 %v1125, %v1371
      %v1458 = vadd.f32 %v1126, %v1376
      %v1459 = vadd.f32 %v1127, %v1379
      %v1460 = vadd.f32 %v1128, %v1384
      %v1461 = vadd.f32 %v1129, %v1387
      %v1462 = vadd.f32 %v1130, %v1392
      %v1463 = vadd.f32 %v1131, %v1395
      %v1464 = vadd.f32 %v1132, %v1400
      %v1465 = vadd.f32 %v1133, %v1403
      %v1466 = vadd.f32 %v1134, %v1408
      %v1467 = vadd.f32 %v1135, %v1411
      %v1468 = vadd.f32 %v1136, %v1416
      %v1469 = vadd.f32 %v1137, %v1419
      %v1470 = vadd.f32 %v1138, %v1424
      %v1471 = vadd.f32 %v1139, %v1427
      %v1472 = vadd.f32 %v1140, %v1432
      %v1473 = vadd.f32 %v1141, %v1435
      %v1474 = vld [vmem:[%s207 + $0x13] sm:$0xff]
      %v1475 = vld [vmem:[%s207 + $0x1b] sm:$0xff]
      %v1476 = vld [vmem:[%s207 + $0x23] sm:$0xff]
      %v1477 = vld [vmem:[%s207 + $0x2b] sm:$0xff]
      %v1478 = vld [vmem:[%s207 + $0x33] sm:$0xff]
      %v1479 = vld [vmem:[%s207 + $0x3b] sm:$0xff]
      %v1480 = vld [vmem:[%s207 + $0x43] sm:$0xff]
      %v1481 = vld [vmem:[%s207 + $0x4b] sm:$0xff]
      %v1482 = vld [vmem:[%s207 + $0x53] sm:$0xff]
      %v1483 = vld [vmem:[%s207 + $0x5b] sm:$0xff]
      %v1484 = vld [vmem:[%s207 + $0x63] sm:$0xff]
      %v1485 = vld [vmem:[%s207 + $0x6b] sm:$0xff]
      %v1486 = vld [vmem:[%s207 + $0x73] sm:$0xff]
      %v1487 = vld [vmem:[%s207 + $0x7b] sm:$0xff]
      %v1488 = vld [vmem:[%s207 + $0x83] sm:$0xff]
      %v1489 = vld [vmem:[%s207 + $0x8b] sm:$0xff]
      %v1490 = vld [vmem:[%s207 + $0x93] sm:$0xff]
      %v1491 = vld [vmem:[%s207 + $0x9b] sm:$0xff]
      %v1492 = vld [vmem:[%s207 + $0xa3] sm:$0xff]
      %v1493 = vld [vmem:[%s207 + $0xab] sm:$0xff]
      %v1494 = vld [vmem:[%s207 + $0xb3] sm:$0xff]
      %v1495 = vld [vmem:[%s207 + $0xbb] sm:$0xff]
      %v1496 = vld [vmem:[%s207 + $0xc3] sm:$0xff]
      %v1497 = vld [vmem:[%s207 + $0xcb] sm:$0xff]
      %v1498 = vld [vmem:[%s207 + $0xd3] sm:$0xff]
      %v1499 = vld [vmem:[%s207 + $0xdb] sm:$0xff]
      %v1500 = vld [vmem:[%s207 + $0xe3] sm:$0xff]
      %v1501 = vld [vmem:[%s207 + $0xeb] sm:$0xff]
      %v1502 = vld [vmem:[%s207 + $0xf3] sm:$0xff]
      %v1503 = vld [vmem:[%s207 + $0xfb] sm:$0xff]
      %v1504 = vld [vmem:[%s207 + $0x103] sm:$0xff]
      %v1505 = vld [vmem:[%s207 + $0x10b] sm:$0xff]
      %v1506 = vld [vmem:[%s207 + $0x113] sm:$0xff]
      %v1507 = vld [vmem:[%s207 + $0x11b] sm:$0xff]
      %v1508 = vld [vmem:[%s207 + $0x123] sm:$0xff]
      %v1509 = vld [vmem:[%s207 + $0x12b] sm:$0xff]
      %v1510 = vpack.c.bf16 %v1475, %v1474
      %v1511 = vpack.c.bf16 %v1477, %v1476
      %v1512 = vpack.c.bf16 %v1479, %v1478
      %v1513 = vpack.c.bf16 %v1481, %v1480
      %v1514 = vpack.c.bf16 %v1483, %v1482
      %v1515 = vpack.c.bf16 %v1485, %v1484
      %v1516 = vpack.c.bf16 %v1487, %v1486
      %v1517 = vpack.c.bf16 %v1489, %v1488
      %v1518 = vpack.c.bf16 %v1491, %v1490
      %v1519 = vpack.c.bf16 %v1493, %v1492
      %v1520 = vpack.c.bf16 %v1495, %v1494
      %v1521 = vpack.c.bf16 %v1497, %v1496
      %v1522 = vpack.c.bf16 %v1499, %v1498
      %v1523 = vpack.c.bf16 %v1501, %v1500
      %v1524 = vpack.c.bf16 %v1503, %v1502
      %v1525 = vpack.c.bf16 %v1505, %v1504
      %v1526 = vpack.c.bf16 %v1507, %v1506
      %v1527 = vpack.c.bf16 %v1509, %v1508
      %s1528 = scalar_lea.vmem %s1, 256
      %v1529 = vld [vmem:[%s1528] sm:$0xf]
      %v1530 = vld [vmem:[%s1528 + $0x4] sm:$0xf]
      %v1531 = vld [vmem:[%s1528 + $0x8] sm:$0xf]
      %v1532 = vld [vmem:[%s1528 + $0xc] sm:$0xf]
      %v1533 = vld [vmem:[%s1528 + $0x10] sm:$0xf]
      %v1534 = vld [vmem:[%s1528 + $0x14] sm:$0xf]
      %v1535 = vld [vmem:[%s1528 + $0x18] sm:$0xf]
      %v1536 = vld [vmem:[%s1528 + $0x1c] sm:$0xf]
      %v1537 = vld [vmem:[%s1528 + $0x20] sm:$0xf]
      %v1538 = vld [vmem:[%s1528 + $0x24] sm:$0xf]
      %v1539 = vld [vmem:[%s1528 + $0x28] sm:$0xf]
      %v1540 = vld [vmem:[%s1528 + $0x2c] sm:$0xf]
      %v1541 = vld [vmem:[%s1528 + $0x30] sm:$0xf]
      %v1542 = vld [vmem:[%s1528 + $0x34] sm:$0xf]
      %v1543 = vld [vmem:[%s1528 + $0x38] sm:$0xf]
      %v1544 = vld [vmem:[%s1528 + $0x3c] sm:$0xf]
      %v1561 = vunpack.c.l.b16 %v1529
      %v1562 = vunpack.c.l.b16 %v1530
      %v1563 = vunpack.c.l.b16 %v1531
      %v1564 = vunpack.c.l.b16 %v1532
      %v1565 = vunpack.c.l.b16 %v1533
      %v1566 = vunpack.c.l.b16 %v1534
      %v1567 = vunpack.c.l.b16 %v1535
      %v1568 = vunpack.c.l.b16 %v1536
      %v1569 = vunpack.c.l.b16 %v1537
      %v1570 = vunpack.c.l.b16 %v1538
      %v1571 = vunpack.c.l.b16 %v1539
      %v1572 = vunpack.c.l.b16 %v1540
      %v1573 = vunpack.c.l.b16 %v1541
      %v1574 = vunpack.c.l.b16 %v1542
      %v1575 = vunpack.c.l.b16 %v1543
      %v1576 = vunpack.c.l.b16 %v1544
      %v1577 = vpack.c.b16 %v1562, %v1561
      %v1578 = vpack.c.b16 %v1564, %v1563
      %v1579 = vpack.c.b16 %v1566, %v1565
      %v1580 = vpack.c.b16 %v1568, %v1567
      %v1581 = vpack.c.b16 %v1570, %v1569
      %v1582 = vpack.c.b16 %v1572, %v1571
      %v1583 = vpack.c.b16 %v1574, %v1573
      %v1584 = vpack.c.b16 %v1576, %v1575
      %1593 = vmatprep.subr.bf16.mxu0 0
      %1594 = vmatpush1.bf16.msra.mxu0 %v1577
      %1595 = vmatprep.subr.bf16.mxu0 0
      %1596 = vmatpush1.bf16.msra.mxu0 %v1578
      %1597 = vmatprep.subr.bf16.mxu0 0
      %1598 = vmatpush1.bf16.msra.mxu0 %v1579
      %1599 = vmatprep.subr.bf16.mxu0 0
      %1600 = vmatpush1.bf16.msra.mxu0 %v1580
      %1601 = vmatprep.subr.bf16.mxu0 0
      %1602 = vmatpush1.bf16.msra.mxu0 %v1581
      %1603 = vmatprep.subr.bf16.mxu0 0
      %1604 = vmatpush1.bf16.msra.mxu0 %v1582
      %1605 = vmatprep.subr.bf16.mxu0 0
      %1606 = vmatpush1.bf16.msra.mxu0 %v1583
      %1607 = vmatprep.subr.bf16.mxu0 0
      %1608 = vmatpush1.bf16.msra.mxu0 %v1584
      %1609 = vmatprep.subr.bf16.mxu0 0
      %1610 = vmatpush1.bf16.msra.mxu0 0
      %1611 = vmatprep.subr.bf16.mxu0 0
      %1612 = vmatpush1.bf16.msra.mxu0 0
      %1613 = vmatprep.subr.bf16.mxu0 0
      %1614 = vmatpush1.bf16.msra.mxu0 0
      %1615 = vmatprep.subr.bf16.mxu0 0
      %1616 = vmatpush1.bf16.msra.mxu0 0
      %1617 = vmatprep.subr.bf16.mxu0 0
      %1618 = vmatpush1.bf16.msra.mxu0 0
      %1619 = vmatprep.subr.bf16.mxu0 0
      %1620 = vmatpush1.bf16.msra.mxu0 0
      %1621 = vmatprep.subr.bf16.mxu0 0
      %1622 = vmatpush1.bf16.msra.mxu0 0
      %1623 = vmatprep.subr.bf16.mxu0 0
      %1624 = vmatpush1.bf16.msra.mxu0 0
      %1625 = vmatprep.mubr.bf16.mxu0 0
      %1626 = vmatmul.mubr.bf16.gmra.mrb[0].mxu0 %v1510
      %v1627 = vpop.f32.mrb[0].mxu0
      %v1628 = vadd.f32 0.0, %v1627
      %v1629 = vpop.f32.mrb[0].mxu0
      %v1630 = vpop.f32.mrb[0].mxu0
      %v1631 = vadd.f32 0.0, %v1630
      %v1632 = vpop.f32.mrb[0].mxu0
      %1633 = vmatprep.mubr.bf16.mxu0 0
      %1634 = vmatmul.mubr.bf16.gmra.mrb[0].mxu0 %v1511
      %v1635 = vpop.f32.mrb[0].mxu0
      %v1636 = vadd.f32 0.0, %v1635
      %v1637 = vpop.f32.mrb[0].mxu0
      %v1638 = vpop.f32.mrb[0].mxu0
      %v1639 = vadd.f32 0.0, %v1638
      %v1640 = vpop.f32.mrb[0].mxu0
      %1641 = vmatprep.mubr.bf16.mxu0 0
      %1642 = vmatmul.mubr.bf16.gmra.mrb[0].mxu0 %v1512
      %v1643 = vpop.f32.mrb[0].mxu0
      %v1644 = vadd.f32 0.0, %v1643
      %v1645 = vpop.f32.mrb[0].mxu0
      %v1646 = vpop.f32.mrb[0].mxu0
      %v1647 = vadd.f32 0.0, %v1646
      %v1648 = vpop.f32.mrb[0].mxu0
      %1649 = vmatprep.mubr.bf16.mxu0 0
      %1650 = vmatmul.mubr.bf16.gmra.mrb[0].mxu0 %v1513
      %v1651 = vpop.f32.mrb[0].mxu0
      %v1652 = vadd.f32 0.0, %v1651
      %v1653 = vpop.f32.mrb[0].mxu0
      %v1654 = vpop.f32.mrb[0].mxu0
      %v1655 = vadd.f32 0.0, %v1654
      %v1656 = vpop.f32.mrb[0].mxu0
      %1657 = vmatprep.mubr.bf16.mxu0 0
      %1658 = vmatmul.mubr.bf16.gmra.mrb[0].mxu0 %v1514
      %v1659 = vpop.f32.mrb[0].mxu0
      %v1660 = vadd.f32 0.0, %v1659
      %v1661 = vpop.f32.mrb[0].mxu0
      %v1662 = vpop.f32.mrb[0].mxu0
      %v1663 = vadd.f32 0.0, %v1662
      %v1664 = vpop.f32.mrb[0].mxu0
      %1665 = vmatprep.mubr.bf16.mxu0 0
      %1666 = vmatmul.mubr.bf16.gmra.mrb[0].mxu0 %v1515
      %v1667 = vpop.f32.mrb[0].mxu0
      %v1668 = vadd.f32 0.0, %v1667
      %v1669 = vpop.f32.mrb[0].mxu0
      %v1670 = vpop.f32.mrb[0].mxu0
      %v1671 = vadd.f32 0.0, %v1670
      %v1672 = vpop.f32.mrb[0].mxu0
      %1673 = vmatprep.mubr.bf16.mxu0 0
      %1674 = vmatmul.mubr.bf16.gmra.mrb[0].mxu0 %v1516
      %v1675 = vpop.f32.mrb[0].mxu0
      %v1676 = vadd.f32 0.0, %v1675
      %v1677 = vpop.f32.mrb[0].mxu0
      %v1678 = vpop.f32.mrb[0].mxu0
      %v1679 = vadd.f32 0.0, %v1678
      %v1680 = vpop.f32.mrb[0].mxu0
      %1681 = vmatprep.mubr.bf16.mxu0 0
      %1682 = vmatmul.mubr.bf16.gmra.mrb[0].mxu0 %v1517
      %v1683 = vpop.f32.mrb[0].mxu0
      %v1684 = vadd.f32 0.0, %v1683
      %v1685 = vpop.f32.mrb[0].mxu0
      %v1686 = vpop.f32.mrb[0].mxu0
      %v1687 = vadd.f32 0.0, %v1686
      %v1688 = vpop.f32.mrb[0].mxu0
      %1689 = vmatprep.mubr.bf16.mxu0 0
      %1690 = vmatmul.mubr.bf16.gmra.mrb[0].mxu0 %v1518
      %v1691 = vpop.f32.mrb[0].mxu0
      %v1692 = vadd.f32 0.0, %v1691
      %v1693 = vpop.f32.mrb[0].mxu0
      %v1694 = vpop.f32.mrb[0].mxu0
      %v1695 = vadd.f32 0.0, %v1694
      %v1696 = vpop.f32.mrb[0].mxu0
      %1697 = vmatprep.mubr.bf16.mxu0 0
      %1698 = vmatmul.mubr.bf16.gmra.mrb[0].mxu0 %v1519
      %v1699 = vpop.f32.mrb[0].mxu0
      %v1700 = vadd.f32 0.0, %v1699
      %v1701 = vpop.f32.mrb[0].mxu0
      %v1702 = vpop.f32.mrb[0].mxu0
      %v1703 = vadd.f32 0.0, %v1702
      %v1704 = vpop.f32.mrb[0].mxu0
      %1705 = vmatprep.mubr.bf16.mxu0 0
      %1706 = vmatmul.mubr.bf16.gmra.mrb[0].mxu0 %v1520
      %v1707 = vpop.f32.mrb[0].mxu0
      %v1708 = vadd.f32 0.0, %v1707
      %v1709 = vpop.f32.mrb[0].mxu0
      %v1710 = vpop.f32.mrb[0].mxu0
      %v1711 = vadd.f32 0.0, %v1710
      %v1712 = vpop.f32.mrb[0].mxu0
      %1713 = vmatprep.mubr.bf16.mxu0 0
      %1714 = vmatmul.mubr.bf16.gmra.mrb[0].mxu0 %v1521
      %v1715 = vpop.f32.mrb[0].mxu0
      %v1716 = vadd.f32 0.0, %v1715
      %v1717 = vpop.f32.mrb[0].mxu0
      %v1718 = vpop.f32.mrb[0].mxu0
      %v1719 = vadd.f32 0.0, %v1718
      %v1720 = vpop.f32.mrb[0].mxu0
      %1721 = vmatprep.mubr.bf16.mxu0 0
      %1722 = vmatmul.mubr.bf16.gmra.mrb[0].mxu0 %v1522
      %v1723 = vpop.f32.mrb[0].mxu0
      %v1724 = vadd.f32 0.0, %v1723
      %v1725 = vpop.f32.mrb[0].mxu0
      %v1726 = vpop.f32.mrb[0].mxu0
      %v1727 = vadd.f32 0.0, %v1726
      %v1728 = vpop.f32.mrb[0].mxu0
      %1729 = vmatprep.mubr.bf16.mxu0 0
      %1730 = vmatmul.mubr.bf16.gmra.mrb[0].mxu0 %v1523
      %v1731 = vpop.f32.mrb[0].mxu0
      %v1732 = vadd.f32 0.0, %v1731
      %v1733 = vpop.f32.mrb[0].mxu0
      %v1734 = vpop.f32.mrb[0].mxu0
      %v1735 = vadd.f32 0.0, %v1734
      %v1736 = vpop.f32.mrb[0].mxu0
      %1737 = vmatprep.mubr.bf16.mxu0 0
      %1738 = vmatmul.mubr.bf16.gmra.mrb[0].mxu0 %v1524
      %v1739 = vpop.f32.mrb[0].mxu0
      %v1740 = vadd.f32 0.0, %v1739
      %v1741 = vpop.f32.mrb[0].mxu0
      %v1742 = vpop.f32.mrb[0].mxu0
      %v1743 = vadd.f32 0.0, %v1742
      %v1744 = vpop.f32.mrb[0].mxu0
      %1745 = vmatprep.mubr.bf16.mxu0 0
      %1746 = vmatmul.mubr.bf16.gmra.mrb[0].mxu0 %v1525
      %v1747 = vpop.f32.mrb[0].mxu0
      %v1748 = vadd.f32 0.0, %v1747
      %v1749 = vpop.f32.mrb[0].mxu0
      %v1750 = vpop.f32.mrb[0].mxu0
      %v1751 = vadd.f32 0.0, %v1750
      %v1752 = vpop.f32.mrb[0].mxu0
      %1753 = vmatprep.mubr.bf16.mxu0 0
      %1754 = vmatmul.mubr.bf16.gmra.mrb[0].mxu0 %v1526
      %v1755 = vpop.f32.mrb[0].mxu0
      %v1756 = vadd.f32 0.0, %v1755
      %v1757 = vpop.f32.mrb[0].mxu0
      %v1758 = vpop.f32.mrb[0].mxu0
      %v1759 = vadd.f32 0.0, %v1758
      %v1760 = vpop.f32.mrb[0].mxu0
      %1761 = vmatprep.mubr.bf16.mxu0 0
      %1762 = vmatmul.mubr.bf16.gmra.mrb[0].mxu0 %v1527
      %v1763 = vpop.f32.mrb[0].mxu0
      %v1764 = vadd.f32 0.0, %v1763
      %v1765 = vpop.f32.mrb[0].mxu0
      %v1766 = vpop.f32.mrb[0].mxu0
      %v1767 = vadd.f32 0.0, %v1766
      %v1768 = vpop.f32.mrb[0].mxu0
      %1769 = vdwg.mxu0
      %v1770 = vadd.f32 %v1438, %v1628
      %v1771 = vadd.f32 %v1439, %v1631
      %v1772 = vadd.f32 %v1440, %v1636
      %v1773 = vadd.f32 %v1441, %v1639
      %v1774 = vadd.f32 %v1442, %v1644
      %v1775 = vadd.f32 %v1443, %v1647
      %v1776 = vadd.f32 %v1444, %v1652
      %v1777 = vadd.f32 %v1445, %v1655
      %v1778 = vadd.f32 %v1446, %v1660
      %v1779 = vadd.f32 %v1447, %v1663
      %v1780 = vadd.f32 %v1448, %v1668
      %v1781 = vadd.f32 %v1449, %v1671
      %v1782 = vadd.f32 %v1450, %v1676
      %v1783 = vadd.f32 %v1451, %v1679
      %v1784 = vadd.f32 %v1452, %v1684
      %v1785 = vadd.f32 %v1453, %v1687
      %v1786 = vadd.f32 %v1454, %v1692
      %v1787 = vadd.f32 %v1455, %v1695
      %v1788 = vadd.f32 %v1456, %v1700
      %v1789 = vadd.f32 %v1457, %v1703
      %v1790 = vadd.f32 %v1458, %v1708
      %v1791 = vadd.f32 %v1459, %v1711
      %v1792 = vadd.f32 %v1460, %v1716
      %v1793 = vadd.f32 %v1461, %v1719
      %v1794 = vadd.f32 %v1462, %v1724
      %v1795 = vadd.f32 %v1463, %v1727
      %v1796 = vadd.f32 %v1464, %v1732
      %v1797 = vadd.f32 %v1465, %v1735
      %v1798 = vadd.f32 %v1466, %v1740
      %v1799 = vadd.f32 %v1467, %v1743
      %v1800 = vadd.f32 %v1468, %v1748
      %v1801 = vadd.f32 %v1469, %v1751
      %v1802 = vadd.f32 %v1470, %v1756
      %v1803 = vadd.f32 %v1471, %v1759
      %v1804 = vadd.f32 %v1472, %v1764
      %v1805 = vadd.f32 %v1473, %v1767
      %v1806 = vld [vmem:[%s207 + $0x14] sm:$0xff]
      %v1807 = vld [vmem:[%s207 + $0x1c] sm:$0xff]
      %v1808 = vld [vmem:[%s207 + $0x24] sm:$0xff]
      %v1809 = vld [vmem:[%s207 + $0x2c] sm:$0xff]
      %v1810 = vld [vmem:[%s207 + $0x34] sm:$0xff]
      %v1811 = vld [vmem:[%s207 + $0x3c] sm:$0xff]
      %v1812 = vld [vmem:[%s207 + $0x44] sm:$0xff]
      %v1813 = vld [vmem:[%s207 + $0x4c] sm:$0xff]
      %v1814 = vld [vmem:[%s207 + $0x54] sm:$0xff]
      %v1815 = vld [vmem:[%s207 + $0x5c] sm:$0xff]
      %v1816 = vld [vmem:[%s207 + $0x64] sm:$0xff]
      %v1817 = vld [vmem:[%s207 + $0x6c] sm:$0xff]
      %v1818 = vld [vmem:[%s207 + $0x74] sm:$0xff]
      %v1819 = vld [vmem:[%s207 + $0x7c] sm:$0xff]
      %v1820 = vld [vmem:[%s207 + $0x84] sm:$0xff]
      %v1821 = vld [vmem:[%s207 + $0x8c] sm:$0xff]
      %v1822 = vld [vmem:[%s207 + $0x94] sm:$0xff]
      %v1823 = vld [vmem:[%s207 + $0x9c] sm:$0xff]
      %v1824 = vld [vmem:[%s207 + $0xa4] sm:$0xff]
      %v1825 = vld [vmem:[%s207 + $0xac] sm:$0xff]
      %v1826 = vld [vmem:[%s207 + $0xb4] sm:$0xff]
      %v1827 = vld [vmem:[%s207 + $0xbc] sm:$0xff]
      %v1828 = vld [vmem:[%s207 + $0xc4] sm:$0xff]
      %v1829 = vld [vmem:[%s207 + $0xcc] sm:$0xff]
      %v1830 = vld [vmem:[%s207 + $0xd4] sm:$0xff]
      %v1831 = vld [vmem:[%s207 + $0xdc] sm:$0xff]
      %v1832 = vld [vmem:[%s207 + $0xe4] sm:$0xff]
      %v1833 = vld [vmem:[%s207 + $0xec] sm:$0xff]
      %v1834 = vld [vmem:[%s207 + $0xf4] sm:$0xff]
      %v1835 = vld [vmem:[%s207 + $0xfc] sm:$0xff]
      %v1836 = vld [vmem:[%s207 + $0x104] sm:$0xff]
      %v1837 = vld [vmem:[%s207 + $0x10c] sm:$0xff]
      %v1838 = vld [vmem:[%s207 + $0x114] sm:$0xff]
      %v1839 = vld [vmem:[%s207 + $0x11c] sm:$0xff]
      %v1840 = vld [vmem:[%s207 + $0x124] sm:$0xff]
      %v1841 = vld [vmem:[%s207 + $0x12c] sm:$0xff]
      %v1842 = vpack.c.bf16 %v1807, %v1806
      %v1843 = vpack.c.bf16 %v1809, %v1808
      %v1844 = vpack.c.bf16 %v1811, %v1810
      %v1845 = vpack.c.bf16 %v1813, %v1812
      %v1846 = vpack.c.bf16 %v1815, %v1814
      %v1847 = vpack.c.bf16 %v1817, %v1816
      %v1848 = vpack.c.bf16 %v1819, %v1818
      %v1849 = vpack.c.bf16 %v1821, %v1820
      %v1850 = vpack.c.bf16 %v1823, %v1822
      %v1851 = vpack.c.bf16 %v1825, %v1824
      %v1852 = vpack.c.bf16 %v1827, %v1826
      %v1853 = vpack.c.bf16 %v1829, %v1828
      %v1854 = vpack.c.bf16 %v1831, %v1830
      %v1855 = vpack.c.bf16 %v1833, %v1832
      %v1856 = vpack.c.bf16 %v1835, %v1834
      %v1857 = vpack.c.bf16 %v1837, %v1836
      %v1858 = vpack.c.bf16 %v1839, %v1838
      %v1859 = vpack.c.bf16 %v1841, %v1840
      %s1860 = scalar_lea.vmem %s1, 320
      %v1861 = vld [vmem:[%s1860] sm:$0xf]
      %v1862 = vld [vmem:[%s1860 + $0x4] sm:$0xf]
      %v1863 = vld [vmem:[%s1860 + $0x8] sm:$0xf]
      %v1864 = vld [vmem:[%s1860 + $0xc] sm:$0xf]
      %v1865 = vld [vmem:[%s1860 + $0x10] sm:$0xf]
      %v1866 = vld [vmem:[%s1860 + $0x14] sm:$0xf]
      %v1867 = vld [vmem:[%s1860 + $0x18] sm:$0xf]
      %v1868 = vld [vmem:[%s1860 + $0x1c] sm:$0xf]
      %v1869 = vld [vmem:[%s1860 + $0x20] sm:$0xf]
      %v1870 = vld [vmem:[%s1860 + $0x24] sm:$0xf]
      %v1871 = vld [vmem:[%s1860 + $0x28] sm:$0xf]
      %v1872 = vld [vmem:[%s1860 + $0x2c] sm:$0xf]
      %v1873 = vld [vmem:[%s1860 + $0x30] sm:$0xf]
      %v1874 = vld [vmem:[%s1860 + $0x34] sm:$0xf]
      %v1875 = vld [vmem:[%s1860 + $0x38] sm:$0xf]
      %v1876 = vld [vmem:[%s1860 + $0x3c] sm:$0xf]
      %v1893 = vunpack.c.l.b16 %v1861
      %v1894 = vunpack.c.l.b16 %v1862
      %v1895 = vunpack.c.l.b16 %v1863
      %v1896 = vunpack.c.l.b16 %v1864
      %v1897 = vunpack.c.l.b16 %v1865
      %v1898 = vunpack.c.l.b16 %v1866
      %v1899 = vunpack.c.l.b16 %v1867
      %v1900 = vunpack.c.l.b16 %v1868
      %v1901 = vunpack.c.l.b16 %v1869
      %v1902 = vunpack.c.l.b16 %v1870
      %v1903 = vunpack.c.l.b16 %v1871
      %v1904 = vunpack.c.l.b16 %v1872
      %v1905 = vunpack.c.l.b16 %v1873
      %v1906 = vunpack.c.l.b16 %v1874
      %v1907 = vunpack.c.l.b16 %v1875
      %v1908 = vunpack.c.l.b16 %v1876
      %v1909 = vpack.c.b16 %v1894, %v1893
      %v1910 = vpack.c.b16 %v1896, %v1895
      %v1911 = vpack.c.b16 %v1898, %v1897
      %v1912 = vpack.c.b16 %v1900, %v1899
      %v1913 = vpack.c.b16 %v1902, %v1901
      %v1914 = vpack.c.b16 %v1904, %v1903
      %v1915 = vpack.c.b16 %v1906, %v1905
      %v1916 = vpack.c.b16 %v1908, %v1907
      %1925 = vmatprep.subr.bf16.mxu0 0
      %1926 = vmatpush1.bf16.msra.mxu0 %v1909
      %1927 = vmatprep.subr.bf16.mxu0 0
      %1928 = vmatpush1.bf16.msra.mxu0 %v1910
      %1929 = vmatprep.subr.bf16.mxu0 0
      %1930 = vmatpush1.bf16.msra.mxu0 %v1911
      %1931 = vmatprep.subr.bf16.mxu0 0
      %1932 = vmatpush1.bf16.msra.mxu0 %v1912
      %1933 = vmatprep.subr.bf16.mxu0 0
      %1934 = vmatpush1.bf16.msra.mxu0 %v1913
      %1935 = vmatprep.subr.bf16.mxu0 0
      %1936 = vmatpush1.bf16.msra.mxu0 %v1914
      %1937 = vmatprep.subr.bf16.mxu0 0
      %1938 = vmatpush1.bf16.msra.mxu0 %v1915
      %1939 = vmatprep.subr.bf16.mxu0 0
      %1940 = vmatpush1.bf16.msra.mxu0 %v1916
      %1941 = vmatprep.subr.bf16.mxu0 0
      %1942 = vmatpush1.bf16.msra.mxu0 0
      %1943 = vmatprep.subr.bf16.mxu0 0
      %1944 = vmatpush1.bf16.msra.mxu0 0
      %1945 = vmatprep.subr.bf16.mxu0 0
      %1946 = vmatpush1.bf16.msra.mxu0 0
      %1947 = vmatprep.subr.bf16.mxu0 0
      %1948 = vmatpush1.bf16.msra.mxu0 0
      %1949 = vmatprep.subr.bf16.mxu0 0
      %1950 = vmatpush1.bf16.msra.mxu0 0
      %1951 = vmatprep.subr.bf16.mxu0 0
      %1952 = vmatpush1.bf16.msra.mxu0 0
      %1953 = vmatprep.subr.bf16.mxu0 0
      %1954 = vmatpush1.bf16.msra.mxu0 0
      %1955 = vmatprep.subr.bf16.mxu0 0
      %1956 = vmatpush1.bf16.msra.mxu0 0
      %1957 = vmatprep.mubr.bf16.mxu0 0
      %1958 = vmatmul.mubr.bf16.gmra.mrb[0].mxu0 %v1842
      %v1959 = vpop.f32.mrb[0].mxu0
      %v1960 = vadd.f32 0.0, %v1959
      %v1961 = vpop.f32.mrb[0].mxu0
      %v1962 = vpop.f32.mrb[0].mxu0
      %v1963 = vadd.f32 0.0, %v1962
      %v1964 = vpop.f32.mrb[0].mxu0
      %1965 = vmatprep.mubr.bf16.mxu0 0
      %1966 = vmatmul.mubr.bf16.gmra.mrb[0].mxu0 %v1843
      %v1967 = vpop.f32.mrb[0].mxu0
      %v1968 = vadd.f32 0.0, %v1967
      %v1969 = vpop.f32.mrb[0].mxu0
      %v1970 = vpop.f32.mrb[0].mxu0
      %v1971 = vadd.f32 0.0, %v1970
      %v1972 = vpop.f32.mrb[0].mxu0
      %1973 = vmatprep.mubr.bf16.mxu0 0
      %1974 = vmatmul.mubr.bf16.gmra.mrb[0].mxu0 %v1844
      %v1975 = vpop.f32.mrb[0].mxu0
      %v1976 = vadd.f32 0.0, %v1975
      %v1977 = vpop.f32.mrb[0].mxu0
      %v1978 = vpop.f32.mrb[0].mxu0
      %v1979 = vadd.f32 0.0, %v1978
      %v1980 = vpop.f32.mrb[0].mxu0
      %1981 = vmatprep.mubr.bf16.mxu0 0
      %1982 = vmatmul.mubr.bf16.gmra.mrb[0].mxu0 %v1845
      %v1983 = vpop.f32.mrb[0].mxu0
      %v1984 = vadd.f32 0.0, %v1983
      %v1985 = vpop.f32.mrb[0].mxu0
      %v1986 = vpop.f32.mrb[0].mxu0
      %v1987 = vadd.f32 0.0, %v1986
      %v1988 = vpop.f32.mrb[0].mxu0
      %1989 = vmatprep.mubr.bf16.mxu0 0
      %1990 = vmatmul.mubr.bf16.gmra.mrb[0].mxu0 %v1846
      %v1991 = vpop.f32.mrb[0].mxu0
      %v1992 = vadd.f32 0.0, %v1991
      %v1993 = vpop.f32.mrb[0].mxu0
      %v1994 = vpop.f32.mrb[0].mxu0
      %v1995 = vadd.f32 0.0, %v1994
      %v1996 = vpop.f32.mrb[0].mxu0
      %1997 = vmatprep.mubr.bf16.mxu0 0
      %1998 = vmatmul.mubr.bf16.gmra.mrb[0].mxu0 %v1847
      %v1999 = vpop.f32.mrb[0].mxu0
      %v2000 = vadd.f32 0.0, %v1999
      %v2001 = vpop.f32.mrb[0].mxu0
      %v2002 = vpop.f32.mrb[0].mxu0
      %v2003 = vadd.f32 0.0, %v2002
      %v2004 = vpop.f32.mrb[0].mxu0
      %2005 = vmatprep.mubr.bf16.mxu0 0
      %2006 = vmatmul.mubr.bf16.gmra.mrb[0].mxu0 %v1848
      %v2007 = vpop.f32.mrb[0].mxu0
      %v2008 = vadd.f32 0.0, %v2007
      %v2009 = vpop.f32.mrb[0].mxu0
      %v2010 = vpop.f32.mrb[0].mxu0
      %v2011 = vadd.f32 0.0, %v2010
      %v2012 = vpop.f32.mrb[0].mxu0
      %2013 = vmatprep.mubr.bf16.mxu0 0
      %2014 = vmatmul.mubr.bf16.gmra.mrb[0].mxu0 %v1849
      %v2015 = vpop.f32.mrb[0].mxu0
      %v2016 = vadd.f32 0.0, %v2015
      %v2017 = vpop.f32.mrb[0].mxu0
      %v2018 = vpop.f32.mrb[0].mxu0
      %v2019 = vadd.f32 0.0, %v2018
      %v2020 = vpop.f32.mrb[0].mxu0
      %2021 = vmatprep.mubr.bf16.mxu0 0
      %2022 = vmatmul.mubr.bf16.gmra.mrb[0].mxu0 %v1850
      %v2023 = vpop.f32.mrb[0].mxu0
      %v2024 = vadd.f32 0.0, %v2023
      %v2025 = vpop.f32.mrb[0].mxu0
      %v2026 = vpop.f32.mrb[0].mxu0
      %v2027 = vadd.f32 0.0, %v2026
      %v2028 = vpop.f32.mrb[0].mxu0
      %2029 = vmatprep.mubr.bf16.mxu0 0
      %2030 = vmatmul.mubr.bf16.gmra.mrb[0].mxu0 %v1851
      %v2031 = vpop.f32.mrb[0].mxu0
      %v2032 = vadd.f32 0.0, %v2031
      %v2033 = vpop.f32.mrb[0].mxu0
      %v2034 = vpop.f32.mrb[0].mxu0
      %v2035 = vadd.f32 0.0, %v2034
      %v2036 = vpop.f32.mrb[0].mxu0
      %2037 = vmatprep.mubr.bf16.mxu0 0
      %2038 = vmatmul.mubr.bf16.gmra.mrb[0].mxu0 %v1852
      %v2039 = vpop.f32.mrb[0].mxu0
      %v2040 = vadd.f32 0.0, %v2039
      %v2041 = vpop.f32.mrb[0].mxu0
      %v2042 = vpop.f32.mrb[0].mxu0
      %v2043 = vadd.f32 0.0, %v2042
      %v2044 = vpop.f32.mrb[0].mxu0
      %2045 = vmatprep.mubr.bf16.mxu0 0
      %2046 = vmatmul.mubr.bf16.gmra.mrb[0].mxu0 %v1853
      %v2047 = vpop.f32.mrb[0].mxu0
      %v2048 = vadd.f32 0.0, %v2047
      %v2049 = vpop.f32.mrb[0].mxu0
      %v2050 = vpop.f32.mrb[0].mxu0
      %v2051 = vadd.f32 0.0, %v2050
      %v2052 = vpop.f32.mrb[0].mxu0
      %2053 = vmatprep.mubr.bf16.mxu0 0
      %2054 = vmatmul.mubr.bf16.gmra.mrb[0].mxu0 %v1854
      %v2055 = vpop.f32.mrb[0].mxu0
      %v2056 = vadd.f32 0.0, %v2055
      %v2057 = vpop.f32.mrb[0].mxu0
      %v2058 = vpop.f32.mrb[0].mxu0
      %v2059 = vadd.f32 0.0, %v2058
      %v2060 = vpop.f32.mrb[0].mxu0
      %2061 = vmatprep.mubr.bf16.mxu0 0
      %2062 = vmatmul.mubr.bf16.gmra.mrb[0].mxu0 %v1855
      %v2063 = vpop.f32.mrb[0].mxu0
      %v2064 = vadd.f32 0.0, %v2063
      %v2065 = vpop.f32.mrb[0].mxu0
      %v2066 = vpop.f32.mrb[0].mxu0
      %v2067 = vadd.f32 0.0, %v2066
      %v2068 = vpop.f32.mrb[0].mxu0
      %2069 = vmatprep.mubr.bf16.mxu0 0
      %2070 = vmatmul.mubr.bf16.gmra.mrb[0].mxu0 %v1856
      %v2071 = vpop.f32.mrb[0].mxu0
      %v2072 = vadd.f32 0.0, %v2071
      %v2073 = vpop.f32.mrb[0].mxu0
      %v2074 = vpop.f32.mrb[0].mxu0
      %v2075 = vadd.f32 0.0, %v2074
      %v2076 = vpop.f32.mrb[0].mxu0
      %2077 = vmatprep.mubr.bf16.mxu0 0
      %2078 = vmatmul.mubr.bf16.gmra.mrb[0].mxu0 %v1857
      %v2079 = vpop.f32.mrb[0].mxu0
      %v2080 = vadd.f32 0.0, %v2079
      %v2081 = vpop.f32.mrb[0].mxu0
      %v2082 = vpop.f32.mrb[0].mxu0
      %v2083 = vadd.f32 0.0, %v2082
      %v2084 = vpop.f32.mrb[0].mxu0
      %2085 = vmatprep.mubr.bf16.mxu0 0
      %2086 = vmatmul.mubr.bf16.gmra.mrb[0].mxu0 %v1858
      %v2087 = vpop.f32.mrb[0].mxu0
      %v2088 = vadd.f32 0.0, %v2087
      %v2089 = vpop.f32.mrb[0].mxu0
      %v2090 = vpop.f32.mrb[0].mxu0
      %v2091 = vadd.f32 0.0, %v2090
      %v2092 = vpop.f32.mrb[0].mxu0
      %2093 = vmatprep.mubr.bf16.mxu0 0
      %2094 = vmatmul.mubr.bf16.gmra.mrb[0].mxu0 %v1859
      %v2095 = vpop.f32.mrb[0].mxu0
      %v2096 = vadd.f32 0.0, %v2095
      %v2097 = vpop.f32.mrb[0].mxu0
      %v2098 = vpop.f32.mrb[0].mxu0
      %v2099 = vadd.f32 0.0, %v2098
      %v2100 = vpop.f32.mrb[0].mxu0
      %2101 = vdwg.mxu0
      %v2102 = vadd.f32 %v1770, %v1960
      %v2103 = vadd.f32 %v1771, %v1963
      %v2104 = vadd.f32 %v1772, %v1968
      %v2105 = vadd.f32 %v1773, %v1971
      %v2106 = vadd.f32 %v1774, %v1976
      %v2107 = vadd.f32 %v1775, %v1979
      %v2108 = vadd.f32 %v1776, %v1984
      %v2109 = vadd.f32 %v1777, %v1987
      %v2110 = vadd.f32 %v1778, %v1992
      %v2111 = vadd.f32 %v1779, %v1995
      %v2112 = vadd.f32 %v1780, %v2000
      %v2113 = vadd.f32 %v1781, %v2003
      %v2114 = vadd.f32 %v1782, %v2008
      %v2115 = vadd.f32 %v1783, %v2011
      %v2116 = vadd.f32 %v1784, %v2016
      %v2117 = vadd.f32 %v1785, %v2019
      %v2118 = vadd.f32 %v1786, %v2024
      %v2119 = vadd.f32 %v1787, %v2027
      %v2120 = vadd.f32 %v1788, %v2032
      %v2121 = vadd.f32 %v1789, %v2035
      %v2122 = vadd.f32 %v1790, %v2040
      %v2123 = vadd.f32 %v1791, %v2043
      %v2124 = vadd.f32 %v1792, %v2048
      %v2125 = vadd.f32 %v1793, %v2051
      %v2126 = vadd.f32 %v1794, %v2056
      %v2127 = vadd.f32 %v1795, %v2059
      %v2128 = vadd.f32 %v1796, %v2064
      %v2129 = vadd.f32 %v1797, %v2067
      %v2130 = vadd.f32 %v1798, %v2072
      %v2131 = vadd.f32 %v1799, %v2075
      %v2132 = vadd.f32 %v1800, %v2080
      %v2133 = vadd.f32 %v1801, %v2083
      %v2134 = vadd.f32 %v1802, %v2088
      %v2135 = vadd.f32 %v1803, %v2091
      %v2136 = vadd.f32 %v1804, %v2096
      %v2137 = vadd.f32 %v1805, %v2099
      %v2138 = vld [vmem:[%s207 + $0x24] sm:$0xff]
      %v2139 = vld [vmem:[%s207 + $0x2c] sm:$0xff]
      %v2140 = vld [vmem:[%s207 + $0x34] sm:$0xff]
      %v2141 = vld [vmem:[%s207 + $0x3c] sm:$0xff]
      %v2142 = vld [vmem:[%s207 + $0x44] sm:$0xff]
      %v2143 = vld [vmem:[%s207 + $0x4c] sm:$0xff]
      %v2144 = vld [vmem:[%s207 + $0x54] sm:$0xff]
      %v2145 = vld [vmem:[%s207 + $0x5c] sm:$0xff]
      %v2146 = vld [vmem:[%s207 + $0x64] sm:$0xff]
      %v2147 = vld [vmem:[%s207 + $0x6c] sm:$0xff]
      %v2148 = vld [vmem:[%s207 + $0x74] sm:$0xff]
      %v2149 = vld [vmem:[%s207 + $0x7c] sm:$0xff]
      %v2150 = vld [vmem:[%s207 + $0x84] sm:$0xff]
      %v2151 = vld [vmem:[%s207 + $0x8c] sm:$0xff]
      %v2152 = vld [vmem:[%s207 + $0x94] sm:$0xff]
      %v2153 = vld [vmem:[%s207 + $0x9c] sm:$0xff]
      %v2154 = vld [vmem:[%s207 + $0xa4] sm:$0xff]
      %v2155 = vld [vmem:[%s207 + $0xac] sm:$0xff]
      %v2156 = vld [vmem:[%s207 + $0xb4] sm:$0xff]
      %v2157 = vld [vmem:[%s207 + $0xbc] sm:$0xff]
      %v2158 = vld [vmem:[%s207 + $0xc4] sm:$0xff]
      %v2159 = vld [vmem:[%s207 + $0xcc] sm:$0xff]
      %v2160 = vld [vmem:[%s207 + $0xd4] sm:$0xff]
      %v2161 = vld [vmem:[%s207 + $0xdc] sm:$0xff]
      %v2162 = vld [vmem:[%s207 + $0xe4] sm:$0xff]
      %v2163 = vld [vmem:[%s207 + $0xec] sm:$0xff]
      %v2164 = vld [vmem:[%s207 + $0xf4] sm:$0xff]
      %v2165 = vld [vmem:[%s207 + $0xfc] sm:$0xff]
      %v2166 = vld [vmem:[%s207 + $0x104] sm:$0xff]
      %v2167 = vld [vmem:[%s207 + $0x10c] sm:$0xff]
      %v2168 = vld [vmem:[%s207 + $0x114] sm:$0xff]
      %v2169 = vld [vmem:[%s207 + $0x11c] sm:$0xff]
      %v2170 = vld [vmem:[%s207 + $0x124] sm:$0xff]
      %v2171 = vld [vmem:[%s207 + $0x12c] sm:$0xff]
      %v2172 = vld [vmem:[%s207 + $0x134] sm:$0xff]
      %v2173 = vld [vmem:[%s207 + $0x13c] sm:$0xff]
      %v2174 = vpack.c.bf16 %v2139, %v2138
      %v2175 = vpack.c.bf16 %v2141, %v2140
      %v2176 = vpack.c.bf16 %v2143, %v2142
      %v2177 = vpack.c.bf16 %v2145, %v2144
      %v2178 = vpack.c.bf16 %v2147, %v2146
      %v2179 = vpack.c.bf16 %v2149, %v2148
      %v2180 = vpack.c.bf16 %v2151, %v2150
      %v2181 = vpack.c.bf16 %v2153, %v2152
      %v2182 = vpack.c.bf16 %v2155, %v2154
      %v2183 = vpack.c.bf16 %v2157, %v2156
      %v2184 = vpack.c.bf16 %v2159, %v2158
      %v2185 = vpack.c.bf16 %v2161, %v2160
      %v2186 = vpack.c.bf16 %v2163, %v2162
      %v2187 = vpack.c.bf16 %v2165, %v2164
      %v2188 = vpack.c.bf16 %v2167, %v2166
      %v2189 = vpack.c.bf16 %v2169, %v2168
      %v2190 = vpack.c.bf16 %v2171, %v2170
      %v2191 = vpack.c.bf16 %v2173, %v2172
      %s2192 = scalar_lea.vmem %s1, 384
      %v2193 = vld [vmem:[%s2192] sm:$0xf]
      %v2194 = vld [vmem:[%s2192 + $0x4] sm:$0xf]
      %v2195 = vld [vmem:[%s2192 + $0x8] sm:$0xf]
      %v2196 = vld [vmem:[%s2192 + $0xc] sm:$0xf]
      %v2197 = vld [vmem:[%s2192 + $0x10] sm:$0xf]
      %v2198 = vld [vmem:[%s2192 + $0x14] sm:$0xf]
      %v2199 = vld [vmem:[%s2192 + $0x18] sm:$0xf]
      %v2200 = vld [vmem:[%s2192 + $0x1c] sm:$0xf]
      %v2201 = vld [vmem:[%s2192 + $0x20] sm:$0xf]
      %v2202 = vld [vmem:[%s2192 + $0x24] sm:$0xf]
      %v2203 = vld [vmem:[%s2192 + $0x28] sm:$0xf]
      %v2204 = vld [vmem:[%s2192 + $0x2c] sm:$0xf]
      %v2205 = vld [vmem:[%s2192 + $0x30] sm:$0xf]
      %v2206 = vld [vmem:[%s2192 + $0x34] sm:$0xf]
      %v2207 = vld [vmem:[%s2192 + $0x38] sm:$0xf]
      %v2208 = vld [vmem:[%s2192 + $0x3c] sm:$0xf]
      %v2225 = vunpack.c.l.b16 %v2193
      %v2226 = vunpack.c.l.b16 %v2194
      %v2227 = vunpack.c.l.b16 %v2195
      %v2228 = vunpack.c.l.b16 %v2196
      %v2229 = vunpack.c.l.b16 %v2197
      %v2230 = vunpack.c.l.b16 %v2198
      %v2231 = vunpack.c.l.b16 %v2199
      %v2232 = vunpack.c.l.b16 %v2200
      %v2233 = vunpack.c.l.b16 %v2201
      %v2234 = vunpack.c.l.b16 %v2202
      %v2235 = vunpack.c.l.b16 %v2203
      %v2236 = vunpack.c.l.b16 %v2204
      %v2237 = vunpack.c.l.b16 %v2205
      %v2238 = vunpack.c.l.b16 %v2206
      %v2239 = vunpack.c.l.b16 %v2207
      %v2240 = vunpack.c.l.b16 %v2208
      %v2241 = vpack.c.b16 %v2226, %v2225
      %v2242 = vpack.c.b16 %v2228, %v2227
      %v2243 = vpack.c.b16 %v2230, %v2229
      %v2244 = vpack.c.b16 %v2232, %v2231
      %v2245 = vpack.c.b16 %v2234, %v2233
      %v2246 = vpack.c.b16 %v2236, %v2235
      %v2247 = vpack.c.b16 %v2238, %v2237
      %v2248 = vpack.c.b16 %v2240, %v2239
      %2257 = vmatprep.subr.bf16.mxu0 0
      %2258 = vmatpush1.bf16.msra.mxu0 %v2241
      %2259 = vmatprep.subr.bf16.mxu0 0
      %2260 = vmatpush1.bf16.msra.mxu0 %v2242
      %2261 = vmatprep.subr.bf16.mxu0 0
      %2262 = vmatpush1.bf16.msra.mxu0 %v2243
      %2263 = vmatprep.subr.bf16.mxu0 0
      %2264 = vmatpush1.bf16.msra.mxu0 %v2244
      %2265 = vmatprep.subr.bf16.mxu0 0
      %2266 = vmatpush1.bf16.msra.mxu0 %v2245
      %2267 = vmatprep.subr.bf16.mxu0 0
      %2268 = vmatpush1.bf16.msra.mxu0 %v2246
      %2269 = vmatprep.subr.bf16.mxu0 0
      %2270 = vmatpush1.bf16.msra.mxu0 %v2247
      %2271 = vmatprep.subr.bf16.mxu0 0
      %2272 = vmatpush1.bf16.msra.mxu0 %v2248
      %2273 = vmatprep.subr.bf16.mxu0 0
      %2274 = vmatpush1.bf16.msra.mxu0 0
      %2275 = vmatprep.subr.bf16.mxu0 0
      %2276 = vmatpush1.bf16.msra.mxu0 0
      %2277 = vmatprep.subr.bf16.mxu0 0
      %2278 = vmatpush1.bf16.msra.mxu0 0
      %2279 = vmatprep.subr.bf16.mxu0 0
      %2280 = vmatpush1.bf16.msra.mxu0 0
      %2281 = vmatprep.subr.bf16.mxu0 0
      %2282 = vmatpush1.bf16.msra.mxu0 0
      %2283 = vmatprep.subr.bf16.mxu0 0
      %2284 = vmatpush1.bf16.msra.mxu0 0
      %2285 = vmatprep.subr.bf16.mxu0 0
      %2286 = vmatpush1.bf16.msra.mxu0 0
      %2287 = vmatprep.subr.bf16.mxu0 0
      %2288 = vmatpush1.bf16.msra.mxu0 0
      %2289 = vmatprep.mubr.bf16.mxu0 0
      %2290 = vmatmul.mubr.bf16.gmra.mrb[0].mxu0 %v2174
      %v2291 = vpop.f32.mrb[0].mxu0
      %v2292 = vadd.f32 0.0, %v2291
      %v2293 = vpop.f32.mrb[0].mxu0
      %v2294 = vpop.f32.mrb[0].mxu0
      %v2295 = vadd.f32 0.0, %v2294
      %v2296 = vpop.f32.mrb[0].mxu0
      %2297 = vmatprep.mubr.bf16.mxu0 0
      %2298 = vmatmul.mubr.bf16.gmra.mrb[0].mxu0 %v2175
      %v2299 = vpop.f32.mrb[0].mxu0
      %v2300 = vadd.f32 0.0, %v2299
      %v2301 = vpop.f32.mrb[0].mxu0
      %v2302 = vpop.f32.mrb[0].mxu0
      %v2303 = vadd.f32 0.0, %v2302
      %v2304 = vpop.f32.mrb[0].mxu0
      %2305 = vmatprep.mubr.bf16.mxu0 0
      %2306 = vmatmul.mubr.bf16.gmra.mrb[0].mxu0 %v2176
      %v2307 = vpop.f32.mrb[0].mxu0
      %v2308 = vadd.f32 0.0, %v2307
      %v2309 = vpop.f32.mrb[0].mxu0
      %v2310 = vpop.f32.mrb[0].mxu0
      %v2311 = vadd.f32 0.0, %v2310
      %v2312 = vpop.f32.mrb[0].mxu0
      %2313 = vmatprep.mubr.bf16.mxu0 0
      %2314 = vmatmul.mubr.bf16.gmra.mrb[0].mxu0 %v2177
      %v2315 = vpop.f32.mrb[0].mxu0
      %v2316 = vadd.f32 0.0, %v2315
      %v2317 = vpop.f32.mrb[0].mxu0
      %v2318 = vpop.f32.mrb[0].mxu0
      %v2319 = vadd.f32 0.0, %v2318
      %v2320 = vpop.f32.mrb[0].mxu0
      %2321 = vmatprep.mubr.bf16.mxu0 0
      %2322 = vmatmul.mubr.bf16.gmra.mrb[0].mxu0 %v2178
      %v2323 = vpop.f32.mrb[0].mxu0
      %v2324 = vadd.f32 0.0, %v2323
      %v2325 = vpop.f32.mrb[0].mxu0
      %v2326 = vpop.f32.mrb[0].mxu0
      %v2327 = vadd.f32 0.0, %v2326
      %v2328 = vpop.f32.mrb[0].mxu0
      %2329 = vmatprep.mubr.bf16.mxu0 0
      %2330 = vmatmul.mubr.bf16.gmra.mrb[0].mxu0 %v2179
      %v2331 = vpop.f32.mrb[0].mxu0
      %v2332 = vadd.f32 0.0, %v2331
      %v2333 = vpop.f32.mrb[0].mxu0
      %v2334 = vpop.f32.mrb[0].mxu0
      %v2335 = vadd.f32 0.0, %v2334
      %v2336 = vpop.f32.mrb[0].mxu0
      %2337 = vmatprep.mubr.bf16.mxu0 0
      %2338 = vmatmul.mubr.bf16.gmra.mrb[0].mxu0 %v2180
      %v2339 = vpop.f32.mrb[0].mxu0
      %v2340 = vadd.f32 0.0, %v2339
      %v2341 = vpop.f32.mrb[0].mxu0
      %v2342 = vpop.f32.mrb[0].mxu0
      %v2343 = vadd.f32 0.0, %v2342
      %v2344 = vpop.f32.mrb[0].mxu0
      %2345 = vmatprep.mubr.bf16.mxu0 0
      %2346 = vmatmul.mubr.bf16.gmra.mrb[0].mxu0 %v2181
      %v2347 = vpop.f32.mrb[0].mxu0
      %v2348 = vadd.f32 0.0, %v2347
      %v2349 = vpop.f32.mrb[0].mxu0
      %v2350 = vpop.f32.mrb[0].mxu0
      %v2351 = vadd.f32 0.0, %v2350
      %v2352 = vpop.f32.mrb[0].mxu0
      %2353 = vmatprep.mubr.bf16.mxu0 0
      %2354 = vmatmul.mubr.bf16.gmra.mrb[0].mxu0 %v2182
      %v2355 = vpop.f32.mrb[0].mxu0
      %v2356 = vadd.f32 0.0, %v2355
      %v2357 = vpop.f32.mrb[0].mxu0
      %v2358 = vpop.f32.mrb[0].mxu0
      %v2359 = vadd.f32 0.0, %v2358
      %v2360 = vpop.f32.mrb[0].mxu0
      %2361 = vmatprep.mubr.bf16.mxu0 0
      %2362 = vmatmul.mubr.bf16.gmra.mrb[0].mxu0 %v2183
      %v2363 = vpop.f32.mrb[0].mxu0
      %v2364 = vadd.f32 0.0, %v2363
      %v2365 = vpop.f32.mrb[0].mxu0
      %v2366 = vpop.f32.mrb[0].mxu0
      %v2367 = vadd.f32 0.0, %v2366
      %v2368 = vpop.f32.mrb[0].mxu0
      %2369 = vmatprep.mubr.bf16.mxu0 0
      %2370 = vmatmul.mubr.bf16.gmra.mrb[0].mxu0 %v2184
      %v2371 = vpop.f32.mrb[0].mxu0
      %v2372 = vadd.f32 0.0, %v2371
      %v2373 = vpop.f32.mrb[0].mxu0
      %v2374 = vpop.f32.mrb[0].mxu0
      %v2375 = vadd.f32 0.0, %v2374
      %v2376 = vpop.f32.mrb[0].mxu0
      %2377 = vmatprep.mubr.bf16.mxu0 0
      %2378 = vmatmul.mubr.bf16.gmra.mrb[0].mxu0 %v2185
      %v2379 = vpop.f32.mrb[0].mxu0
      %v2380 = vadd.f32 0.0, %v2379
      %v2381 = vpop.f32.mrb[0].mxu0
      %v2382 = vpop.f32.mrb[0].mxu0
      %v2383 = vadd.f32 0.0, %v2382
      %v2384 = vpop.f32.mrb[0].mxu0
      %2385 = vmatprep.mubr.bf16.mxu0 0
      %2386 = vmatmul.mubr.bf16.gmra.mrb[0].mxu0 %v2186
      %v2387 = vpop.f32.mrb[0].mxu0
      %v2388 = vadd.f32 0.0, %v2387
      %v2389 = vpop.f32.mrb[0].mxu0
      %v2390 = vpop.f32.mrb[0].mxu0
      %v2391 = vadd.f32 0.0, %v2390
      %v2392 = vpop.f32.mrb[0].mxu0
      %2393 = vmatprep.mubr.bf16.mxu0 0
      %2394 = vmatmul.mubr.bf16.gmra.mrb[0].mxu0 %v2187
      %v2395 = vpop.f32.mrb[0].mxu0
      %v2396 = vadd.f32 0.0, %v2395
      %v2397 = vpop.f32.mrb[0].mxu0
      %v2398 = vpop.f32.mrb[0].mxu0
      %v2399 = vadd.f32 0.0, %v2398
      %v2400 = vpop.f32.mrb[0].mxu0
      %2401 = vmatprep.mubr.bf16.mxu0 0
      %2402 = vmatmul.mubr.bf16.gmra.mrb[0].mxu0 %v2188
      %v2403 = vpop.f32.mrb[0].mxu0
      %v2404 = vadd.f32 0.0, %v2403
      %v2405 = vpop.f32.mrb[0].mxu0
      %v2406 = vpop.f32.mrb[0].mxu0
      %v2407 = vadd.f32 0.0, %v2406
      %v2408 = vpop.f32.mrb[0].mxu0
      %2409 = vmatprep.mubr.bf16.mxu0 0
      %2410 = vmatmul.mubr.bf16.gmra.mrb[0].mxu0 %v2189
      %v2411 = vpop.f32.mrb[0].mxu0
      %v2412 = vadd.f32 0.0, %v2411
      %v2413 = vpop.f32.mrb[0].mxu0
      %v2414 = vpop.f32.mrb[0].mxu0
      %v2415 = vadd.f32 0.0, %v2414
      %v2416 = vpop.f32.mrb[0].mxu0
      %2417 = vmatprep.mubr.bf16.mxu0 0
      %2418 = vmatmul.mubr.bf16.gmra.mrb[0].mxu0 %v2190
      %v2419 = vpop.f32.mrb[0].mxu0
      %v2420 = vadd.f32 0.0, %v2419
      %v2421 = vpop.f32.mrb[0].mxu0
      %v2422 = vpop.f32.mrb[0].mxu0
      %v2423 = vadd.f32 0.0, %v2422
      %v2424 = vpop.f32.mrb[0].mxu0
      %2425 = vmatprep.mubr.bf16.mxu0 0
      %2426 = vmatmul.mubr.bf16.gmra.mrb[0].mxu0 %v2191
      %v2427 = vpop.f32.mrb[0].mxu0
      %v2428 = vadd.f32 0.0, %v2427
      %v2429 = vpop.f32.mrb[0].mxu0
      %v2430 = vpop.f32.mrb[0].mxu0
      %v2431 = vadd.f32 0.0, %v2430
      %v2432 = vpop.f32.mrb[0].mxu0
      %2433 = vdwg.mxu0
      %v2434 = vadd.f32 %v2102, %v2292
      %v2435 = vadd.f32 %v2103, %v2295
      %v2436 = vadd.f32 %v2104, %v2300
      %v2437 = vadd.f32 %v2105, %v2303
      %v2438 = vadd.f32 %v2106, %v2308
      %v2439 = vadd.f32 %v2107, %v2311
      %v2440 = vadd.f32 %v2108, %v2316
      %v2441 = vadd.f32 %v2109, %v2319
      %v2442 = vadd.f32 %v2110, %v2324
      %v2443 = vadd.f32 %v2111, %v2327
      %v2444 = vadd.f32 %v2112, %v2332
      %v2445 = vadd.f32 %v2113, %v2335
      %v2446 = vadd.f32 %v2114, %v2340
      %v2447 = vadd.f32 %v2115, %v2343
      %v2448 = vadd.f32 %v2116, %v2348
      %v2449 = vadd.f32 %v2117, %v2351
      %v2450 = vadd.f32 %v2118, %v2356
      %v2451 = vadd.f32 %v2119, %v2359
      %v2452 = vadd.f32 %v2120, %v2364
      %v2453 = vadd.f32 %v2121, %v2367
      %v2454 = vadd.f32 %v2122, %v2372
      %v2455 = vadd.f32 %v2123, %v2375
      %v2456 = vadd.f32 %v2124, %v2380
      %v2457 = vadd.f32 %v2125, %v2383
      %v2458 = vadd.f32 %v2126, %v2388
      %v2459 = vadd.f32 %v2127, %v2391
      %v2460 = vadd.f32 %v2128, %v2396
      %v2461 = vadd.f32 %v2129, %v2399
      %v2462 = vadd.f32 %v2130, %v2404
      %v2463 = vadd.f32 %v2131, %v2407
      %v2464 = vadd.f32 %v2132, %v2412
      %v2465 = vadd.f32 %v2133, %v2415
      %v2466 = vadd.f32 %v2134, %v2420
      %v2467 = vadd.f32 %v2135, %v2423
      %v2468 = vadd.f32 %v2136, %v2428
      %v2469 = vadd.f32 %v2137, %v2431
      %v2470 = vld [vmem:[%s207 + $0x25] sm:$0xff]
      %v2471 = vld [vmem:[%s207 + $0x2d] sm:$0xff]
      %v2472 = vld [vmem:[%s207 + $0x35] sm:$0xff]
      %v2473 = vld [vmem:[%s207 + $0x3d] sm:$0xff]
      %v2474 = vld [vmem:[%s207 + $0x45] sm:$0xff]
      %v2475 = vld [vmem:[%s207 + $0x4d] sm:$0xff]
      %v2476 = vld [vmem:[%s207 + $0x55] sm:$0xff]
      %v2477 = vld [vmem:[%s207 + $0x5d] sm:$0xff]
      %v2478 = vld [vmem:[%s207 + $0x65] sm:$0xff]
      %v2479 = vld [vmem:[%s207 + $0x6d] sm:$0xff]
      %v2480 = vld [vmem:[%s207 + $0x75] sm:$0xff]
      %v2481 = vld [vmem:[%s207 + $0x7d] sm:$0xff]
      %v2482 = vld [vmem:[%s207 + $0x85] sm:$0xff]
      %v2483 = vld [vmem:[%s207 + $0x8d] sm:$0xff]
      %v2484 = vld [vmem:[%s207 + $0x95] sm:$0xff]
      %v2485 = vld [vmem:[%s207 + $0x9d] sm:$0xff]
      %v2486 = vld [vmem:[%s207 + $0xa5] sm:$0xff]
      %v2487 = vld [vmem:[%s207 + $0xad] sm:$0xff]
      %v2488 = vld [vmem:[%s207 + $0xb5] sm:$0xff]
      %v2489 = vld [vmem:[%s207 + $0xbd] sm:$0xff]
      %v2490 = vld [vmem:[%s207 + $0xc5] sm:$0xff]
      %v2491 = vld [vmem:[%s207 + $0xcd] sm:$0xff]
      %v2492 = vld [vmem:[%s207 + $0xd5] sm:$0xff]
      %v2493 = vld [vmem:[%s207 + $0xdd] sm:$0xff]
      %v2494 = vld [vmem:[%s207 + $0xe5] sm:$0xff]
      %v2495 = vld [vmem:[%s207 + $0xed] sm:$0xff]
      %v2496 = vld [vmem:[%s207 + $0xf5] sm:$0xff]
      %v2497 = vld [vmem:[%s207 + $0xfd] sm:$0xff]
      %v2498 = vld [vmem:[%s207 + $0x105] sm:$0xff]
      %v2499 = vld [vmem:[%s207 + $0x10d] sm:$0xff]
      %v2500 = vld [vmem:[%s207 + $0x115] sm:$0xff]
      %v2501 = vld [vmem:[%s207 + $0x11d] sm:$0xff]
      %v2502 = vld [vmem:[%s207 + $0x125] sm:$0xff]
      %v2503 = vld [vmem:[%s207 + $0x12d] sm:$0xff]
      %v2504 = vld [vmem:[%s207 + $0x135] sm:$0xff]
      %v2505 = vld [vmem:[%s207 + $0x13d] sm:$0xff]
      %v2506 = vpack.c.bf16 %v2471, %v2470
      %v2507 = vpack.c.bf16 %v2473, %v2472
      %v2508 = vpack.c.bf16 %v2475, %v2474
      %v2509 = vpack.c.bf16 %v2477, %v2476
      %v2510 = vpack.c.bf16 %v2479, %v2478
      %v2511 = vpack.c.bf16 %v2481, %v2480
      %v2512 = vpack.c.bf16 %v2483, %v2482
      %v2513 = vpack.c.bf16 %v2485, %v2484
      %v2514 = vpack.c.bf16 %v2487, %v2486
      %v2515 = vpack.c.bf16 %v2489, %v2488
      %v2516 = vpack.c.bf16 %v2491, %v2490
      %v2517 = vpack.c.bf16 %v2493, %v2492
      %v2518 = vpack.c.bf16 %v2495, %v2494
      %v2519 = vpack.c.bf16 %v2497, %v2496
      %v2520 = vpack.c.bf16 %v2499, %v2498
      %v2521 = vpack.c.bf16 %v2501, %v2500
      %v2522 = vpack.c.bf16 %v2503, %v2502
      %v2523 = vpack.c.bf16 %v2505, %v2504
      %s2524 = scalar_lea.vmem %s1, 448
      %v2525 = vld [vmem:[%s2524] sm:$0xf]
      %v2526 = vld [vmem:[%s2524 + $0x4] sm:$0xf]
      %v2527 = vld [vmem:[%s2524 + $0x8] sm:$0xf]
      %v2528 = vld [vmem:[%s2524 + $0xc] sm:$0xf]
      %v2529 = vld [vmem:[%s2524 + $0x10] sm:$0xf]
      %v2530 = vld [vmem:[%s2524 + $0x14] sm:$0xf]
      %v2531 = vld [vmem:[%s2524 + $0x18] sm:$0xf]
      %v2532 = vld [vmem:[%s2524 + $0x1c] sm:$0xf]
      %v2533 = vld [vmem:[%s2524 + $0x20] sm:$0xf]
      %v2534 = vld [vmem:[%s2524 + $0x24] sm:$0xf]
      %v2535 = vld [vmem:[%s2524 + $0x28] sm:$0xf]
      %v2536 = vld [vmem:[%s2524 + $0x2c] sm:$0xf]
      %v2537 = vld [vmem:[%s2524 + $0x30] sm:$0xf]
      %v2538 = vld [vmem:[%s2524 + $0x34] sm:$0xf]
      %v2539 = vld [vmem:[%s2524 + $0x38] sm:$0xf]
      %v2540 = vld [vmem:[%s2524 + $0x3c] sm:$0xf]
      %v2557 = vunpack.c.l.b16 %v2525
      %v2558 = vunpack.c.l.b16 %v2526
      %v2559 = vunpack.c.l.b16 %v2527
      %v2560 = vunpack.c.l.b16 %v2528
      %v2561 = vunpack.c.l.b16 %v2529
      %v2562 = vunpack.c.l.b16 %v2530
      %v2563 = vunpack.c.l.b16 %v2531
      %v2564 = vunpack.c.l.b16 %v2532
      %v2565 = vunpack.c.l.b16 %v2533
      %v2566 = vunpack.c.l.b16 %v2534
      %v2567 = vunpack.c.l.b16 %v2535
      %v2568 = vunpack.c.l.b16 %v2536
      %v2569 = vunpack.c.l.b16 %v2537
      %v2570 = vunpack.c.l.b16 %v2538
      %v2571 = vunpack.c.l.b16 %v2539
      %v2572 = vunpack.c.l.b16 %v2540
      %v2573 = vpack.c.b16 %v2558, %v2557
      %v2574 = vpack.c.b16 %v2560, %v2559
      %v2575 = vpack.c.b16 %v2562, %v2561
      %v2576 = vpack.c.b16 %v2564, %v2563
      %v2577 = vpack.c.b16 %v2566, %v2565
      %v2578 = vpack.c.b16 %v2568, %v2567
      %v2579 = vpack.c.b16 %v2570, %v2569
      %v2580 = vpack.c.b16 %v2572, %v2571
      %2589 = vmatprep.subr.bf16.mxu0 0
      %2590 = vmatpush1.bf16.msra.mxu0 %v2573
      %2591 = vmatprep.subr.bf16.mxu0 0
      %2592 = vmatpush1.bf16.msra.mxu0 %v2574
      %2593 = vmatprep.subr.bf16.mxu0 0
      %2594 = vmatpush1.bf16.msra.mxu0 %v2575
      %2595 = vmatprep.subr.bf16.mxu0 0
      %2596 = vmatpush1.bf16.msra.mxu0 %v2576
      %2597 = vmatprep.subr.bf16.mxu0 0
      %2598 = vmatpush1.bf16.msra.mxu0 %v2577
      %2599 = vmatprep.subr.bf16.mxu0 0
      %2600 = vmatpush1.bf16.msra.mxu0 %v2578
      %2601 = vmatprep.subr.bf16.mxu0 0
      %2602 = vmatpush1.bf16.msra.mxu0 %v2579
      %2603 = vmatprep.subr.bf16.mxu0 0
      %2604 = vmatpush1.bf16.msra.mxu0 %v2580
      %2605 = vmatprep.subr.bf16.mxu0 0
      %2606 = vmatpush1.bf16.msra.mxu0 0
      %2607 = vmatprep.subr.bf16.mxu0 0
      %2608 = vmatpush1.bf16.msra.mxu0 0
      %2609 = vmatprep.subr.bf16.mxu0 0
      %2610 = vmatpush1.bf16.msra.mxu0 0
      %2611 = vmatprep.subr.bf16.mxu0 0
      %2612 = vmatpush1.bf16.msra.mxu0 0
      %2613 = vmatprep.subr.bf16.mxu0 0
      %2614 = vmatpush1.bf16.msra.mxu0 0
      %2615 = vmatprep.subr.bf16.mxu0 0
      %2616 = vmatpush1.bf16.msra.mxu0 0
      %2617 = vmatprep.subr.bf16.mxu0 0
      %2618 = vmatpush1.bf16.msra.mxu0 0
      %2619 = vmatprep.subr.bf16.mxu0 0
      %2620 = vmatpush1.bf16.msra.mxu0 0
      %2621 = vmatprep.mubr.bf16.mxu0 0
      %2622 = vmatmul.mubr.bf16.gmra.mrb[0].mxu0 %v2506
      %v2623 = vpop.f32.mrb[0].mxu0
      %v2624 = vadd.f32 0.0, %v2623
      %v2625 = vpop.f32.mrb[0].mxu0
      %v2626 = vpop.f32.mrb[0].mxu0
      %v2627 = vadd.f32 0.0, %v2626
      %v2628 = vpop.f32.mrb[0].mxu0
      %2629 = vmatprep.mubr.bf16.mxu0 0
      %2630 = vmatmul.mubr.bf16.gmra.mrb[0].mxu0 %v2507
      %v2631 = vpop.f32.mrb[0].mxu0
      %v2632 = vadd.f32 0.0, %v2631
      %v2633 = vpop.f32.mrb[0].mxu0
      %v2634 = vpop.f32.mrb[0].mxu0
      %v2635 = vadd.f32 0.0, %v2634
      %v2636 = vpop.f32.mrb[0].mxu0
      %2637 = vmatprep.mubr.bf16.mxu0 0
      %2638 = vmatmul.mubr.bf16.gmra.mrb[0].mxu0 %v2508
      %v2639 = vpop.f32.mrb[0].mxu0
      %v2640 = vadd.f32 0.0, %v2639
      %v2641 = vpop.f32.mrb[0].mxu0
      %v2642 = vpop.f32.mrb[0].mxu0
      %v2643 = vadd.f32 0.0, %v2642
      %v2644 = vpop.f32.mrb[0].mxu0
      %2645 = vmatprep.mubr.bf16.mxu0 0
      %2646 = vmatmul.mubr.bf16.gmra.mrb[0].mxu0 %v2509
      %v2647 = vpop.f32.mrb[0].mxu0
      %v2648 = vadd.f32 0.0, %v2647
      %v2649 = vpop.f32.mrb[0].mxu0
      %v2650 = vpop.f32.mrb[0].mxu0
      %v2651 = vadd.f32 0.0, %v2650
      %v2652 = vpop.f32.mrb[0].mxu0
      %2653 = vmatprep.mubr.bf16.mxu0 0
      %2654 = vmatmul.mubr.bf16.gmra.mrb[0].mxu0 %v2510
      %v2655 = vpop.f32.mrb[0].mxu0
      %v2656 = vadd.f32 0.0, %v2655
      %v2657 = vpop.f32.mrb[0].mxu0
      %v2658 = vpop.f32.mrb[0].mxu0
      %v2659 = vadd.f32 0.0, %v2658
      %v2660 = vpop.f32.mrb[0].mxu0
      %2661 = vmatprep.mubr.bf16.mxu0 0
      %2662 = vmatmul.mubr.bf16.gmra.mrb[0].mxu0 %v2511
      %v2663 = vpop.f32.mrb[0].mxu0
      %v2664 = vadd.f32 0.0, %v2663
      %v2665 = vpop.f32.mrb[0].mxu0
      %v2666 = vpop.f32.mrb[0].mxu0
      %v2667 = vadd.f32 0.0, %v2666
      %v2668 = vpop.f32.mrb[0].mxu0
      %2669 = vmatprep.mubr.bf16.mxu0 0
      %2670 = vmatmul.mubr.bf16.gmra.mrb[0].mxu0 %v2512
      %v2671 = vpop.f32.mrb[0].mxu0
      %v2672 = vadd.f32 0.0, %v2671
      %v2673 = vpop.f32.mrb[0].mxu0
      %v2674 = vpop.f32.mrb[0].mxu0
      %v2675 = vadd.f32 0.0, %v2674
      %v2676 = vpop.f32.mrb[0].mxu0
      %2677 = vmatprep.mubr.bf16.mxu0 0
      %2678 = vmatmul.mubr.bf16.gmra.mrb[0].mxu0 %v2513
      %v2679 = vpop.f32.mrb[0].mxu0
      %v2680 = vadd.f32 0.0, %v2679
      %v2681 = vpop.f32.mrb[0].mxu0
      %v2682 = vpop.f32.mrb[0].mxu0
      %v2683 = vadd.f32 0.0, %v2682
      %v2684 = vpop.f32.mrb[0].mxu0
      %2685 = vmatprep.mubr.bf16.mxu0 0
      %2686 = vmatmul.mubr.bf16.gmra.mrb[0].mxu0 %v2514
      %v2687 = vpop.f32.mrb[0].mxu0
      %v2688 = vadd.f32 0.0, %v2687
      %v2689 = vpop.f32.mrb[0].mxu0
      %v2690 = vpop.f32.mrb[0].mxu0
      %v2691 = vadd.f32 0.0, %v2690
      %v2692 = vpop.f32.mrb[0].mxu0
      %2693 = vmatprep.mubr.bf16.mxu0 0
      %2694 = vmatmul.mubr.bf16.gmra.mrb[0].mxu0 %v2515
      %v2695 = vpop.f32.mrb[0].mxu0
      %v2696 = vadd.f32 0.0, %v2695
      %v2697 = vpop.f32.mrb[0].mxu0
      %v2698 = vpop.f32.mrb[0].mxu0
      %v2699 = vadd.f32 0.0, %v2698
      %v2700 = vpop.f32.mrb[0].mxu0
      %2701 = vmatprep.mubr.bf16.mxu0 0
      %2702 = vmatmul.mubr.bf16.gmra.mrb[0].mxu0 %v2516
      %v2703 = vpop.f32.mrb[0].mxu0
      %v2704 = vadd.f32 0.0, %v2703
      %v2705 = vpop.f32.mrb[0].mxu0
      %v2706 = vpop.f32.mrb[0].mxu0
      %v2707 = vadd.f32 0.0, %v2706
      %v2708 = vpop.f32.mrb[0].mxu0
      %2709 = vmatprep.mubr.bf16.mxu0 0
      %2710 = vmatmul.mubr.bf16.gmra.mrb[0].mxu0 %v2517
      %v2711 = vpop.f32.mrb[0].mxu0
      %v2712 = vadd.f32 0.0, %v2711
      %v2713 = vpop.f32.mrb[0].mxu0
      %v2714 = vpop.f32.mrb[0].mxu0
      %v2715 = vadd.f32 0.0, %v2714
      %v2716 = vpop.f32.mrb[0].mxu0
      %2717 = vmatprep.mubr.bf16.mxu0 0
      %2718 = vmatmul.mubr.bf16.gmra.mrb[0].mxu0 %v2518
      %v2719 = vpop.f32.mrb[0].mxu0
      %v2720 = vadd.f32 0.0, %v2719
      %v2721 = vpop.f32.mrb[0].mxu0
      %v2722 = vpop.f32.mrb[0].mxu0
      %v2723 = vadd.f32 0.0, %v2722
      %v2724 = vpop.f32.mrb[0].mxu0
      %2725 = vmatprep.mubr.bf16.mxu0 0
      %2726 = vmatmul.mubr.bf16.gmra.mrb[0].mxu0 %v2519
      %v2727 = vpop.f32.mrb[0].mxu0
      %v2728 = vadd.f32 0.0, %v2727
      %v2729 = vpop.f32.mrb[0].mxu0
      %v2730 = vpop.f32.mrb[0].mxu0
      %v2731 = vadd.f32 0.0, %v2730
      %v2732 = vpop.f32.mrb[0].mxu0
      %2733 = vmatprep.mubr.bf16.mxu0 0
      %2734 = vmatmul.mubr.bf16.gmra.mrb[0].mxu0 %v2520
      %v2735 = vpop.f32.mrb[0].mxu0
      %v2736 = vadd.f32 0.0, %v2735
      %v2737 = vpop.f32.mrb[0].mxu0
      %v2738 = vpop.f32.mrb[0].mxu0
      %v2739 = vadd.f32 0.0, %v2738
      %v2740 = vpop.f32.mrb[0].mxu0
      %2741 = vmatprep.mubr.bf16.mxu0 0
      %2742 = vmatmul.mubr.bf16.gmra.mrb[0].mxu0 %v2521
      %v2743 = vpop.f32.mrb[0].mxu0
      %v2744 = vadd.f32 0.0, %v2743
      %v2745 = vpop.f32.mrb[0].mxu0
      %v2746 = vpop.f32.mrb[0].mxu0
      %v2747 = vadd.f32 0.0, %v2746
      %v2748 = vpop.f32.mrb[0].mxu0
      %2749 = vmatprep.mubr.bf16.mxu0 0
      %2750 = vmatmul.mubr.bf16.gmra.mrb[0].mxu0 %v2522
      %v2751 = vpop.f32.mrb[0].mxu0
      %v2752 = vadd.f32 0.0, %v2751
      %v2753 = vpop.f32.mrb[0].mxu0
      %v2754 = vpop.f32.mrb[0].mxu0
      %v2755 = vadd.f32 0.0, %v2754
      %v2756 = vpop.f32.mrb[0].mxu0
      %2757 = vmatprep.mubr.bf16.mxu0 0
      %2758 = vmatmul.mubr.bf16.gmra.mrb[0].mxu0 %v2523
      %v2759 = vpop.f32.mrb[0].mxu0
      %v2760 = vadd.f32 0.0, %v2759
      %v2761 = vpop.f32.mrb[0].mxu0
      %v2762 = vpop.f32.mrb[0].mxu0
      %v2763 = vadd.f32 0.0, %v2762
      %v2764 = vpop.f32.mrb[0].mxu0
      %2765 = vdwg.mxu0
      %v2766 = vadd.f32 %v2434, %v2624
      %v2767 = vadd.f32 %v2435, %v2627
      %v2768 = vadd.f32 %v2436, %v2632
      %v2769 = vadd.f32 %v2437, %v2635
      %v2770 = vadd.f32 %v2438, %v2640
      %v2771 = vadd.f32 %v2439, %v2643
      %v2772 = vadd.f32 %v2440, %v2648
      %v2773 = vadd.f32 %v2441, %v2651
      %v2774 = vadd.f32 %v2442, %v2656
      %v2775 = vadd.f32 %v2443, %v2659
      %v2776 = vadd.f32 %v2444, %v2664
      %v2777 = vadd.f32 %v2445, %v2667
      %v2778 = vadd.f32 %v2446, %v2672
      %v2779 = vadd.f32 %v2447, %v2675
      %v2780 = vadd.f32 %v2448, %v2680
      %v2781 = vadd.f32 %v2449, %v2683
      %v2782 = vadd.f32 %v2450, %v2688
      %v2783 = vadd.f32 %v2451, %v2691
      %v2784 = vadd.f32 %v2452, %v2696
      %v2785 = vadd.f32 %v2453, %v2699
      %v2786 = vadd.f32 %v2454, %v2704
      %v2787 = vadd.f32 %v2455, %v2707
      %v2788 = vadd.f32 %v2456, %v2712
      %v2789 = vadd.f32 %v2457, %v2715
      %v2790 = vadd.f32 %v2458, %v2720
      %v2791 = vadd.f32 %v2459, %v2723
      %v2792 = vadd.f32 %v2460, %v2728
      %v2793 = vadd.f32 %v2461, %v2731
      %v2794 = vadd.f32 %v2462, %v2736
      %v2795 = vadd.f32 %v2463, %v2739
      %v2796 = vadd.f32 %v2464, %v2744
      %v2797 = vadd.f32 %v2465, %v2747
      %v2798 = vadd.f32 %v2466, %v2752
      %v2799 = vadd.f32 %v2467, %v2755
      %v2800 = vadd.f32 %v2468, %v2760
      %v2801 = vadd.f32 %v2469, %v2763
      %v2802 = vld [vmem:[%s207 + $0x26] sm:$0xff]
      %v2803 = vld [vmem:[%s207 + $0x2e] sm:$0xff]
      %v2804 = vld [vmem:[%s207 + $0x36] sm:$0xff]
      %v2805 = vld [vmem:[%s207 + $0x3e] sm:$0xff]
      %v2806 = vld [vmem:[%s207 + $0x46] sm:$0xff]
      %v2807 = vld [vmem:[%s207 + $0x4e] sm:$0xff]
      %v2808 = vld [vmem:[%s207 + $0x56] sm:$0xff]
      %v2809 = vld [vmem:[%s207 + $0x5e] sm:$0xff]
      %v2810 = vld [vmem:[%s207 + $0x66] sm:$0xff]
      %v2811 = vld [vmem:[%s207 + $0x6e] sm:$0xff]
      %v2812 = vld [vmem:[%s207 + $0x76] sm:$0xff]
      %v2813 = vld [vmem:[%s207 + $0x7e] sm:$0xff]
      %v2814 = vld [vmem:[%s207 + $0x86] sm:$0xff]
      %v2815 = vld [vmem:[%s207 + $0x8e] sm:$0xff]
      %v2816 = vld [vmem:[%s207 + $0x96] sm:$0xff]
      %v2817 = vld [vmem:[%s207 + $0x9e] sm:$0xff]
      %v2818 = vld [vmem:[%s207 + $0xa6] sm:$0xff]
      %v2819 = vld [vmem:[%s207 + $0xae] sm:$0xff]
      %v2820 = vld [vmem:[%s207 + $0xb6] sm:$0xff]
      %v2821 = vld [vmem:[%s207 + $0xbe] sm:$0xff]
      %v2822 = vld [vmem:[%s207 + $0xc6] sm:$0xff]
      %v2823 = vld [vmem:[%s207 + $0xce] sm:$0xff]
      %v2824 = vld [vmem:[%s207 + $0xd6] sm:$0xff]
      %v2825 = vld [vmem:[%s207 + $0xde] sm:$0xff]
      %v2826 = vld [vmem:[%s207 + $0xe6] sm:$0xff]
      %v2827 = vld [vmem:[%s207 + $0xee] sm:$0xff]
      %v2828 = vld [vmem:[%s207 + $0xf6] sm:$0xff]
      %v2829 = vld [vmem:[%s207 + $0xfe] sm:$0xff]
      %v2830 = vld [vmem:[%s207 + $0x106] sm:$0xff]
      %v2831 = vld [vmem:[%s207 + $0x10e] sm:$0xff]
      %v2832 = vld [vmem:[%s207 + $0x116] sm:$0xff]
      %v2833 = vld [vmem:[%s207 + $0x11e] sm:$0xff]
      %v2834 = vld [vmem:[%s207 + $0x126] sm:$0xff]
      %v2835 = vld [vmem:[%s207 + $0x12e] sm:$0xff]
      %v2836 = vld [vmem:[%s207 + $0x136] sm:$0xff]
      %v2837 = vld [vmem:[%s207 + $0x13e] sm:$0xff]
      %v2838 = vpack.c.bf16 %v2803, %v2802
      %v2839 = vpack.c.bf16 %v2805, %v2804
      %v2840 = vpack.c.bf16 %v2807, %v2806
      %v2841 = vpack.c.bf16 %v2809, %v2808
      %v2842 = vpack.c.bf16 %v2811, %v2810
      %v2843 = vpack.c.bf16 %v2813, %v2812
      %v2844 = vpack.c.bf16 %v2815, %v2814
      %v2845 = vpack.c.bf16 %v2817, %v2816
      %v2846 = vpack.c.bf16 %v2819, %v2818
      %v2847 = vpack.c.bf16 %v2821, %v2820
      %v2848 = vpack.c.bf16 %v2823, %v2822
      %v2849 = vpack.c.bf16 %v2825, %v2824
      %v2850 = vpack.c.bf16 %v2827, %v2826
      %v2851 = vpack.c.bf16 %v2829, %v2828
      %v2852 = vpack.c.bf16 %v2831, %v2830
      %v2853 = vpack.c.bf16 %v2833, %v2832
      %v2854 = vpack.c.bf16 %v2835, %v2834
      %v2855 = vpack.c.bf16 %v2837, %v2836
      %s2856 = scalar_lea.vmem %s1, 512
      %v2857 = vld [vmem:[%s2856] sm:$0xf]
      %v2858 = vld [vmem:[%s2856 + $0x4] sm:$0xf]
      %v2859 = vld [vmem:[%s2856 + $0x8] sm:$0xf]
      %v2860 = vld [vmem:[%s2856 + $0xc] sm:$0xf]
      %v2861 = vld [vmem:[%s2856 + $0x10] sm:$0xf]
      %v2862 = vld [vmem:[%s2856 + $0x14] sm:$0xf]
      %v2863 = vld [vmem:[%s2856 + $0x18] sm:$0xf]
      %v2864 = vld [vmem:[%s2856 + $0x1c] sm:$0xf]
      %v2865 = vld [vmem:[%s2856 + $0x20] sm:$0xf]
      %v2866 = vld [vmem:[%s2856 + $0x24] sm:$0xf]
      %v2867 = vld [vmem:[%s2856 + $0x28] sm:$0xf]
      %v2868 = vld [vmem:[%s2856 + $0x2c] sm:$0xf]
      %v2869 = vld [vmem:[%s2856 + $0x30] sm:$0xf]
      %v2870 = vld [vmem:[%s2856 + $0x34] sm:$0xf]
      %v2871 = vld [vmem:[%s2856 + $0x38] sm:$0xf]
      %v2872 = vld [vmem:[%s2856 + $0x3c] sm:$0xf]
      %v2889 = vunpack.c.l.b16 %v2857
      %v2890 = vunpack.c.l.b16 %v2858
      %v2891 = vunpack.c.l.b16 %v2859
      %v2892 = vunpack.c.l.b16 %v2860
      %v2893 = vunpack.c.l.b16 %v2861
      %v2894 = vunpack.c.l.b16 %v2862
      %v2895 = vunpack.c.l.b16 %v2863
      %v2896 = vunpack.c.l.b16 %v2864
      %v2897 = vunpack.c.l.b16 %v2865
      %v2898 = vunpack.c.l.b16 %v2866
      %v2899 = vunpack.c.l.b16 %v2867
      %v2900 = vunpack.c.l.b16 %v2868
      %v2901 = vunpack.c.l.b16 %v2869
      %v2902 = vunpack.c.l.b16 %v2870
      %v2903 = vunpack.c.l.b16 %v2871
      %v2904 = vunpack.c.l.b16 %v2872
      %v2905 = vpack.c.b16 %v2890, %v2889
      %v2906 = vpack.c.b16 %v2892, %v2891
      %v2907 = vpack.c.b16 %v2894, %v2893
      %v2908 = vpack.c.b16 %v2896, %v2895
      %v2909 = vpack.c.b16 %v2898, %v2897
      %v2910 = vpack.c.b16 %v2900, %v2899
      %v2911 = vpack.c.b16 %v2902, %v2901
      %v2912 = vpack.c.b16 %v2904, %v2903
      %2921 = vmatprep.subr.bf16.mxu0 0
      %2922 = vmatpush1.bf16.msra.mxu0 %v2905
      %2923 = vmatprep.subr.bf16.mxu0 0
      %2924 = vmatpush1.bf16.msra.mxu0 %v2906
      %2925 = vmatprep.subr.bf16.mxu0 0
      %2926 = vmatpush1.bf16.msra.mxu0 %v2907
      %2927 = vmatprep.subr.bf16.mxu0 0
      %2928 = vmatpush1.bf16.msra.mxu0 %v2908
      %2929 = vmatprep.subr.bf16.mxu0 0
      %2930 = vmatpush1.bf16.msra.mxu0 %v2909
      %2931 = vmatprep.subr.bf16.mxu0 0
      %2932 = vmatpush1.bf16.msra.mxu0 %v2910
      %2933 = vmatprep.subr.bf16.mxu0 0
      %2934 = vmatpush1.bf16.msra.mxu0 %v2911
      %2935 = vmatprep.subr.bf16.mxu0 0
      %2936 = vmatpush1.bf16.msra.mxu0 %v2912
      %2937 = vmatprep.subr.bf16.mxu0 0
      %2938 = vmatpush1.bf16.msra.mxu0 0
      %2939 = vmatprep.subr.bf16.mxu0 0
      %2940 = vmatpush1.bf16.msra.mxu0 0
      %2941 = vmatprep.subr.bf16.mxu0 0
      %2942 = vmatpush1.bf16.msra.mxu0 0
      %2943 = vmatprep.subr.bf16.mxu0 0
      %2944 = vmatpush1.bf16.msra.mxu0 0
      %2945 = vmatprep.subr.bf16.mxu0 0
      %2946 = vmatpush1.bf16.msra.mxu0 0
      %2947 = vmatprep.subr.bf16.mxu0 0
      %2948 = vmatpush1.bf16.msra.mxu0 0
      %2949 = vmatprep.subr.bf16.mxu0 0
      %2950 = vmatpush1.bf16.msra.mxu0 0
      %2951 = vmatprep.subr.bf16.mxu0 0
      %2952 = vmatpush1.bf16.msra.mxu0 0
      %2953 = vmatprep.mubr.bf16.mxu0 0
      %2954 = vmatmul.mubr.bf16.gmra.mrb[0].mxu0 %v2838
      %v2955 = vpop.f32.mrb[0].mxu0
      %v2956 = vadd.f32 0.0, %v2955
      %v2957 = vpop.f32.mrb[0].mxu0
      %v2958 = vpop.f32.mrb[0].mxu0
      %v2959 = vadd.f32 0.0, %v2958
      %v2960 = vpop.f32.mrb[0].mxu0
      %2961 = vmatprep.mubr.bf16.mxu0 0
      %2962 = vmatmul.mubr.bf16.gmra.mrb[0].mxu0 %v2839
      %v2963 = vpop.f32.mrb[0].mxu0
      %v2964 = vadd.f32 0.0, %v2963
      %v2965 = vpop.f32.mrb[0].mxu0
      %v2966 = vpop.f32.mrb[0].mxu0
      %v2967 = vadd.f32 0.0, %v2966
      %v2968 = vpop.f32.mrb[0].mxu0
      %2969 = vmatprep.mubr.bf16.mxu0 0
      %2970 = vmatmul.mubr.bf16.gmra.mrb[0].mxu0 %v2840
      %v2971 = vpop.f32.mrb[0].mxu0
      %v2972 = vadd.f32 0.0, %v2971
      %v2973 = vpop.f32.mrb[0].mxu0
      %v2974 = vpop.f32.mrb[0].mxu0
      %v2975 = vadd.f32 0.0, %v2974
      %v2976 = vpop.f32.mrb[0].mxu0
      %2977 = vmatprep.mubr.bf16.mxu0 0
      %2978 = vmatmul.mubr.bf16.gmra.mrb[0].mxu0 %v2841
      %v2979 = vpop.f32.mrb[0].mxu0
      %v2980 = vadd.f32 0.0, %v2979
      %v2981 = vpop.f32.mrb[0].mxu0
      %v2982 = vpop.f32.mrb[0].mxu0
      %v2983 = vadd.f32 0.0, %v2982
      %v2984 = vpop.f32.mrb[0].mxu0
      %2985 = vmatprep.mubr.bf16.mxu0 0
      %2986 = vmatmul.mubr.bf16.gmra.mrb[0].mxu0 %v2842
      %v2987 = vpop.f32.mrb[0].mxu0
      %v2988 = vadd.f32 0.0, %v2987
      %v2989 = vpop.f32.mrb[0].mxu0
      %v2990 = vpop.f32.mrb[0].mxu0
      %v2991 = vadd.f32 0.0, %v2990
      %v2992 = vpop.f32.mrb[0].mxu0
      %2993 = vmatprep.mubr.bf16.mxu0 0
      %2994 = vmatmul.mubr.bf16.gmra.mrb[0].mxu0 %v2843
      %v2995 = vpop.f32.mrb[0].mxu0
      %v2996 = vadd.f32 0.0, %v2995
      %v2997 = vpop.f32.mrb[0].mxu0
      %v2998 = vpop.f32.mrb[0].mxu0
      %v2999 = vadd.f32 0.0, %v2998
      %v3000 = vpop.f32.mrb[0].mxu0
      %3001 = vmatprep.mubr.bf16.mxu0 0
      %3002 = vmatmul.mubr.bf16.gmra.mrb[0].mxu0 %v2844
      %v3003 = vpop.f32.mrb[0].mxu0
      %v3004 = vadd.f32 0.0, %v3003
      %v3005 = vpop.f32.mrb[0].mxu0
      %v3006 = vpop.f32.mrb[0].mxu0
      %v3007 = vadd.f32 0.0, %v3006
      %v3008 = vpop.f32.mrb[0].mxu0
      %3009 = vmatprep.mubr.bf16.mxu0 0
      %3010 = vmatmul.mubr.bf16.gmra.mrb[0].mxu0 %v2845
      %v3011 = vpop.f32.mrb[0].mxu0
      %v3012 = vadd.f32 0.0, %v3011
      %v3013 = vpop.f32.mrb[0].mxu0
      %v3014 = vpop.f32.mrb[0].mxu0
      %v3015 = vadd.f32 0.0, %v3014
      %v3016 = vpop.f32.mrb[0].mxu0
      %3017 = vmatprep.mubr.bf16.mxu0 0
      %3018 = vmatmul.mubr.bf16.gmra.mrb[0].mxu0 %v2846
      %v3019 = vpop.f32.mrb[0].mxu0
      %v3020 = vadd.f32 0.0, %v3019
      %v3021 = vpop.f32.mrb[0].mxu0
      %v3022 = vpop.f32.mrb[0].mxu0
      %v3023 = vadd.f32 0.0, %v3022
      %v3024 = vpop.f32.mrb[0].mxu0
      %3025 = vmatprep.mubr.bf16.mxu0 0
      %3026 = vmatmul.mubr.bf16.gmra.mrb[0].mxu0 %v2847
      %v3027 = vpop.f32.mrb[0].mxu0
      %v3028 = vadd.f32 0.0, %v3027
      %v3029 = vpop.f32.mrb[0].mxu0
      %v3030 = vpop.f32.mrb[0].mxu0
      %v3031 = vadd.f32 0.0, %v3030
      %v3032 = vpop.f32.mrb[0].mxu0
      %3033 = vmatprep.mubr.bf16.mxu0 0
      %3034 = vmatmul.mubr.bf16.gmra.mrb[0].mxu0 %v2848
      %v3035 = vpop.f32.mrb[0].mxu0
      %v3036 = vadd.f32 0.0, %v3035
      %v3037 = vpop.f32.mrb[0].mxu0
      %v3038 = vpop.f32.mrb[0].mxu0
      %v3039 = vadd.f32 0.0, %v3038
      %v3040 = vpop.f32.mrb[0].mxu0
      %3041 = vmatprep.mubr.bf16.mxu0 0
      %3042 = vmatmul.mubr.bf16.gmra.mrb[0].mxu0 %v2849
      %v3043 = vpop.f32.mrb[0].mxu0
      %v3044 = vadd.f32 0.0, %v3043
      %v3045 = vpop.f32.mrb[0].mxu0
      %v3046 = vpop.f32.mrb[0].mxu0
      %v3047 = vadd.f32 0.0, %v3046
      %v3048 = vpop.f32.mrb[0].mxu0
      %3049 = vmatprep.mubr.bf16.mxu0 0
      %3050 = vmatmul.mubr.bf16.gmra.mrb[0].mxu0 %v2850
      %v3051 = vpop.f32.mrb[0].mxu0
      %v3052 = vadd.f32 0.0, %v3051
      %v3053 = vpop.f32.mrb[0].mxu0
      %v3054 = vpop.f32.mrb[0].mxu0
      %v3055 = vadd.f32 0.0, %v3054
      %v3056 = vpop.f32.mrb[0].mxu0
      %3057 = vmatprep.mubr.bf16.mxu0 0
      %3058 = vmatmul.mubr.bf16.gmra.mrb[0].mxu0 %v2851
      %v3059 = vpop.f32.mrb[0].mxu0
      %v3060 = vadd.f32 0.0, %v3059
      %v3061 = vpop.f32.mrb[0].mxu0
      %v3062 = vpop.f32.mrb[0].mxu0
      %v3063 = vadd.f32 0.0, %v3062
      %v3064 = vpop.f32.mrb[0].mxu0
      %3065 = vmatprep.mubr.bf16.mxu0 0
      %3066 = vmatmul.mubr.bf16.gmra.mrb[0].mxu0 %v2852
      %v3067 = vpop.f32.mrb[0].mxu0
      %v3068 = vadd.f32 0.0, %v3067
      %v3069 = vpop.f32.mrb[0].mxu0
      %v3070 = vpop.f32.mrb[0].mxu0
      %v3071 = vadd.f32 0.0, %v3070
      %v3072 = vpop.f32.mrb[0].mxu0
      %3073 = vmatprep.mubr.bf16.mxu0 0
      %3074 = vmatmul.mubr.bf16.gmra.mrb[0].mxu0 %v2853
      %v3075 = vpop.f32.mrb[0].mxu0
      %v3076 = vadd.f32 0.0, %v3075
      %v3077 = vpop.f32.mrb[0].mxu0
      %v3078 = vpop.f32.mrb[0].mxu0
      %v3079 = vadd.f32 0.0, %v3078
      %v3080 = vpop.f32.mrb[0].mxu0
      %3081 = vmatprep.mubr.bf16.mxu0 0
      %3082 = vmatmul.mubr.bf16.gmra.mrb[0].mxu0 %v2854
      %v3083 = vpop.f32.mrb[0].mxu0
      %v3084 = vadd.f32 0.0, %v3083
      %v3085 = vpop.f32.mrb[0].mxu0
      %v3086 = vpop.f32.mrb[0].mxu0
      %v3087 = vadd.f32 0.0, %v3086
      %v3088 = vpop.f32.mrb[0].mxu0
      %3089 = vmatprep.mubr.bf16.mxu0 0
      %3090 = vmatmul.mubr.bf16.gmra.mrb[0].mxu0 %v2855
      %v3091 = vpop.f32.mrb[0].mxu0
      %v3092 = vadd.f32 0.0, %v3091
      %v3093 = vpop.f32.mrb[0].mxu0
      %v3094 = vpop.f32.mrb[0].mxu0
      %v3095 = vadd.f32 0.0, %v3094
      %v3096 = vpop.f32.mrb[0].mxu0
      %3097 = vdwg.mxu0
      %v3098 = vadd.f32 %v2766, %v2956
      %v3099 = vadd.f32 %v2767, %v2959
      %v3100 = vadd.f32 %v2768, %v2964
      %v3101 = vadd.f32 %v2769, %v2967
      %v3102 = vadd.f32 %v2770, %v2972
      %v3103 = vadd.f32 %v2771, %v2975
      %v3104 = vadd.f32 %v2772, %v2980
      %v3105 = vadd.f32 %v2773, %v2983
      %v3106 = vadd.f32 %v2774, %v2988
      %v3107 = vadd.f32 %v2775, %v2991
      %v3108 = vadd.f32 %v2776, %v2996
      %v3109 = vadd.f32 %v2777, %v2999
      %v3110 = vadd.f32 %v2778, %v3004
      %v3111 = vadd.f32 %v2779, %v3007
      %v3112 = vadd.f32 %v2780, %v3012
      %v3113 = vadd.f32 %v2781, %v3015
      %v3114 = vadd.f32 %v2782, %v3020
      %v3115 = vadd.f32 %v2783, %v3023
      %v3116 = vadd.f32 %v2784, %v3028
      %v3117 = vadd.f32 %v2785, %v3031
      %v3118 = vadd.f32 %v2786, %v3036
      %v3119 = vadd.f32 %v2787, %v3039
      %v3120 = vadd.f32 %v2788, %v3044
      %v3121 = vadd.f32 %v2789, %v3047
      %v3122 = vadd.f32 %v2790, %v3052
      %v3123 = vadd.f32 %v2791, %v3055
      %v3124 = vadd.f32 %v2792, %v3060
      %v3125 = vadd.f32 %v2793, %v3063
      %v3126 = vadd.f32 %v2794, %v3068
      %v3127 = vadd.f32 %v2795, %v3071
      %v3128 = vadd.f32 %v2796, %v3076
      %v3129 = vadd.f32 %v2797, %v3079
      %v3130 = vadd.f32 %v2798, %v3084
      %v3131 = vadd.f32 %v2799, %v3087
      %v3132 = vadd.f32 %v2800, %v3092
      %v3133 = vadd.f32 %v2801, %v3095
      %v3134 = vld [vmem:[%s2] sm:$0x1]
      %v3136 = vlaneseq
      %v3137 = vshrl.u32 %v3136, 7
      %v3138 = vsub.s32 0, %v3137
      %v3139 = vrot.slane %v3134, %v3138
      %v3141 = vadd.f32 %v3098, %v3139
      %v3142 = vadd.f32 %v3099, %v3139
      %v3143 = vadd.f32 %v3100, %v3139
      %v3144 = vadd.f32 %v3101, %v3139
      %v3145 = vadd.f32 %v3102, %v3139
      %v3146 = vadd.f32 %v3103, %v3139
      %v3147 = vadd.f32 %v3104, %v3139
      %v3148 = vadd.f32 %v3105, %v3139
      %v3149 = vadd.f32 %v3106, %v3139
      %v3150 = vadd.f32 %v3107, %v3139
      %v3151 = vadd.f32 %v3108, %v3139
      %v3152 = vadd.f32 %v3109, %v3139
      %v3153 = vadd.f32 %v3110, %v3139
      %v3154 = vadd.f32 %v3111, %v3139
      %v3155 = vadd.f32 %v3112, %v3139
      %v3156 = vadd.f32 %v3113, %v3139
      %v3157 = vadd.f32 %v3114, %v3139
      %v3158 = vadd.f32 %v3115, %v3139
      %v3159 = vadd.f32 %v3116, %v3139
      %v3160 = vadd.f32 %v3117, %v3139
      %v3161 = vadd.f32 %v3118, %v3139
      %v3162 = vadd.f32 %v3119, %v3139
      %v3163 = vadd.f32 %v3120, %v3139
      %v3164 = vadd.f32 %v3121, %v3139
      %v3165 = vadd.f32 %v3122, %v3139
      %v3166 = vadd.f32 %v3123, %v3139
      %v3167 = vadd.f32 %v3124, %v3139
      %v3168 = vadd.f32 %v3125, %v3139
      %v3169 = vadd.f32 %v3126, %v3139
      %v3170 = vadd.f32 %v3127, %v3139
      %v3171 = vadd.f32 %v3128, %v3139
      %v3172 = vadd.f32 %v3129, %v3139
      %v3173 = vadd.f32 %v3130, %v3139
      %v3174 = vadd.f32 %v3131, %v3139
      %v3175 = vadd.f32 %v3132, %v3139
      %v3176 = vadd.f32 %v3133, %v3139
      %v3177 = vld [vmem:[%s212] sm:$0xff]
      %v3178 = vld [vmem:[%s212 + $0x8] sm:$0xff]
      %v3179 = vld [vmem:[%s212 + $0x10] sm:$0xff]
      %v3180 = vld [vmem:[%s212 + $0x18] sm:$0xff]
      %v3181 = vld [vmem:[%s212 + $0x20] sm:$0xff]
      %v3182 = vld [vmem:[%s212 + $0x28] sm:$0xff]
      %v3183 = vld [vmem:[%s212 + $0x30] sm:$0xff]
      %v3184 = vld [vmem:[%s212 + $0x38] sm:$0xff]
      %v3185 = vld [vmem:[%s212 + $0x40] sm:$0xff]
      %v3186 = vld [vmem:[%s212 + $0x48] sm:$0xff]
      %v3187 = vld [vmem:[%s212 + $0x50] sm:$0xff]
      %v3188 = vld [vmem:[%s212 + $0x58] sm:$0xff]
      %v3189 = vld [vmem:[%s212 + $0x60] sm:$0xff]
      %v3190 = vld [vmem:[%s212 + $0x68] sm:$0xff]
      %v3191 = vld [vmem:[%s212 + $0x70] sm:$0xff]
      %v3192 = vld [vmem:[%s212 + $0x78] sm:$0xff]
      %v3193 = vld [vmem:[%s212 + $0x80] sm:$0xff]
      %v3194 = vld [vmem:[%s212 + $0x88] sm:$0xff]
      %v3195 = vld [vmem:[%s212 + $0x90] sm:$0xff]
      %v3196 = vld [vmem:[%s212 + $0x98] sm:$0xff]
      %v3197 = vld [vmem:[%s212 + $0xa0] sm:$0xff]
      %v3198 = vld [vmem:[%s212 + $0xa8] sm:$0xff]
      %v3199 = vld [vmem:[%s212 + $0xb0] sm:$0xff]
      %v3200 = vld [vmem:[%s212 + $0xb8] sm:$0xff]
      %v3201 = vld [vmem:[%s212 + $0xc0] sm:$0xff]
      %v3202 = vld [vmem:[%s212 + $0xc8] sm:$0xff]
      %v3203 = vld [vmem:[%s212 + $0xd0] sm:$0xff]
      %v3204 = vld [vmem:[%s212 + $0xd8] sm:$0xff]
      %v3205 = vld [vmem:[%s212 + $0xe0] sm:$0xff]
      %v3206 = vld [vmem:[%s212 + $0xe8] sm:$0xff]
      %v3207 = vld [vmem:[%s212 + $0xf0] sm:$0xff]
      %v3208 = vld [vmem:[%s212 + $0xf8] sm:$0xff]
      %v3209 = vld [vmem:[%s212 + $0x100] sm:$0xff]
      %v3210 = vld [vmem:[%s212 + $0x108] sm:$0xff]
      %v3211 = vld [vmem:[%s212 + $0x110] sm:$0xff]
      %v3212 = vld [vmem:[%s212 + $0x118] sm:$0xff]
      %v3213 = vadd.f32 %v3141, %v3177
      %v3214 = vadd.f32 %v3142, %v3178
      %v3215 = vadd.f32 %v3143, %v3179
      %v3216 = vadd.f32 %v3144, %v3180
      %v3217 = vadd.f32 %v3145, %v3181
      %v3218 = vadd.f32 %v3146, %v3182
      %v3219 = vadd.f32 %v3147, %v3183
      %v3220 = vadd.f32 %v3148, %v3184
      %v3221 = vadd.f32 %v3149, %v3185
      %v3222 = vadd.f32 %v3150, %v3186
      %v3223 = vadd.f32 %v3151, %v3187
      %v3224 = vadd.f32 %v3152, %v3188
      %v3225 = vadd.f32 %v3153, %v3189
      %v3226 = vadd.f32 %v3154, %v3190
      %v3227 = vadd.f32 %v3155, %v3191
      %v3228 = vadd.f32 %v3156, %v3192
      %v3229 = vadd.f32 %v3157, %v3193
      %v3230 = vadd.f32 %v3158, %v3194
      %v3231 = vadd.f32 %v3159, %v3195
      %v3232 = vadd.f32 %v3160, %v3196
      %v3233 = vadd.f32 %v3161, %v3197
      %v3234 = vadd.f32 %v3162, %v3198
      %v3235 = vadd.f32 %v3163, %v3199
      %v3236 = vadd.f32 %v3164, %v3200
      %v3237 = vadd.f32 %v3165, %v3201
      %v3238 = vadd.f32 %v3166, %v3202
      %v3239 = vadd.f32 %v3167, %v3203
      %v3240 = vadd.f32 %v3168, %v3204
      %v3241 = vadd.f32 %v3169, %v3205
      %v3242 = vadd.f32 %v3170, %v3206
      %v3243 = vadd.f32 %v3171, %v3207
      %v3244 = vadd.f32 %v3172, %v3208
      %v3245 = vadd.f32 %v3173, %v3209
      %v3246 = vadd.f32 %v3174, %v3210
      %v3247 = vadd.f32 %v3175, %v3211
      %v3248 = vadd.f32 %v3176, %v3212
      %3249 = vst [vmem:[%s217] sm:$0xff] %v3213
      %3250 = vst [vmem:[%s217 + $0x8] sm:$0xff] %v3214
      %3251 = vst [vmem:[%s217 + $0x10] sm:$0xff] %v3215
      %3252 = vst [vmem:[%s217 + $0x18] sm:$0xff] %v3216
      %3253 = vst [vmem:[%s217 + $0x20] sm:$0xff] %v3217
      %3254 = vst [vmem:[%s217 + $0x28] sm:$0xff] %v3218
      %3255 = vst [vmem:[%s217 + $0x30] sm:$0xff] %v3219
      %3256 = vst [vmem:[%s217 + $0x38] sm:$0xff] %v3220
      %3257 = vst [vmem:[%s217 + $0x40] sm:$0xff] %v3221
      %3258 = vst [vmem:[%s217 + $0x48] sm:$0xff] %v3222
      %3259 = vst [vmem:[%s217 + $0x50] sm:$0xff] %v3223
      %3260 = vst [vmem:[%s217 + $0x58] sm:$0xff] %v3224
      %3261 = vst [vmem:[%s217 + $0x60] sm:$0xff] %v3225
      %3262 = vst [vmem:[%s217 + $0x68] sm:$0xff] %v3226
      %3263 = vst [vmem:[%s217 + $0x70] sm:$0xff] %v3227
      %3264 = vst [vmem:[%s217 + $0x78] sm:$0xff] %v3228
      %3265 = vst [vmem:[%s217 + $0x80] sm:$0xff] %v3229
      %3266 = vst [vmem:[%s217 + $0x88] sm:$0xff] %v3230
      %3267 = vst [vmem:[%s217 + $0x90] sm:$0xff] %v3231
      %3268 = vst [vmem:[%s217 + $0x98] sm:$0xff] %v3232
      %3269 = vst [vmem:[%s217 + $0xa0] sm:$0xff] %v3233
      %3270 = vst [vmem:[%s217 + $0xa8] sm:$0xff] %v3234
      %3271 = vst [vmem:[%s217 + $0xb0] sm:$0xff] %v3235
      %3272 = vst [vmem:[%s217 + $0xb8] sm:$0xff] %v3236
      %3273 = vst [vmem:[%s217 + $0xc0] sm:$0xff] %v3237
      %3274 = vst [vmem:[%s217 + $0xc8] sm:$0xff] %v3238
      %3275 = vst [vmem:[%s217 + $0xd0] sm:$0xff] %v3239
      %3276 = vst [vmem:[%s217 + $0xd8] sm:$0xff] %v3240
      %3277 = vst [vmem:[%s217 + $0xe0] sm:$0xff] %v3241
      %3278 = vst [vmem:[%s217 + $0xe8] sm:$0xff] %v3242
      %3279 = vst [vmem:[%s217 + $0xf0] sm:$0xff] %v3243
      %3280 = vst [vmem:[%s217 + $0xf8] sm:$0xff] %v3244
      %3281 = vst [vmem:[%s217 + $0x100] sm:$0xff] %v3245
      %3282 = vst [vmem:[%s217 + $0x108] sm:$0xff] %v3246
      %3283 = vst [vmem:[%s217 + $0x110] sm:$0xff] %v3247
      %3284 = vst [vmem:[%s217 + $0x118] sm:$0xff] %v3248
      %p3285 = scmp.lt.s32.totalorder %s15, 1
      %s3286 = scalar_select %p3285, %s15, 1
      %s3287 = smul.addr %s3286, 36
      %s3288 = smul.addr %s3287, 8
      %s3289 = scalar_lea.vmem %s4, %s3288
      // Predicated region
      $region37: #{augskip_bottleneck_forward.4} parent=35 // pred_check
        %p3290 = pneg %p127
      $region38: #{augskip_bottleneck_forward.4} parent=35 // pred_check_branch
        %3292 = sbr.rel (%p3290) target = $region40
      $region39: #{augskip_bottleneck_forward.4} parent=35 // pred_region
        _
      $region40: #{augskip_bottleneck_forward.4} parent=35 // pred_fallthru
        _
    $region36: #{augskip_bottleneck_forward.4} parent=5 // pred_fallthru
      _
    %p3293 = scmp.le.s32.totalorder 2, %s10
    // Predicated region
    $region41: #{augskip_bottleneck_forward.4} parent=5 // pred_check
      %p3294 = pneg %p3293
    $region42: #{augskip_bottleneck_forward.4} parent=5 // pred_check_branch
      %3296 = sbr.rel (%p3294) target = $region44
    $region43: #{augskip_bottleneck_forward.4} parent=5 // pred_region
      %s3297 = ssub.s32 %s10, 2
      // Predicated region
      $region45: #{augskip_bottleneck_forward.4} parent=43 // pred_check
        %p3298 = pneg %p133
      $region46: #{augskip_bottleneck_forward.4} parent=43 // pred_check_branch
        %3300 = sbr.rel (%p3298) target = $region48
      $region47: #{augskip_bottleneck_forward.4} parent=43 // pred_region
        %p3301 = scmp.lt.s32.totalorder %s16, 1
        %s3302 = scalar_select %p3301, %s16, 1
        %s3303 = smul.addr %s3302, 36
        %s3304 = smul.addr %s3303, 8
        %s3305 = scalar_lea.vmem %s4, %s3304
      $region48: #{augskip_bottleneck_forward.4} parent=43 // pred_fallthru
        _
    $region44: #{augskip_bottleneck_forward.4} parent=5 // pred_fallthru
      _
  $region6: #{augskip_bottleneck_forward.4} parent=0 // loop_footer
    %s14 = sadd.s32 1, %s10
  $region7: #{augskip_bottleneck_forward.4} parent=0 // loop_footer_branch
    %9 = sbr.rel target = $region3
  $region8: #{augskip_bottleneck_forward.4} parent=0 // loop_exit
    _

</llo_original>
